<compile_context>
chip_gen: v6e
topology: v6e:2x2x1
jax: 0.10.0
libtpu: 0.0.40
codegen_flags: <defaults>
</compile_context>

<pallas_src>
import jax
import jax.numpy as jnp
from jax.experimental import pallas as pl
from jax.experimental.pallas import tpu as pltpu

# ---- small, deterministic configuration (default paper sizes shrunk) -------
NUM_STACKS = 2
NUM_BLOCKS = 2
NUM_LAYERS = 4
BATCH = 256          # tiled over the grid
BATCH_TILE = 128     # rows per grid step (fills MXU sublanes, amortizes step cost)
INPUT_DIM = 16
OUTPUT_DIM = 8
HIDDEN = 32
OUT_PAD = 128        # lane-dense forecast width inside the kernel
HEAD_DIM = OUT_PAD + INPUT_DIM   # fused head: [forecast(128-padded) | backcast(I)]


def _nbeats_kernel(x_ref,                    # (T, I)
                   w_in_ref, b_in_ref,       # (NB, I, H), (NB, 1, H)
                   w_hid_ref, b_hid_ref,     # (NB, L-1, H, H), (NB, L-1, 1, H)
                   w_back_ref, b_back_ref,   # (NB, H, I), (NB, 1, I)   -- non-final stacks
                   w_head_ref, b_head_ref,   # (NB, H, 128+I), (NB, 1, 128+I) -- final stack (fused)
                   forecast_ref):            # out: (T, 128) lane-dense
    x = x_ref[...]                           # (T, I) residual, float32

    for stack in range(NUM_STACKS):          # stacks share weights ([stack]*N)
        is_last = stack == NUM_STACKS - 1
        if is_last:
            stack_forecast = jnp.zeros((x.shape[0], OUT_PAD), jnp.float32)

        for blk in range(NUM_BLOCKS):
            # block "torso": 4 fully-connected + ReLU layers
            h = jnp.dot(x, w_in_ref[blk],
                        preferred_element_type=jnp.float32) + b_in_ref[blk]
            h = jnp.maximum(h, 0.0)
            for layer in range(NUM_LAYERS - 1):
                h = jnp.dot(h, w_hid_ref[blk, layer],
                            preferred_element_type=jnp.float32) + b_hid_ref[blk, layer]
                h = jnp.maximum(h, 0.0)

            if is_last:
                # fused forecast+backcast head: one MXU push per block.
                head = jnp.dot(h, w_head_ref[blk],
                               preferred_element_type=jnp.float32) + b_head_ref[blk]
                stack_forecast = stack_forecast + head[:, :OUT_PAD]   # lane-aligned
                x = x - head[:, OUT_PAD:]                             # lane-aligned
            else:
                # earlier stacks: forecast is dead work -> backcast head only.
                back = jnp.dot(h, w_back_ref[blk],
                               preferred_element_type=jnp.float32) + b_back_ref[blk]
                x = x - back

        if is_last:
            forecast_ref[...] = stack_forecast   # unmasked, lane-dense store


def _resident_spec(arr):
    """Full-array, VMEM-resident BlockSpec (constant block index -> no re-DMA)."""
    zeros = (0,) * arr.ndim
    return pl.BlockSpec(arr.shape, lambda i, _z=zeros: _z)


def nbeats_forward(x, params):
    """Run the N-BEATS forward in one Pallas call with a batch-tiled grid."""
    w_in, b_in, w_hid, b_hid, w_back, b_back, w_fore, b_fore = params
    batch = x.shape[0]
    assert batch % BATCH_TILE == 0, "batch must be a multiple of BATCH_TILE"

    # Build the fused final-stack head: [forecast padded to 128 lanes | backcast].
    w_fore_pad = jnp.zeros((NUM_BLOCKS, HIDDEN, OUT_PAD), jnp.float32)
    w_fore_pad = w_fore_pad.at[:, :, :OUTPUT_DIM].set(w_fore)
    b_fore_pad = jnp.zeros((NUM_BLOCKS, 1, OUT_PAD), jnp.float32)
    b_fore_pad = b_fore_pad.at[:, :, :OUTPUT_DIM].set(b_fore)
    w_head = jnp.concatenate([w_fore_pad, w_back], axis=-1)   # (NB, H, 128+I)
    b_head = jnp.concatenate([b_fore_pad, b_back], axis=-1)   # (NB, 1, 128+I)

    kernel_params = (w_in, b_in, w_hid, b_hid, w_back, b_back, w_head, b_head)

    in_specs = [pl.BlockSpec((BATCH_TILE, INPUT_DIM), lambda i: (i, 0))]
    in_specs += [_resident_spec(p) for p in kernel_params]

    out_padded = pl.pallas_call(
        _nbeats_kernel,
        out_shape=jax.ShapeDtypeStruct((batch, OUT_PAD), jnp.float32),
        grid=(batch // BATCH_TILE,),
        in_specs=in_specs,
        out_specs=pl.BlockSpec((BATCH_TILE, OUT_PAD), lambda i: (i, 0)),
        compiler_params=pltpu.CompilerParams(
            dimension_semantics=("parallel",)),   # shards batch tiles across TCs on v7x
    )(x, *kernel_params)
    return out_padded[:, :OUTPUT_DIM]


def init_params(key):
    """Deterministic synthetic weights for one stack (shared across stacks)."""
    ks = jax.random.split(key, 8)
    scale = 0.05
    w_in = scale * jax.random.normal(ks[0], (NUM_BLOCKS, INPUT_DIM, HIDDEN), jnp.float32)
    b_in = scale * jax.random.normal(ks[1], (NUM_BLOCKS, 1, HIDDEN), jnp.float32)
    w_hid = scale * jax.random.normal(ks[2], (NUM_BLOCKS, NUM_LAYERS - 1, HIDDEN, HIDDEN), jnp.float32)
    b_hid = scale * jax.random.normal(ks[3], (NUM_BLOCKS, NUM_LAYERS - 1, 1, HIDDEN), jnp.float32)
    w_back = scale * jax.random.normal(ks[4], (NUM_BLOCKS, HIDDEN, INPUT_DIM), jnp.float32)
    b_back = scale * jax.random.normal(ks[5], (NUM_BLOCKS, 1, INPUT_DIM), jnp.float32)
    w_fore = scale * jax.random.normal(ks[6], (NUM_BLOCKS, HIDDEN, OUTPUT_DIM), jnp.float32)
    b_fore = scale * jax.random.normal(ks[7], (NUM_BLOCKS, 1, OUTPUT_DIM), jnp.float32)
    return (w_in, b_in, w_hid, b_hid, w_back, b_back, w_fore, b_fore)


def reference_forward(x, params):
    """Pure-JAX reference mirroring the original (unfused) semantics."""
    w_in, b_in, w_hid, b_hid, w_back, b_back, w_fore, b_fore = params
    forward = jnp.zeros((x.shape[0], OUTPUT_DIM), jnp.float32)
    for _ in range(NUM_STACKS):
        sf = jnp.zeros((x.shape[0], OUTPUT_DIM), jnp.float32)
        for blk in range(NUM_BLOCKS):
            h = jax.nn.relu(x @ w_in[blk] + b_in[blk])
            for l in range(NUM_LAYERS - 1):
                h = jax.nn.relu(h @ w_hid[blk, l] + b_hid[blk, l])
            back = h @ w_back[blk] + b_back[blk]
            fc = h @ w_fore[blk] + b_fore[blk]
            x = x - back
            sf = sf + fc
        forward = sf      # only the last stack's forecast is returned
    return forward


if __name__ == "__main__":
    key = jax.random.PRNGKey(0)
    kx, kp = jax.random.split(key)
    x = jax.random.normal(kx, (BATCH, INPUT_DIM), jnp.float32)
    params = init_params(kp)

    out = nbeats_forward(x, params)
    out = jax.block_until_ready(out)

    ref = reference_forward(x, params)
    assert out.shape == (BATCH, OUTPUT_DIM)
    assert jnp.allclose(out, ref, atol=1e-5, rtol=1e-5), "mismatch vs JAX reference"
    print("KERNEL_OK")
</pallas_src>

<mosaic_0001>
module attributes {stable_mosaic.version = 11 : i64} {
  func.func @_nbeats_kernel(%arg0: i32, %arg1: memref<128x16xf32, #tpu.memory_space<vmem>>, %arg2: memref<2x16x32xf32, #tpu.memory_space<vmem>>, %arg3: memref<2x1x32xf32, #tpu.memory_space<vmem>>, %arg4: memref<2x3x32x32xf32, #tpu.memory_space<vmem>>, %arg5: memref<2x3x1x32xf32, #tpu.memory_space<vmem>>, %arg6: memref<2x32x16xf32, #tpu.memory_space<vmem>>, %arg7: memref<2x1x16xf32, #tpu.memory_space<vmem>>, %arg8: memref<2x32x144xf32, #tpu.memory_space<vmem>>, %arg9: memref<2x1x144xf32, #tpu.memory_space<vmem>>, %arg10: memref<128x128xf32, #tpu.memory_space<vmem>>) attributes {dimension_semantics = [#tpu.dimension_semantics<parallel>], iteration_bounds = array<i64: 2>, scalar_prefetch = 0 : i64, scratch_operands = 0 : i64, tpu.core_type = #tpu.core_type<tc>, window_params = [{transform_indices = @transform_0, window_bounds = array<i64: 128, 16>}, {pipeline_mode = #tpu.pipeline_mode<synchronous>, transform_indices = @transform_1, window_bounds = array<i64: 2, 16, 32>}, {pipeline_mode = #tpu.pipeline_mode<synchronous>, transform_indices = @transform_2, window_bounds = array<i64: 2, 1, 32>}, {pipeline_mode = #tpu.pipeline_mode<synchronous>, transform_indices = @transform_3, window_bounds = array<i64: 2, 3, 32, 32>}, {pipeline_mode = #tpu.pipeline_mode<synchronous>, transform_indices = @transform_4, window_bounds = array<i64: 2, 3, 1, 32>}, {pipeline_mode = #tpu.pipeline_mode<synchronous>, transform_indices = @transform_5, window_bounds = array<i64: 2, 32, 16>}, {pipeline_mode = #tpu.pipeline_mode<synchronous>, transform_indices = @transform_6, window_bounds = array<i64: 2, 1, 16>}, {pipeline_mode = #tpu.pipeline_mode<synchronous>, transform_indices = @transform_7, window_bounds = array<i64: 2, 32, 144>}, {pipeline_mode = #tpu.pipeline_mode<synchronous>, transform_indices = @transform_8, window_bounds = array<i64: 2, 1, 144>}, {transform_indices = @transform_9, window_bounds = array<i64: 128, 128>}]} {
    %c0 = arith.constant 0 : index
    %c0_0 = arith.constant 0 : index
    %0 = vector.load %arg1[%c0, %c0_0] : memref<128x16xf32, #tpu.memory_space<vmem>>, vector<128x16xf32>
    %c0_1 = arith.constant 0 : index
    %c0_2 = arith.constant 0 : index
    %c0_3 = arith.constant 0 : index
    %1 = vector.load %arg2[%c0_1, %c0_2, %c0_3] : memref<2x16x32xf32, #tpu.memory_space<vmem>>, vector<1x16x32xf32>
    %2 = vector.shape_cast %1 : vector<1x16x32xf32> to vector<16x32xf32>
    %cst = arith.constant dense<0.000000e+00> : vector<128x32xf32>
    %3 = tpu.matmul %0, %2, %cst {dimension_numbers = #tpu.dot_dimension_numbers<[1], [0], [0], [1], [0, 0, 1, 1], [], []>} : vector<128x16xf32>, vector<16x32xf32>, vector<128x32xf32> -> vector<128x32xf32>
    %c0_4 = arith.constant 0 : index
    %c0_5 = arith.constant 0 : index
    %c0_6 = arith.constant 0 : index
    %4 = vector.load %arg3[%c0_4, %c0_5, %c0_6] : memref<2x1x32xf32, #tpu.memory_space<vmem>>, vector<1x1x32xf32>
    %5 = vector.shape_cast %4 : vector<1x1x32xf32> to vector<1x32xf32>
    %6 = vector.broadcast %5 : vector<1x32xf32> to vector<128x32xf32>
    %7 = arith.addf %3, %6 : vector<128x32xf32>
    %cst_7 = arith.constant 0.000000e+00 : f32
    %8 = vector.broadcast %cst_7 : f32 to vector<128x32xf32>
    %9 = arith.maximumf %7, %8 : vector<128x32xf32>
    %c0_8 = arith.constant 0 : index
    %c0_9 = arith.constant 0 : index
    %c0_10 = arith.constant 0 : index
    %c0_11 = arith.constant 0 : index
    %10 = vector.load %arg4[%c0_8, %c0_9, %c0_10, %c0_11] : memref<2x3x32x32xf32, #tpu.memory_space<vmem>>, vector<1x1x32x32xf32>
    %11 = vector.shape_cast %10 : vector<1x1x32x32xf32> to vector<32x32xf32>
    %cst_12 = arith.constant dense<0.000000e+00> : vector<128x32xf32>
    %12 = tpu.matmul %9, %11, %cst_12 {dimension_numbers = #tpu.dot_dimension_numbers<[1], [0], [0], [1], [0, 0, 1, 1], [], []>} : vector<128x32xf32>, vector<32x32xf32>, vector<128x32xf32> -> vector<128x32xf32>
    %c0_13 = arith.constant 0 : index
    %c0_14 = arith.constant 0 : index
    %c0_15 = arith.constant 0 : index
    %c0_16 = arith.constant 0 : index
    %13 = vector.load %arg5[%c0_13, %c0_14, %c0_15, %c0_16] : memref<2x3x1x32xf32, #tpu.memory_space<vmem>>, vector<1x1x1x32xf32>
    %14 = vector.shape_cast %13 : vector<1x1x1x32xf32> to vector<1x32xf32>
    %15 = vector.broadcast %14 : vector<1x32xf32> to vector<128x32xf32>
    %16 = arith.addf %12, %15 : vector<128x32xf32>
    %cst_17 = arith.constant 0.000000e+00 : f32
    %17 = vector.broadcast %cst_17 : f32 to vector<128x32xf32>
    %18 = arith.maximumf %16, %17 : vector<128x32xf32>
    %c0_18 = arith.constant 0 : index
    %c1 = arith.constant 1 : index
    %c0_19 = arith.constant 0 : index
    %c0_20 = arith.constant 0 : index
    %19 = vector.load %arg4[%c0_18, %c1, %c0_19, %c0_20] : memref<2x3x32x32xf32, #tpu.memory_space<vmem>>, vector<1x1x32x32xf32>
    %20 = vector.shape_cast %19 : vector<1x1x32x32xf32> to vector<32x32xf32>
    %cst_21 = arith.constant dense<0.000000e+00> : vector<128x32xf32>
    %21 = tpu.matmul %18, %20, %cst_21 {dimension_numbers = #tpu.dot_dimension_numbers<[1], [0], [0], [1], [0, 0, 1, 1], [], []>} : vector<128x32xf32>, vector<32x32xf32>, vector<128x32xf32> -> vector<128x32xf32>
    %c0_22 = arith.constant 0 : index
    %c1_23 = arith.constant 1 : index
    %c0_24 = arith.constant 0 : index
    %c0_25 = arith.constant 0 : index
    %22 = vector.load %arg5[%c0_22, %c1_23, %c0_24, %c0_25] : memref<2x3x1x32xf32, #tpu.memory_space<vmem>>, vector<1x1x1x32xf32>
    %23 = vector.shape_cast %22 : vector<1x1x1x32xf32> to vector<1x32xf32>
    %24 = vector.broadcast %23 : vector<1x32xf32> to vector<128x32xf32>
    %25 = arith.addf %21, %24 : vector<128x32xf32>
    %cst_26 = arith.constant 0.000000e+00 : f32
    %26 = vector.broadcast %cst_26 : f32 to vector<128x32xf32>
    %27 = arith.maximumf %25, %26 : vector<128x32xf32>
    %c0_27 = arith.constant 0 : index
    %c2 = arith.constant 2 : index
    %c0_28 = arith.constant 0 : index
    %c0_29 = arith.constant 0 : index
    %28 = vector.load %arg4[%c0_27, %c2, %c0_28, %c0_29] : memref<2x3x32x32xf32, #tpu.memory_space<vmem>>, vector<1x1x32x32xf32>
    %29 = vector.shape_cast %28 : vector<1x1x32x32xf32> to vector<32x32xf32>
    %cst_30 = arith.constant dense<0.000000e+00> : vector<128x32xf32>
    %30 = tpu.matmul %27, %29, %cst_30 {dimension_numbers = #tpu.dot_dimension_numbers<[1], [0], [0], [1], [0, 0, 1, 1], [], []>} : vector<128x32xf32>, vector<32x32xf32>, vector<128x32xf32> -> vector<128x32xf32>
    %c0_31 = arith.constant 0 : index
    %c2_32 = arith.constant 2 : index
    %c0_33 = arith.constant 0 : index
    %c0_34 = arith.constant 0 : index
    %31 = vector.load %arg5[%c0_31, %c2_32, %c0_33, %c0_34] : memref<2x3x1x32xf32, #tpu.memory_space<vmem>>, vector<1x1x1x32xf32>
    %32 = vector.shape_cast %31 : vector<1x1x1x32xf32> to vector<1x32xf32>
    %33 = vector.broadcast %32 : vector<1x32xf32> to vector<128x32xf32>
    %34 = arith.addf %30, %33 : vector<128x32xf32>
    %cst_35 = arith.constant 0.000000e+00 : f32
    %35 = vector.broadcast %cst_35 : f32 to vector<128x32xf32>
    %36 = arith.maximumf %34, %35 : vector<128x32xf32>
    %c0_36 = arith.constant 0 : index
    %c0_37 = arith.constant 0 : index
    %c0_38 = arith.constant 0 : index
    %37 = vector.load %arg6[%c0_36, %c0_37, %c0_38] : memref<2x32x16xf32, #tpu.memory_space<vmem>>, vector<1x32x16xf32>
    %38 = vector.shape_cast %37 : vector<1x32x16xf32> to vector<32x16xf32>
    %cst_39 = arith.constant dense<0.000000e+00> : vector<128x16xf32>
    %39 = tpu.matmul %36, %38, %cst_39 {dimension_numbers = #tpu.dot_dimension_numbers<[1], [0], [0], [1], [0, 0, 1, 1], [], []>} : vector<128x32xf32>, vector<32x16xf32>, vector<128x16xf32> -> vector<128x16xf32>
    %c0_40 = arith.constant 0 : index
    %c0_41 = arith.constant 0 : index
    %c0_42 = arith.constant 0 : index
    %40 = vector.load %arg7[%c0_40, %c0_41, %c0_42] : memref<2x1x16xf32, #tpu.memory_space<vmem>>, vector<1x1x16xf32>
    %41 = vector.shape_cast %40 : vector<1x1x16xf32> to vector<1x16xf32>
    %42 = vector.broadcast %41 : vector<1x16xf32> to vector<128x16xf32>
    %43 = arith.addf %39, %42 : vector<128x16xf32>
    %44 = arith.subf %0, %43 : vector<128x16xf32>
    %c1_43 = arith.constant 1 : index
    %c0_44 = arith.constant 0 : index
    %c0_45 = arith.constant 0 : index
    %45 = vector.load %arg2[%c1_43, %c0_44, %c0_45] : memref<2x16x32xf32, #tpu.memory_space<vmem>>, vector<1x16x32xf32>
    %46 = vector.shape_cast %45 : vector<1x16x32xf32> to vector<16x32xf32>
    %cst_46 = arith.constant dense<0.000000e+00> : vector<128x32xf32>
    %47 = tpu.matmul %44, %46, %cst_46 {dimension_numbers = #tpu.dot_dimension_numbers<[1], [0], [0], [1], [0, 0, 1, 1], [], []>} : vector<128x16xf32>, vector<16x32xf32>, vector<128x32xf32> -> vector<128x32xf32>
    %c1_47 = arith.constant 1 : index
    %c0_48 = arith.constant 0 : index
    %c0_49 = arith.constant 0 : index
    %48 = vector.load %arg3[%c1_47, %c0_48, %c0_49] : memref<2x1x32xf32, #tpu.memory_space<vmem>>, vector<1x1x32xf32>
    %49 = vector.shape_cast %48 : vector<1x1x32xf32> to vector<1x32xf32>
    %50 = vector.broadcast %49 : vector<1x32xf32> to vector<128x32xf32>
    %51 = arith.addf %47, %50 : vector<128x32xf32>
    %cst_50 = arith.constant 0.000000e+00 : f32
    %52 = vector.broadcast %cst_50 : f32 to vector<128x32xf32>
    %53 = arith.maximumf %51, %52 : vector<128x32xf32>
    %c1_51 = arith.constant 1 : index
    %c0_52 = arith.constant 0 : index
    %c0_53 = arith.constant 0 : index
    %c0_54 = arith.constant 0 : index
    %54 = vector.load %arg4[%c1_51, %c0_52, %c0_53, %c0_54] : memref<2x3x32x32xf32, #tpu.memory_space<vmem>>, vector<1x1x32x32xf32>
    %55 = vector.shape_cast %54 : vector<1x1x32x32xf32> to vector<32x32xf32>
    %cst_55 = arith.constant dense<0.000000e+00> : vector<128x32xf32>
    %56 = tpu.matmul %53, %55, %cst_55 {dimension_numbers = #tpu.dot_dimension_numbers<[1], [0], [0], [1], [0, 0, 1, 1], [], []>} : vector<128x32xf32>, vector<32x32xf32>, vector<128x32xf32> -> vector<128x32xf32>
    %c1_56 = arith.constant 1 : index
    %c0_57 = arith.constant 0 : index
    %c0_58 = arith.constant 0 : index
    %c0_59 = arith.constant 0 : index
    %57 = vector.load %arg5[%c1_56, %c0_57, %c0_58, %c0_59] : memref<2x3x1x32xf32, #tpu.memory_space<vmem>>, vector<1x1x1x32xf32>
    %58 = vector.shape_cast %57 : vector<1x1x1x32xf32> to vector<1x32xf32>
    %59 = vector.broadcast %58 : vector<1x32xf32> to vector<128x32xf32>
    %60 = arith.addf %56, %59 : vector<128x32xf32>
    %cst_60 = arith.constant 0.000000e+00 : f32
    %61 = vector.broadcast %cst_60 : f32 to vector<128x32xf32>
    %62 = arith.maximumf %60, %61 : vector<128x32xf32>
    %c1_61 = arith.constant 1 : index
    %c1_62 = arith.constant 1 : index
    %c0_63 = arith.constant 0 : index
    %c0_64 = arith.constant 0 : index
    %63 = vector.load %arg4[%c1_61, %c1_62, %c0_63, %c0_64] : memref<2x3x32x32xf32, #tpu.memory_space<vmem>>, vector<1x1x32x32xf32>
    %64 = vector.shape_cast %63 : vector<1x1x32x32xf32> to vector<32x32xf32>
    %cst_65 = arith.constant dense<0.000000e+00> : vector<128x32xf32>
    %65 = tpu.matmul %62, %64, %cst_65 {dimension_numbers = #tpu.dot_dimension_numbers<[1], [0], [0], [1], [0, 0, 1, 1], [], []>} : vector<128x32xf32>, vector<32x32xf32>, vector<128x32xf32> -> vector<128x32xf32>
    %c1_66 = arith.constant 1 : index
    %c1_67 = arith.constant 1 : index
    %c0_68 = arith.constant 0 : index
    %c0_69 = arith.constant 0 : index
    %66 = vector.load %arg5[%c1_66, %c1_67, %c0_68, %c0_69] : memref<2x3x1x32xf32, #tpu.memory_space<vmem>>, vector<1x1x1x32xf32>
    %67 = vector.shape_cast %66 : vector<1x1x1x32xf32> to vector<1x32xf32>
    %68 = vector.broadcast %67 : vector<1x32xf32> to vector<128x32xf32>
    %69 = arith.addf %65, %68 : vector<128x32xf32>
    %cst_70 = arith.constant 0.000000e+00 : f32
    %70 = vector.broadcast %cst_70 : f32 to vector<128x32xf32>
    %71 = arith.maximumf %69, %70 : vector<128x32xf32>
    %c1_71 = arith.constant 1 : index
    %c2_72 = arith.constant 2 : index
    %c0_73 = arith.constant 0 : index
    %c0_74 = arith.constant 0 : index
    %72 = vector.load %arg4[%c1_71, %c2_72, %c0_73, %c0_74] : memref<2x3x32x32xf32, #tpu.memory_space<vmem>>, vector<1x1x32x32xf32>
    %73 = vector.shape_cast %72 : vector<1x1x32x32xf32> to vector<32x32xf32>
    %cst_75 = arith.constant dense<0.000000e+00> : vector<128x32xf32>
    %74 = tpu.matmul %71, %73, %cst_75 {dimension_numbers = #tpu.dot_dimension_numbers<[1], [0], [0], [1], [0, 0, 1, 1], [], []>} : vector<128x32xf32>, vector<32x32xf32>, vector<128x32xf32> -> vector<128x32xf32>
    %c1_76 = arith.constant 1 : index
    %c2_77 = arith.constant 2 : index
    %c0_78 = arith.constant 0 : index
    %c0_79 = arith.constant 0 : index
    %75 = vector.load %arg5[%c1_76, %c2_77, %c0_78, %c0_79] : memref<2x3x1x32xf32, #tpu.memory_space<vmem>>, vector<1x1x1x32xf32>
    %76 = vector.shape_cast %75 : vector<1x1x1x32xf32> to vector<1x32xf32>
    %77 = vector.broadcast %76 : vector<1x32xf32> to vector<128x32xf32>
    %78 = arith.addf %74, %77 : vector<128x32xf32>
    %cst_80 = arith.constant 0.000000e+00 : f32
    %79 = vector.broadcast %cst_80 : f32 to vector<128x32xf32>
    %80 = arith.maximumf %78, %79 : vector<128x32xf32>
    %c1_81 = arith.constant 1 : index
    %c0_82 = arith.constant 0 : index
    %c0_83 = arith.constant 0 : index
    %81 = vector.load %arg6[%c1_81, %c0_82, %c0_83] : memref<2x32x16xf32, #tpu.memory_space<vmem>>, vector<1x32x16xf32>
    %82 = vector.shape_cast %81 : vector<1x32x16xf32> to vector<32x16xf32>
    %cst_84 = arith.constant dense<0.000000e+00> : vector<128x16xf32>
    %83 = tpu.matmul %80, %82, %cst_84 {dimension_numbers = #tpu.dot_dimension_numbers<[1], [0], [0], [1], [0, 0, 1, 1], [], []>} : vector<128x32xf32>, vector<32x16xf32>, vector<128x16xf32> -> vector<128x16xf32>
    %c1_85 = arith.constant 1 : index
    %c0_86 = arith.constant 0 : index
    %c0_87 = arith.constant 0 : index
    %84 = vector.load %arg7[%c1_85, %c0_86, %c0_87] : memref<2x1x16xf32, #tpu.memory_space<vmem>>, vector<1x1x16xf32>
    %85 = vector.shape_cast %84 : vector<1x1x16xf32> to vector<1x16xf32>
    %86 = vector.broadcast %85 : vector<1x16xf32> to vector<128x16xf32>
    %87 = arith.addf %83, %86 : vector<128x16xf32>
    %88 = arith.subf %44, %87 : vector<128x16xf32>
    %cst_88 = arith.constant 0.000000e+00 : f32
    %89 = vector.broadcast %cst_88 : f32 to vector<128x128xf32>
    %c0_89 = arith.constant 0 : index
    %c0_90 = arith.constant 0 : index
    %c0_91 = arith.constant 0 : index
    %90 = vector.load %arg2[%c0_89, %c0_90, %c0_91] : memref<2x16x32xf32, #tpu.memory_space<vmem>>, vector<1x16x32xf32>
    %91 = vector.shape_cast %90 : vector<1x16x32xf32> to vector<16x32xf32>
    %cst_92 = arith.constant dense<0.000000e+00> : vector<128x32xf32>
    %92 = tpu.matmul %88, %91, %cst_92 {dimension_numbers = #tpu.dot_dimension_numbers<[1], [0], [0], [1], [0, 0, 1, 1], [], []>} : vector<128x16xf32>, vector<16x32xf32>, vector<128x32xf32> -> vector<128x32xf32>
    %c0_93 = arith.constant 0 : index
    %c0_94 = arith.constant 0 : index
    %c0_95 = arith.constant 0 : index
    %93 = vector.load %arg3[%c0_93, %c0_94, %c0_95] : memref<2x1x32xf32, #tpu.memory_space<vmem>>, vector<1x1x32xf32>
    %94 = vector.shape_cast %93 : vector<1x1x32xf32> to vector<1x32xf32>
    %95 = vector.broadcast %94 : vector<1x32xf32> to vector<128x32xf32>
    %96 = arith.addf %92, %95 : vector<128x32xf32>
    %cst_96 = arith.constant 0.000000e+00 : f32
    %97 = vector.broadcast %cst_96 : f32 to vector<128x32xf32>
    %98 = arith.maximumf %96, %97 : vector<128x32xf32>
    %c0_97 = arith.constant 0 : index
    %c0_98 = arith.constant 0 : index
    %c0_99 = arith.constant 0 : index
    %c0_100 = arith.constant 0 : index
    %99 = vector.load %arg4[%c0_97, %c0_98, %c0_99, %c0_100] : memref<2x3x32x32xf32, #tpu.memory_space<vmem>>, vector<1x1x32x32xf32>
    %100 = vector.shape_cast %99 : vector<1x1x32x32xf32> to vector<32x32xf32>
    %cst_101 = arith.constant dense<0.000000e+00> : vector<128x32xf32>
    %101 = tpu.matmul %98, %100, %cst_101 {dimension_numbers = #tpu.dot_dimension_numbers<[1], [0], [0], [1], [0, 0, 1, 1], [], []>} : vector<128x32xf32>, vector<32x32xf32>, vector<128x32xf32> -> vector<128x32xf32>
    %c0_102 = arith.constant 0 : index
    %c0_103 = arith.constant 0 : index
    %c0_104 = arith.constant 0 : index
    %c0_105 = arith.constant 0 : index
    %102 = vector.load %arg5[%c0_102, %c0_103, %c0_104, %c0_105] : memref<2x3x1x32xf32, #tpu.memory_space<vmem>>, vector<1x1x1x32xf32>
    %103 = vector.shape_cast %102 : vector<1x1x1x32xf32> to vector<1x32xf32>
    %104 = vector.broadcast %103 : vector<1x32xf32> to vector<128x32xf32>
    %105 = arith.addf %101, %104 : vector<128x32xf32>
    %cst_106 = arith.constant 0.000000e+00 : f32
    %106 = vector.broadcast %cst_106 : f32 to vector<128x32xf32>
    %107 = arith.maximumf %105, %106 : vector<128x32xf32>
    %c0_107 = arith.constant 0 : index
    %c1_108 = arith.constant 1 : index
    %c0_109 = arith.constant 0 : index
    %c0_110 = arith.constant 0 : index
    %108 = vector.load %arg4[%c0_107, %c1_108, %c0_109, %c0_110] : memref<2x3x32x32xf32, #tpu.memory_space<vmem>>, vector<1x1x32x32xf32>
    %109 = vector.shape_cast %108 : vector<1x1x32x32xf32> to vector<32x32xf32>
    %cst_111 = arith.constant dense<0.000000e+00> : vector<128x32xf32>
    %110 = tpu.matmul %107, %109, %cst_111 {dimension_numbers = #tpu.dot_dimension_numbers<[1], [0], [0], [1], [0, 0, 1, 1], [], []>} : vector<128x32xf32>, vector<32x32xf32>, vector<128x32xf32> -> vector<128x32xf32>
    %c0_112 = arith.constant 0 : index
    %c1_113 = arith.constant 1 : index
    %c0_114 = arith.constant 0 : index
    %c0_115 = arith.constant 0 : index
    %111 = vector.load %arg5[%c0_112, %c1_113, %c0_114, %c0_115] : memref<2x3x1x32xf32, #tpu.memory_space<vmem>>, vector<1x1x1x32xf32>
    %112 = vector.shape_cast %111 : vector<1x1x1x32xf32> to vector<1x32xf32>
    %113 = vector.broadcast %112 : vector<1x32xf32> to vector<128x32xf32>
    %114 = arith.addf %110, %113 : vector<128x32xf32>
    %cst_116 = arith.constant 0.000000e+00 : f32
    %115 = vector.broadcast %cst_116 : f32 to vector<128x32xf32>
    %116 = arith.maximumf %114, %115 : vector<128x32xf32>
    %c0_117 = arith.constant 0 : index
    %c2_118 = arith.constant 2 : index
    %c0_119 = arith.constant 0 : index
    %c0_120 = arith.constant 0 : index
    %117 = vector.load %arg4[%c0_117, %c2_118, %c0_119, %c0_120] : memref<2x3x32x32xf32, #tpu.memory_space<vmem>>, vector<1x1x32x32xf32>
    %118 = vector.shape_cast %117 : vector<1x1x32x32xf32> to vector<32x32xf32>
    %cst_121 = arith.constant dense<0.000000e+00> : vector<128x32xf32>
    %119 = tpu.matmul %116, %118, %cst_121 {dimension_numbers = #tpu.dot_dimension_numbers<[1], [0], [0], [1], [0, 0, 1, 1], [], []>} : vector<128x32xf32>, vector<32x32xf32>, vector<128x32xf32> -> vector<128x32xf32>
    %c0_122 = arith.constant 0 : index
    %c2_123 = arith.constant 2 : index
    %c0_124 = arith.constant 0 : index
    %c0_125 = arith.constant 0 : index
    %120 = vector.load %arg5[%c0_122, %c2_123, %c0_124, %c0_125] : memref<2x3x1x32xf32, #tpu.memory_space<vmem>>, vector<1x1x1x32xf32>
    %121 = vector.shape_cast %120 : vector<1x1x1x32xf32> to vector<1x32xf32>
    %122 = vector.broadcast %121 : vector<1x32xf32> to vector<128x32xf32>
    %123 = arith.addf %119, %122 : vector<128x32xf32>
    %cst_126 = arith.constant 0.000000e+00 : f32
    %124 = vector.broadcast %cst_126 : f32 to vector<128x32xf32>
    %125 = arith.maximumf %123, %124 : vector<128x32xf32>
    %c0_127 = arith.constant 0 : index
    %c0_128 = arith.constant 0 : index
    %c0_129 = arith.constant 0 : index
    %126 = vector.load %arg8[%c0_127, %c0_128, %c0_129] : memref<2x32x144xf32, #tpu.memory_space<vmem>>, vector<1x32x144xf32>
    %127 = vector.shape_cast %126 : vector<1x32x144xf32> to vector<32x144xf32>
    %cst_130 = arith.constant dense<0.000000e+00> : vector<128x144xf32>
    %128 = tpu.matmul %125, %127, %cst_130 {dimension_numbers = #tpu.dot_dimension_numbers<[1], [0], [0], [1], [0, 0, 1, 1], [], []>} : vector<128x32xf32>, vector<32x144xf32>, vector<128x144xf32> -> vector<128x144xf32>
    %c0_131 = arith.constant 0 : index
    %c0_132 = arith.constant 0 : index
    %c0_133 = arith.constant 0 : index
    %129 = vector.load %arg9[%c0_131, %c0_132, %c0_133] : memref<2x1x144xf32, #tpu.memory_space<vmem>>, vector<1x1x144xf32>
    %130 = vector.shape_cast %129 : vector<1x1x144xf32> to vector<1x144xf32>
    %131 = vector.broadcast %130 : vector<1x144xf32> to vector<128x144xf32>
    %132 = arith.addf %128, %131 : vector<128x144xf32>
    %133 = vector.extract_strided_slice %132 {offsets = [0, 0], sizes = [128, 128], strides = [1, 1]} : vector<128x144xf32> to vector<128x128xf32>
    %134 = arith.addf %89, %133 : vector<128x128xf32>
    %135 = vector.extract_strided_slice %132 {offsets = [0, 128], sizes = [128, 16], strides = [1, 1]} : vector<128x144xf32> to vector<128x16xf32>
    %136 = arith.subf %88, %135 : vector<128x16xf32>
    %c1_134 = arith.constant 1 : index
    %c0_135 = arith.constant 0 : index
    %c0_136 = arith.constant 0 : index
    %137 = vector.load %arg2[%c1_134, %c0_135, %c0_136] : memref<2x16x32xf32, #tpu.memory_space<vmem>>, vector<1x16x32xf32>
    %138 = vector.shape_cast %137 : vector<1x16x32xf32> to vector<16x32xf32>
    %cst_137 = arith.constant dense<0.000000e+00> : vector<128x32xf32>
    %139 = tpu.matmul %136, %138, %cst_137 {dimension_numbers = #tpu.dot_dimension_numbers<[1], [0], [0], [1], [0, 0, 1, 1], [], []>} : vector<128x16xf32>, vector<16x32xf32>, vector<128x32xf32> -> vector<128x32xf32>
    %c1_138 = arith.constant 1 : index
    %c0_139 = arith.constant 0 : index
    %c0_140 = arith.constant 0 : index
    %140 = vector.load %arg3[%c1_138, %c0_139, %c0_140] : memref<2x1x32xf32, #tpu.memory_space<vmem>>, vector<1x1x32xf32>
    %141 = vector.shape_cast %140 : vector<1x1x32xf32> to vector<1x32xf32>
    %142 = vector.broadcast %141 : vector<1x32xf32> to vector<128x32xf32>
    %143 = arith.addf %139, %142 : vector<128x32xf32>
    %cst_141 = arith.constant 0.000000e+00 : f32
    %144 = vector.broadcast %cst_141 : f32 to vector<128x32xf32>
    %145 = arith.maximumf %143, %144 : vector<128x32xf32>
    %c1_142 = arith.constant 1 : index
    %c0_143 = arith.constant 0 : index
    %c0_144 = arith.constant 0 : index
    %c0_145 = arith.constant 0 : index
    %146 = vector.load %arg4[%c1_142, %c0_143, %c0_144, %c0_145] : memref<2x3x32x32xf32, #tpu.memory_space<vmem>>, vector<1x1x32x32xf32>
    %147 = vector.shape_cast %146 : vector<1x1x32x32xf32> to vector<32x32xf32>
    %cst_146 = arith.constant dense<0.000000e+00> : vector<128x32xf32>
    %148 = tpu.matmul %145, %147, %cst_146 {dimension_numbers = #tpu.dot_dimension_numbers<[1], [0], [0], [1], [0, 0, 1, 1], [], []>} : vector<128x32xf32>, vector<32x32xf32>, vector<128x32xf32> -> vector<128x32xf32>
    %c1_147 = arith.constant 1 : index
    %c0_148 = arith.constant 0 : index
    %c0_149 = arith.constant 0 : index
    %c0_150 = arith.constant 0 : index
    %149 = vector.load %arg5[%c1_147, %c0_148, %c0_149, %c0_150] : memref<2x3x1x32xf32, #tpu.memory_space<vmem>>, vector<1x1x1x32xf32>
    %150 = vector.shape_cast %149 : vector<1x1x1x32xf32> to vector<1x32xf32>
    %151 = vector.broadcast %150 : vector<1x32xf32> to vector<128x32xf32>
    %152 = arith.addf %148, %151 : vector<128x32xf32>
    %cst_151 = arith.constant 0.000000e+00 : f32
    %153 = vector.broadcast %cst_151 : f32 to vector<128x32xf32>
    %154 = arith.maximumf %152, %153 : vector<128x32xf32>
    %c1_152 = arith.constant 1 : index
    %c1_153 = arith.constant 1 : index
    %c0_154 = arith.constant 0 : index
    %c0_155 = arith.constant 0 : index
    %155 = vector.load %arg4[%c1_152, %c1_153, %c0_154, %c0_155] : memref<2x3x32x32xf32, #tpu.memory_space<vmem>>, vector<1x1x32x32xf32>
    %156 = vector.shape_cast %155 : vector<1x1x32x32xf32> to vector<32x32xf32>
    %cst_156 = arith.constant dense<0.000000e+00> : vector<128x32xf32>
    %157 = tpu.matmul %154, %156, %cst_156 {dimension_numbers = #tpu.dot_dimension_numbers<[1], [0], [0], [1], [0, 0, 1, 1], [], []>} : vector<128x32xf32>, vector<32x32xf32>, vector<128x32xf32> -> vector<128x32xf32>
    %c1_157 = arith.constant 1 : index
    %c1_158 = arith.constant 1 : index
    %c0_159 = arith.constant 0 : index
    %c0_160 = arith.constant 0 : index
    %158 = vector.load %arg5[%c1_157, %c1_158, %c0_159, %c0_160] : memref<2x3x1x32xf32, #tpu.memory_space<vmem>>, vector<1x1x1x32xf32>
    %159 = vector.shape_cast %158 : vector<1x1x1x32xf32> to vector<1x32xf32>
    %160 = vector.broadcast %159 : vector<1x32xf32> to vector<128x32xf32>
    %161 = arith.addf %157, %160 : vector<128x32xf32>
    %cst_161 = arith.constant 0.000000e+00 : f32
    %162 = vector.broadcast %cst_161 : f32 to vector<128x32xf32>
    %163 = arith.maximumf %161, %162 : vector<128x32xf32>
    %c1_162 = arith.constant 1 : index
    %c2_163 = arith.constant 2 : index
    %c0_164 = arith.constant 0 : index
    %c0_165 = arith.constant 0 : index
    %164 = vector.load %arg4[%c1_162, %c2_163, %c0_164, %c0_165] : memref<2x3x32x32xf32, #tpu.memory_space<vmem>>, vector<1x1x32x32xf32>
    %165 = vector.shape_cast %164 : vector<1x1x32x32xf32> to vector<32x32xf32>
    %cst_166 = arith.constant dense<0.000000e+00> : vector<128x32xf32>
    %166 = tpu.matmul %163, %165, %cst_166 {dimension_numbers = #tpu.dot_dimension_numbers<[1], [0], [0], [1], [0, 0, 1, 1], [], []>} : vector<128x32xf32>, vector<32x32xf32>, vector<128x32xf32> -> vector<128x32xf32>
    %c1_167 = arith.constant 1 : index
    %c2_168 = arith.constant 2 : index
    %c0_169 = arith.constant 0 : index
    %c0_170 = arith.constant 0 : index
    %167 = vector.load %arg5[%c1_167, %c2_168, %c0_169, %c0_170] : memref<2x3x1x32xf32, #tpu.memory_space<vmem>>, vector<1x1x1x32xf32>
    %168 = vector.shape_cast %167 : vector<1x1x1x32xf32> to vector<1x32xf32>
    %169 = vector.broadcast %168 : vector<1x32xf32> to vector<128x32xf32>
    %170 = arith.addf %166, %169 : vector<128x32xf32>
    %cst_171 = arith.constant 0.000000e+00 : f32
    %171 = vector.broadcast %cst_171 : f32 to vector<128x32xf32>
    %172 = arith.maximumf %170, %171 : vector<128x32xf32>
    %c1_172 = arith.constant 1 : index
    %c0_173 = arith.constant 0 : index
    %c0_174 = arith.constant 0 : index
    %173 = vector.load %arg8[%c1_172, %c0_173, %c0_174] : memref<2x32x144xf32, #tpu.memory_space<vmem>>, vector<1x32x144xf32>
    %174 = vector.shape_cast %173 : vector<1x32x144xf32> to vector<32x144xf32>
    %cst_175 = arith.constant dense<0.000000e+00> : vector<128x144xf32>
    %175 = tpu.matmul %172, %174, %cst_175 {dimension_numbers = #tpu.dot_dimension_numbers<[1], [0], [0], [1], [0, 0, 1, 1], [], []>} : vector<128x32xf32>, vector<32x144xf32>, vector<128x144xf32> -> vector<128x144xf32>
    %c1_176 = arith.constant 1 : index
    %c0_177 = arith.constant 0 : index
    %c0_178 = arith.constant 0 : index
    %176 = vector.load %arg9[%c1_176, %c0_177, %c0_178] : memref<2x1x144xf32, #tpu.memory_space<vmem>>, vector<1x1x144xf32>
    %177 = vector.shape_cast %176 : vector<1x1x144xf32> to vector<1x144xf32>
    %178 = vector.broadcast %177 : vector<1x144xf32> to vector<128x144xf32>
    %179 = arith.addf %175, %178 : vector<128x144xf32>
    %180 = vector.extract_strided_slice %179 {offsets = [0, 0], sizes = [128, 128], strides = [1, 1]} : vector<128x144xf32> to vector<128x128xf32>
    %181 = arith.addf %134, %180 : vector<128x128xf32>
    %c0_179 = arith.constant 0 : index
    %c0_180 = arith.constant 0 : index
    %182 = vector.load %arg10[%c0_179, %c0_180] : memref<128x128xf32, #tpu.memory_space<vmem>>, vector<128x128xf32>
    tpu.vector_store %arg10[%c0_179, %c0_180], %181 {strides = array<i32>} : memref<128x128xf32, #tpu.memory_space<vmem>>, vector<128x128xf32>,
    return
  }
  func.func @transform_0(%arg0: i32) -> (i32, i32) {
    %c0_i32 = arith.constant 0 : i32
    %c0_i32_0 = arith.constant 0 : i32
    return %arg0, %c0_i32 : i32, i32
  }
  func.func @transform_1(%arg0: i32) -> (i32, i32, i32) {
    %c0_i32 = arith.constant 0 : i32
    %c0_i32_0 = arith.constant 0 : i32
    %c0_i32_1 = arith.constant 0 : i32
    %c0_i32_2 = arith.constant 0 : i32
    return %c0_i32, %c0_i32_0, %c0_i32_1 : i32, i32, i32
  }
  func.func @transform_2(%arg0: i32) -> (i32, i32, i32) {
    %c0_i32 = arith.constant 0 : i32
    %c0_i32_0 = arith.constant 0 : i32
    %c0_i32_1 = arith.constant 0 : i32
    %c0_i32_2 = arith.constant 0 : i32
    return %c0_i32, %c0_i32_0, %c0_i32_1 : i32, i32, i32
  }
  func.func @transform_3(%arg0: i32) -> (i32, i32, i32, i32) {
    %c0_i32 = arith.constant 0 : i32
    %c0_i32_0 = arith.constant 0 : i32
    %c0_i32_1 = arith.constant 0 : i32
    %c0_i32_2 = arith.constant 0 : i32
    %c0_i32_3 = arith.constant 0 : i32
    return %c0_i32, %c0_i32_0, %c0_i32_1, %c0_i32_2 : i32, i32, i32, i32
  }
  func.func @transform_4(%arg0: i32) -> (i32, i32, i32, i32) {
    %c0_i32 = arith.constant 0 : i32
    %c0_i32_0 = arith.constant 0 : i32
    %c0_i32_1 = arith.constant 0 : i32
    %c0_i32_2 = arith.constant 0 : i32
    %c0_i32_3 = arith.constant 0 : i32
    return %c0_i32, %c0_i32_0, %c0_i32_1, %c0_i32_2 : i32, i32, i32, i32
  }
  func.func @transform_5(%arg0: i32) -> (i32, i32, i32) {
    %c0_i32 = arith.constant 0 : i32
    %c0_i32_0 = arith.constant 0 : i32
    %c0_i32_1 = arith.constant 0 : i32
    %c0_i32_2 = arith.constant 0 : i32
    return %c0_i32, %c0_i32_0, %c0_i32_1 : i32, i32, i32
  }
  func.func @transform_6(%arg0: i32) -> (i32, i32, i32) {
    %c0_i32 = arith.constant 0 : i32
    %c0_i32_0 = arith.constant 0 : i32
    %c0_i32_1 = arith.constant 0 : i32
    %c0_i32_2 = arith.constant 0 : i32
    return %c0_i32, %c0_i32_0, %c0_i32_1 : i32, i32, i32
  }
  func.func @transform_7(%arg0: i32) -> (i32, i32, i32) {
    %c0_i32 = arith.constant 0 : i32
    %c0_i32_0 = arith.constant 0 : i32
    %c0_i32_1 = arith.constant 0 : i32
    %c0_i32_2 = arith.constant 0 : i32
    return %c0_i32, %c0_i32_0, %c0_i32_1 : i32, i32, i32
  }
  func.func @transform_8(%arg0: i32) -> (i32, i32, i32) {
    %c0_i32 = arith.constant 0 : i32
    %c0_i32_0 = arith.constant 0 : i32
    %c0_i32_1 = arith.constant 0 : i32
    %c0_i32_2 = arith.constant 0 : i32
    return %c0_i32, %c0_i32_0, %c0_i32_1 : i32, i32, i32
  }
  func.func @transform_9(%arg0: i32) -> (i32, i32) {
    %c0_i32 = arith.constant 0 : i32
    %c0_i32_0 = arith.constant 0 : i32
    return %arg0, %c0_i32 : i32, i32
  }
}

</mosaic_0001>

<llo_original>
// kernel: tpu_custom_call.1
$region0: #{tpu_custom_call.1}
  #allocation0 [shape = 'u32[]', space=smem, size = 0x4, offset = 0x4, fixed_abs, tag = 'smem constant byte address 0x4 - core index']
  #allocation1 [shape = 'u32[144,128]{1,0:T(1,128)}', space=vmem, size = 0x12000, scoped, tag = 'internal scratch']
  %s0 = inlined_call_operand.vmem [shape: f32[256,16], index: 0, kind: input, shape index: {}]
  %s1 = inlined_call_operand.vmem [shape: f32[2,16,32], index: 1, kind: input, shape index: {}]
  %s2 = inlined_call_operand.vmem [shape: f32[2,1,32], index: 2, kind: input, shape index: {}]
  %s3 = inlined_call_operand.vmem [shape: f32[2,3,32,32], index: 3, kind: input, shape index: {}]
  %s4 = inlined_call_operand.vmem [shape: f32[2,3,1,32], index: 4, kind: input, shape index: {}]
  %s5 = inlined_call_operand.vmem [shape: f32[2,32,16], index: 5, kind: input, shape index: {}]
  %s6 = inlined_call_operand.vmem [shape: f32[2,1,16], index: 6, kind: input, shape index: {}]
  %s7 = inlined_call_operand.vmem [shape: f32[2,32,144], index: 7, kind: input, shape index: {}]
  %s8 = inlined_call_operand.vmem [shape: f32[2,1,144], index: 8, kind: input, shape index: {}]
  %s9 = inlined_call_operand.hbm [shape: f32[256,128], index: 9, kind: output, shape index: {}]
  %s10 = sld [smem:[#allocation0]]
  $region69: #{tpu_custom_call.1} parent=0
    _
  %s12 = ssub.s32 1, %s10
  %s13 = scalar_select 0, %s12, %s10
  $region1: #{tpu_custom_call.1} parent=0
    #allocation2 [shape = 'u8[131072]{0}', space=vmem, size = 0x20000, scoped, tag = 'output window, operand 0']
    #allocation3 [shape = 's32[2]{0}', space=sflag, size = 0x8, scoped, tag = 'scoped memory for tpu_custom_call.1']
    %14 = vsyncpa [#allocation3], 0
    %s15 = scalar_lea.sflag [#allocation3], 1
    %16 = vsyncpa %s15, 0
    loop: start=0, step=1, limit=4
    $region2: #{tpu_custom_call.1} parent=1 // loop_pre_header
      _
    $region3: #{tpu_custom_call.1} parent=1 // loop_header
      %s18 = sphi 0, %s22
      %p19 = scmp.ge.s32.totalorder %s18, 4
      %s28 = sphi 0, %s30
      %s31 = sphi 0, %s28
      %s32 = sphi 0, %s31
      %s48 = sphi 0, %s32
      %s52 = sphi 0, %s52
      %s54 = sphi 0, %s52
      %s55 = sphi 0, %s54
      %s69 = sphi 0, %s55
      %s73 = sphi 0, %s73
      %s75 = sphi 0, %s73
      %s76 = sphi 0, %s75
      %s90 = sphi 0, %s76
      %s94 = sphi 0, %s94
      %s96 = sphi 0, %s94
      %s97 = sphi 0, %s96
      %s111 = sphi 0, %s97
      %s115 = sphi 0, %s115
      %s117 = sphi 0, %s115
      %s118 = sphi 0, %s117
      %s132 = sphi 0, %s118
      %s136 = sphi 0, %s136
      %s138 = sphi 0, %s136
      %s139 = sphi 0, %s138
      %s153 = sphi 0, %s139
      %s157 = sphi 0, %s157
      %s159 = sphi 0, %s157
      %s160 = sphi 0, %s159
      %s174 = sphi 0, %s160
      %s178 = sphi 0, %s178
      %s180 = sphi 0, %s178
      %s181 = sphi 0, %s180
      %s195 = sphi 0, %s181
      %s199 = sphi 0, %s199
      %s201 = sphi 0, %s199
      %s202 = sphi 0, %s201
      %s216 = sphi 0, %s202
      %s222 = sphi 0, %s224
      %s225 = sphi 0, %s222
      %s226 = sphi 0, %s225
      %s242 = sphi 0, %s226
    $region4: #{tpu_custom_call.1} parent=1 // loop_header_branch
      %21 = sbr.rel (%p19) target = $region8
    $region5: #{tpu_custom_call.1} parent=1 // loop_body
      %s23 = ssub.s32 %s18, 1
      %s24 = ssub.s32 %s18, 2
      %s25 = sadd.s32 %s18, 1
      %s26 = ssub.s32 %s18, %s25
      %p27 = scmp.eq.s32.totalorder %s26, 0
      %s29 = sadd.s32 %s28, 1
      %s30 = scalar_select %p27, %s28, %s29
      %p33 = pneg %p27
      %p34 = scmp.eq.s32.totalorder %s18, 1
      %p35 = por %p33, %p34
      %p36 = scmp.ne.s32.totalorder %s28, %s31
      %p37 = scmp.eq.s32.totalorder %s18, 0
      %p38 = por %p36, %p37
      %p39 = scmp.ne.s32.totalorder %s28, %s31
      %p40 = scmp.eq.s32.totalorder %s23, 1
      %p41 = por %p39, %p40
      %p42 = scmp.ne.s32.totalorder %s31, %s32
      %p43 = scmp.eq.s32.totalorder %s23, 0
      %p44 = por %p42, %p43
      %p45 = scmp.ne.s32.totalorder %s31, %s32
      %p46 = scmp.eq.s32.totalorder %s24, 1
      %p47 = por %p45, %p46
      %p49 = scmp.ne.s32.totalorder %s32, %s48
      %p50 = scmp.eq.s32.totalorder %s24, 0
      %p51 = por %p49, %p50
      %s53 = sadd.s32 %s52, 1
      %p56 = scmp.eq.s32.totalorder %s18, 1
      %p57 = scmp.ne.s32.totalorder %s52, %s54
      %p58 = scmp.eq.s32.totalorder %s18, 0
      %p59 = por %p57, %p58
      %p60 = scmp.ne.s32.totalorder %s52, %s54
      %p61 = scmp.eq.s32.totalorder %s23, 1
      %p62 = por %p60, %p61
      %p63 = scmp.ne.s32.totalorder %s54, %s55
      %p64 = scmp.eq.s32.totalorder %s23, 0
      %p65 = por %p63, %p64
      %p66 = scmp.ne.s32.totalorder %s54, %s55
      %p67 = scmp.eq.s32.totalorder %s24, 1
      %p68 = por %p66, %p67
      %p70 = scmp.ne.s32.totalorder %s55, %s69
      %p71 = scmp.eq.s32.totalorder %s24, 0
      %p72 = por %p70, %p71
      %s74 = sadd.s32 %s73, 1
      %p77 = scmp.eq.s32.totalorder %s18, 1
      %p78 = scmp.ne.s32.totalorder %s73, %s75
      %p79 = scmp.eq.s32.totalorder %s18, 0
      %p80 = por %p78, %p79
      %p81 = scmp.ne.s32.totalorder %s73, %s75
      %p82 = scmp.eq.s32.totalorder %s23, 1
      %p83 = por %p81, %p82
      %p84 = scmp.ne.s32.totalorder %s75, %s76
      %p85 = scmp.eq.s32.totalorder %s23, 0
      %p86 = por %p84, %p85
      %p87 = scmp.ne.s32.totalorder %s75, %s76
      %p88 = scmp.eq.s32.totalorder %s24, 1
      %p89 = por %p87, %p88
      %p91 = scmp.ne.s32.totalorder %s76, %s90
      %p92 = scmp.eq.s32.totalorder %s24, 0
      %p93 = por %p91, %p92
      %s95 = sadd.s32 %s94, 1
      %p98 = scmp.eq.s32.totalorder %s18, 1
      %p99 = scmp.ne.s32.totalorder %s94, %s96
      %p100 = scmp.eq.s32.totalorder %s18, 0
      %p101 = por %p99, %p100
      %p102 = scmp.ne.s32.totalorder %s94, %s96
      %p103 = scmp.eq.s32.totalorder %s23, 1
      %p104 = por %p102, %p103
      %p105 = scmp.ne.s32.totalorder %s96, %s97
      %p106 = scmp.eq.s32.totalorder %s23, 0
      %p107 = por %p105, %p106
      %p108 = scmp.ne.s32.totalorder %s96, %s97
      %p109 = scmp.eq.s32.totalorder %s24, 1
      %p110 = por %p108, %p109
      %p112 = scmp.ne.s32.totalorder %s97, %s111
      %p113 = scmp.eq.s32.totalorder %s24, 0
      %p114 = por %p112, %p113
      %s116 = sadd.s32 %s115, 1
      %p119 = scmp.eq.s32.totalorder %s18, 1
      %p120 = scmp.ne.s32.totalorder %s115, %s117
      %p121 = scmp.eq.s32.totalorder %s18, 0
      %p122 = por %p120, %p121
      %p123 = scmp.ne.s32.totalorder %s115, %s117
      %p124 = scmp.eq.s32.totalorder %s23, 1
      %p125 = por %p123, %p124
      %p126 = scmp.ne.s32.totalorder %s117, %s118
      %p127 = scmp.eq.s32.totalorder %s23, 0
      %p128 = por %p126, %p127
      %p129 = scmp.ne.s32.totalorder %s117, %s118
      %p130 = scmp.eq.s32.totalorder %s24, 1
      %p131 = por %p129, %p130
      %p133 = scmp.ne.s32.totalorder %s118, %s132
      %p134 = scmp.eq.s32.totalorder %s24, 0
      %p135 = por %p133, %p134
      %s137 = sadd.s32 %s136, 1
      %p140 = scmp.eq.s32.totalorder %s18, 1
      %p141 = scmp.ne.s32.totalorder %s136, %s138
      %p142 = scmp.eq.s32.totalorder %s18, 0
      %p143 = por %p141, %p142
      %p144 = scmp.ne.s32.totalorder %s136, %s138
      %p145 = scmp.eq.s32.totalorder %s23, 1
      %p146 = por %p144, %p145
      %p147 = scmp.ne.s32.totalorder %s138, %s139
      %p148 = scmp.eq.s32.totalorder %s23, 0
      %p149 = por %p147, %p148
      %p150 = scmp.ne.s32.totalorder %s138, %s139
      %p151 = scmp.eq.s32.totalorder %s24, 1
      %p152 = por %p150, %p151
      %p154 = scmp.ne.s32.totalorder %s139, %s153
      %p155 = scmp.eq.s32.totalorder %s24, 0
      %p156 = por %p154, %p155
      %s158 = sadd.s32 %s157, 1
      %p161 = scmp.eq.s32.totalorder %s18, 1
      %p162 = scmp.ne.s32.totalorder %s157, %s159
      %p163 = scmp.eq.s32.totalorder %s18, 0
      %p164 = por %p162, %p163
      %p165 = scmp.ne.s32.totalorder %s157, %s159
      %p166 = scmp.eq.s32.totalorder %s23, 1
      %p167 = por %p165, %p166
      %p168 = scmp.ne.s32.totalorder %s159, %s160
      %p169 = scmp.eq.s32.totalorder %s23, 0
      %p170 = por %p168, %p169
      %p171 = scmp.ne.s32.totalorder %s159, %s160
      %p172 = scmp.eq.s32.totalorder %s24, 1
      %p173 = por %p171, %p172
      %p175 = scmp.ne.s32.totalorder %s160, %s174
      %p176 = scmp.eq.s32.totalorder %s24, 0
      %p177 = por %p175, %p176
      %s179 = sadd.s32 %s178, 1
      %p182 = scmp.eq.s32.totalorder %s18, 1
      %p183 = scmp.ne.s32.totalorder %s178, %s180
      %p184 = scmp.eq.s32.totalorder %s18, 0
      %p185 = por %p183, %p184
      %p186 = scmp.ne.s32.totalorder %s178, %s180
      %p187 = scmp.eq.s32.totalorder %s23, 1
      %p188 = por %p186, %p187
      %p189 = scmp.ne.s32.totalorder %s180, %s181
      %p190 = scmp.eq.s32.totalorder %s23, 0
      %p191 = por %p189, %p190
      %p192 = scmp.ne.s32.totalorder %s180, %s181
      %p193 = scmp.eq.s32.totalorder %s24, 1
      %p194 = por %p192, %p193
      %p196 = scmp.ne.s32.totalorder %s181, %s195
      %p197 = scmp.eq.s32.totalorder %s24, 0
      %p198 = por %p196, %p197
      %s200 = sadd.s32 %s199, 1
      %p203 = scmp.eq.s32.totalorder %s18, 1
      %p204 = scmp.ne.s32.totalorder %s199, %s201
      %p205 = scmp.eq.s32.totalorder %s18, 0
      %p206 = por %p204, %p205
      %p207 = scmp.ne.s32.totalorder %s199, %s201
      %p208 = scmp.eq.s32.totalorder %s23, 1
      %p209 = por %p207, %p208
      %p210 = scmp.ne.s32.totalorder %s201, %s202
      %p211 = scmp.eq.s32.totalorder %s23, 0
      %p212 = por %p210, %p211
      %p213 = scmp.ne.s32.totalorder %s201, %s202
      %p214 = scmp.eq.s32.totalorder %s24, 1
      %p215 = por %p213, %p214
      %p217 = scmp.ne.s32.totalorder %s202, %s216
      %p218 = scmp.eq.s32.totalorder %s24, 0
      %p219 = por %p217, %p218
      %s220 = ssub.s32 %s18, %s25
      %p221 = scmp.eq.s32.totalorder %s220, 0
      %s223 = sadd.s32 %s222, 1
      %s224 = scalar_select %p221, %s222, %s223
      %p227 = pneg %p221
      %p228 = scmp.eq.s32.totalorder %s18, 1
      %p229 = por %p227, %p228
      %p230 = scmp.ne.s32.totalorder %s222, %s225
      %p231 = scmp.eq.s32.totalorder %s18, 0
      %p232 = por %p230, %p231
      %p233 = scmp.ne.s32.totalorder %s222, %s225
      %p234 = scmp.eq.s32.totalorder %s23, 1
      %p235 = por %p233, %p234
      %p236 = scmp.ne.s32.totalorder %s225, %s226
      %p237 = scmp.eq.s32.totalorder %s23, 0
      %p238 = por %p236, %p237
      %p239 = scmp.ne.s32.totalorder %s225, %s226
      %p240 = scmp.eq.s32.totalorder %s24, 1
      %p241 = por %p239, %p240
      %p243 = scmp.ne.s32.totalorder %s226, %s242
      %p244 = scmp.eq.s32.totalorder %s24, 0
      %p245 = por %p243, %p244
      %p246 = scmp.le.s32.totalorder 1, %s18
      %p247 = scmp.lt.s32.totalorder %s18, 3
      %p248 = pnand %p246, %p247
      %p249 = pneg %p248
      // Predicated region
      $region9: #{tpu_custom_call.1} parent=5 // pred_check
        _
      $region10: #{tpu_custom_call.1} parent=5 // pred_check_branch
        %251 = sbr.rel (%p248) target = $region12
      $region11: #{tpu_custom_call.1} parent=5 // pred_region
        %s252 = ssub.s32 %s18, 1
        // Predicated region
        $region13: #{tpu_custom_call.1} parent=11 // pred_check
          %p253 = pneg %p65
        $region14: #{tpu_custom_call.1} parent=11 // pred_check_branch
          %255 = sbr.rel (%p253) target = $region16
        $region15: #{tpu_custom_call.1} parent=11 // pred_region
          _
        $region16: #{tpu_custom_call.1} parent=11 // pred_fallthru
          _
        // Predicated region
        $region17: #{tpu_custom_call.1} parent=11 // pred_check
          %p256 = pneg %p86
        $region18: #{tpu_custom_call.1} parent=11 // pred_check_branch
          %258 = sbr.rel (%p256) target = $region20
        $region19: #{tpu_custom_call.1} parent=11 // pred_region
          _
        $region20: #{tpu_custom_call.1} parent=11 // pred_fallthru
          _
        // Predicated region
        $region21: #{tpu_custom_call.1} parent=11 // pred_check
          %p259 = pneg %p107
        $region22: #{tpu_custom_call.1} parent=11 // pred_check_branch
          %261 = sbr.rel (%p259) target = $region24
        $region23: #{tpu_custom_call.1} parent=11 // pred_region
          _
        $region24: #{tpu_custom_call.1} parent=11 // pred_fallthru
          _
        // Predicated region
        $region25: #{tpu_custom_call.1} parent=11 // pred_check
          %p262 = pneg %p128
        $region26: #{tpu_custom_call.1} parent=11 // pred_check_branch
          %264 = sbr.rel (%p262) target = $region28
        $region27: #{tpu_custom_call.1} parent=11 // pred_region
          _
        $region28: #{tpu_custom_call.1} parent=11 // pred_fallthru
          _
        // Predicated region
        $region29: #{tpu_custom_call.1} parent=11 // pred_check
          %p265 = pneg %p149
        $region30: #{tpu_custom_call.1} parent=11 // pred_check_branch
          %267 = sbr.rel (%p265) target = $region32
        $region31: #{tpu_custom_call.1} parent=11 // pred_region
          _
        $region32: #{tpu_custom_call.1} parent=11 // pred_fallthru
          _
        // Predicated region
        $region33: #{tpu_custom_call.1} parent=11 // pred_check
          %p268 = pneg %p170
        $region34: #{tpu_custom_call.1} parent=11 // pred_check_branch
          %270 = sbr.rel (%p268) target = $region36
        $region35: #{tpu_custom_call.1} parent=11 // pred_region
          _
        $region36: #{tpu_custom_call.1} parent=11 // pred_fallthru
          _
        // Predicated region
        $region37: #{tpu_custom_call.1} parent=11 // pred_check
          %p271 = pneg %p191
        $region38: #{tpu_custom_call.1} parent=11 // pred_check_branch
          %273 = sbr.rel (%p271) target = $region40
        $region39: #{tpu_custom_call.1} parent=11 // pred_region
          _
        $region40: #{tpu_custom_call.1} parent=11 // pred_fallthru
          _
        // Predicated region
        $region41: #{tpu_custom_call.1} parent=11 // pred_check
          %p274 = pneg %p212
        $region42: #{tpu_custom_call.1} parent=11 // pred_check_branch
          %276 = sbr.rel (%p274) target = $region44
        $region43: #{tpu_custom_call.1} parent=11 // pred_region
          _
        $region44: #{tpu_custom_call.1} parent=11 // pred_fallthru
          _
      $region12: #{tpu_custom_call.1} parent=5 // pred_fallthru
        _
      %p277 = scmp.lt.s32.totalorder %s18, 2
      // Predicated region
      $region45: #{tpu_custom_call.1} parent=5 // pred_check
        %p278 = pneg %p277
      $region46: #{tpu_custom_call.1} parent=5 // pred_check_branch
        %280 = sbr.rel (%p278) target = $region48
      $region47: #{tpu_custom_call.1} parent=5 // pred_region
        // Predicated region
        $region49: #{tpu_custom_call.1} parent=47 // pred_check
          %p281 = pneg %p38
        $region50: #{tpu_custom_call.1} parent=47 // pred_check_branch
          %283 = sbr.rel (%p281) target = $region52
        $region51: #{tpu_custom_call.1} parent=47 // pred_region
          %s284 = smul.u32 16, %s18
          %p285 = scmp.lt.s32.totalorder %s284, 31
          %s286 = scalar_select %p285, %s284, 31
          %s287 = smul.addr %s286, 8
          %s288 = scalar_lea.vmem %s0, %s287
          %s289 = smul.u32 16, %s18
        $region52: #{tpu_custom_call.1} parent=47 // pred_fallthru
          _
      $region48: #{tpu_custom_call.1} parent=5 // pred_fallthru
        _
      %p290 = scmp.le.s32.totalorder 1, %s18
      %p291 = scmp.lt.s32.totalorder %s18, 3
      %p292 = pnand %p290, %p291
      %p293 = pneg %p292
      // Predicated region
      $region53: #{tpu_custom_call.1} parent=5 // pred_check
        _
      $region54: #{tpu_custom_call.1} parent=5 // pred_check_branch
        %295 = sbr.rel (%p292) target = $region56
      $region55: #{tpu_custom_call.1} parent=5 // pred_region
        %s296 = ssub.s32 %s18, 1
        %s297 = smul.u32 16, %s23
        %p298 = scmp.lt.s32.totalorder %s297, 31
        %s299 = scalar_select %p298, %s297, 31
        %s300 = smul.addr %s299, 8
        %s301 = scalar_lea.vmem %s0, %s300
        %p302 = pneg %p44
        %p303 = pneg %p41
        %p304 = pneg %p65
        %p305 = pneg %p62
        %p306 = pneg %p86
        %p307 = pneg %p83
        %p308 = pneg %p107
        %p309 = pneg %p104
        %p310 = pneg %p128
        %p311 = pneg %p125
        %p312 = pneg %p149
        %p313 = pneg %p146
        %p314 = pneg %p170
        %p315 = pneg %p167
        %p316 = pneg %p191
        %p317 = pneg %p188
        %p318 = pneg %p212
        %p319 = pneg %p209
        %p320 = pneg %p238
        %p321 = pneg %p235
        %s322 = sand.u32 %s225, 1
        %s323 = scalar_lea.sflag [#allocation3], %s322
        %s324 = sand.u32 %s225, 1
        %s325 = smul.addr %s324, 128
        %s326 = scalar_lea.vmem [#allocation2], %s325
        %s327 = smul.u32 16, %s23
        %p328 = scmp.lt.s32.totalorder %s327, 31
        %s329 = scalar_select %p328, %s327, 31
        %s330 = smul.addr %s329, 8
        %s331 = scalar_lea.vmem %s0, %s330
        %s332 = smul.u32 16, %s23
        %s333 = smul.u32 16, %s23
        %v334 = vld [vmem:[%s331] sm:$0xff]
        %v335 = vld [vmem:[%s331 + $0x8] sm:$0xff]
        %v336 = vld [vmem:[%s331 + $0x10] sm:$0xff]
        %v337 = vld [vmem:[%s331 + $0x18] sm:$0xff]
        %v338 = vld [vmem:[%s331 + $0x20] sm:$0xff]
        %v339 = vld [vmem:[%s331 + $0x28] sm:$0xff]
        %v340 = vld [vmem:[%s331 + $0x30] sm:$0xff]
        %v341 = vld [vmem:[%s331 + $0x38] sm:$0xff]
        %v342 = vld [vmem:[%s331 + $0x40] sm:$0xff]
        %v343 = vld [vmem:[%s331 + $0x48] sm:$0xff]
        %v344 = vld [vmem:[%s331 + $0x50] sm:$0xff]
        %v345 = vld [vmem:[%s331 + $0x58] sm:$0xff]
        %v346 = vld [vmem:[%s331 + $0x60] sm:$0xff]
        %v347 = vld [vmem:[%s331 + $0x68] sm:$0xff]
        %v348 = vld [vmem:[%s331 + $0x70] sm:$0xff]
        %v349 = vld [vmem:[%s331 + $0x78] sm:$0xff]
        %v350 = vld [vmem:[%s1] sm:$0xff]
        %v351 = vld [vmem:[%s1 + $0x8] sm:$0xff]
        %v352 = vld [vmem:[%s2] sm:$0x1]
        %v354 = vlaneseq
        %v355 = vshrl.u32 %v354, 7
        %v356 = vsub.s32 0, %v355
        %v357 = vrot.slane %v352, %v356
        %vm359 = vcmask 130048
        %v361 = vsel %vm359, %v334, 0
        %v364 = vsel %vm359, %v335, 0
        %v367 = vsel %vm359, %v336, 0
        %v370 = vsel %vm359, %v337, 0
        %v373 = vsel %vm359, %v338, 0
        %v376 = vsel %vm359, %v339, 0
        %v379 = vsel %vm359, %v340, 0
        %v382 = vsel %vm359, %v341, 0
        %v385 = vsel %vm359, %v342, 0
        %v388 = vsel %vm359, %v343, 0
        %v391 = vsel %vm359, %v344, 0
        %v394 = vsel %vm359, %v345, 0
        %v397 = vsel %vm359, %v346, 0
        %v400 = vsel %vm359, %v347, 0
        %v403 = vsel %vm359, %v348, 0
        %v406 = vsel %vm359, %v349, 0
        %408 = vmatprep.subr.mxu0 0.0
        %409 = vmatpush1.msra.mxu0 0.0
        %410 = vmatprep.subr.mxu0 0.0
        %411 = vmatpush1.msra.mxu0 0.0
        %412 = vmatprep.subr.mxu0 0.0
        %413 = vmatpush1.msra.mxu0 0.0
        %414 = vmatprep.subr.mxu0 0.0
        %415 = vmatpush1.msra.mxu0 0.0
        %416 = vmatprep.subr.mxu0 0.0
        %417 = vmatpush1.msra.mxu0 0.0
        %418 = vmatprep.subr.mxu0 0.0
        %419 = vmatpush1.msra.mxu0 0.0
        %420 = vmatprep.subr.mxu0 0.0
        %421 = vmatpush1.msra.mxu0 0.0
        %422 = vmatprep.subr.mxu0 0.0
        %423 = vmatpush1.msra.mxu0 0.0
        %424 = vmatprep.subr.mxu0 0.0
        %425 = vmatpush1.msra.mxu0 0.0
        %426 = vmatprep.subr.mxu0 0.0
        %427 = vmatpush1.msra.mxu0 0.0
        %428 = vmatprep.subr.mxu0 0.0
        %429 = vmatpush1.msra.mxu0 0.0
        %430 = vmatprep.subr.mxu0 0.0
        %431 = vmatpush1.msra.mxu0 0.0
        %432 = vmatprep.subr.mxu0 0.0
        %433 = vmatpush1.msra.mxu0 0.0
        %434 = vmatprep.subr.mxu0 0.0
        %435 = vmatpush1.msra.mxu0 0.0
        %436 = vmatprep.subr.mxu0 0.0
        %437 = vmatpush1.msra.mxu0 %v351
        %438 = vmatprep.subr.mxu0 0.0
        %439 = vmatpush1.msra.mxu0 %v350
        %440 = vmatprep.subr.mxu0 0.0
        %441 = vmatpush2.msra.mxu0 0.0
        %442 = vmatprep.subr.mxu0 0.0
        %443 = vmatpush2.msra.mxu0 0.0
        %444 = vmatprep.subr.mxu0 0.0
        %445 = vmatpush2.msra.mxu0 0.0
        %446 = vmatprep.subr.mxu0 0.0
        %447 = vmatpush2.msra.mxu0 0.0
        %448 = vmatprep.subr.mxu0 0.0
        %449 = vmatpush2.msra.mxu0 0.0
        %450 = vmatprep.subr.mxu0 0.0
        %451 = vmatpush2.msra.mxu0 0.0
        %452 = vmatprep.subr.mxu0 0.0
        %453 = vmatpush2.msra.mxu0 0.0
        %454 = vmatprep.subr.mxu0 0.0
        %455 = vmatpush2.msra.mxu0 0.0
        %456 = vmatprep.subr.mxu0 0.0
        %457 = vmatpush2.msra.mxu0 0.0
        %458 = vmatprep.subr.mxu0 0.0
        %459 = vmatpush2.msra.mxu0 0.0
        %460 = vmatprep.subr.mxu0 0.0
        %461 = vmatpush2.msra.mxu0 0.0
        %462 = vmatprep.subr.mxu0 0.0
        %463 = vmatpush2.msra.mxu0 0.0
        %464 = vmatprep.subr.mxu0 0.0
        %465 = vmatpush2.msra.mxu0 0.0
        %466 = vmatprep.subr.mxu0 0.0
        %467 = vmatpush2.msra.mxu0 0.0
        %468 = vmatprep.subr.mxu0 0.0
        %469 = vmatpush2.msra.mxu0 0.0
        %470 = vmatprep.subr.mxu0 0.0
        %471 = vmatpush2.msra.mxu0 0.0
        %472 = vmatprep.mubr.f32.mxu0 0.0
        %473 = vmatmul.mubr.f32.gmra.mxu0 %v361
        %v474 = vpop.f32.mrf.mxu0
        %v475 = vadd.f32 %v357, %v474
        %v476 = vpop.f32.mrf.mxu0
        %477 = vmatprep.mubr.f32.mxu0 0.0
        %478 = vmatmul.mubr.f32.gmra.mxu0 %v364
        %v479 = vpop.f32.mrf.mxu0
        %v480 = vadd.f32 %v357, %v479
        %v481 = vpop.f32.mrf.mxu0
        %482 = vmatprep.mubr.f32.mxu0 0.0
        %483 = vmatmul.mubr.f32.gmra.mxu0 %v367
        %v484 = vpop.f32.mrf.mxu0
        %v485 = vadd.f32 %v357, %v484
        %v486 = vpop.f32.mrf.mxu0
        %487 = vmatprep.mubr.f32.mxu0 0.0
        %488 = vmatmul.mubr.f32.gmra.mxu0 %v370
        %v489 = vpop.f32.mrf.mxu0
        %v490 = vadd.f32 %v357, %v489
        %v491 = vpop.f32.mrf.mxu0
        %492 = vmatprep.mubr.f32.mxu0 0.0
        %493 = vmatmul.mubr.f32.gmra.mxu0 %v373
        %v494 = vpop.f32.mrf.mxu0
        %v495 = vadd.f32 %v357, %v494
        %v496 = vpop.f32.mrf.mxu0
        %497 = vmatprep.mubr.f32.mxu0 0.0
        %498 = vmatmul.mubr.f32.gmra.mxu0 %v376
        %v499 = vpop.f32.mrf.mxu0
        %v500 = vadd.f32 %v357, %v499
        %v501 = vpop.f32.mrf.mxu0
        %502 = vmatprep.mubr.f32.mxu0 0.0
        %503 = vmatmul.mubr.f32.gmra.mxu0 %v379
        %v504 = vpop.f32.mrf.mxu0
        %v505 = vadd.f32 %v357, %v504
        %v506 = vpop.f32.mrf.mxu0
        %507 = vmatprep.mubr.f32.mxu0 0.0
        %508 = vmatmul.mubr.f32.gmra.mxu0 %v382
        %v509 = vpop.f32.mrf.mxu0
        %v510 = vadd.f32 %v357, %v509
        %v511 = vpop.f32.mrf.mxu0
        %512 = vmatprep.mubr.f32.mxu0 0.0
        %513 = vmatmul.mubr.f32.gmra.mxu0 %v385
        %v514 = vpop.f32.mrf.mxu0
        %v515 = vadd.f32 %v357, %v514
        %v516 = vpop.f32.mrf.mxu0
        %517 = vmatprep.mubr.f32.mxu0 0.0
        %518 = vmatmul.mubr.f32.gmra.mxu0 %v388
        %v519 = vpop.f32.mrf.mxu0
        %v520 = vadd.f32 %v357, %v519
        %v521 = vpop.f32.mrf.mxu0
        %522 = vmatprep.mubr.f32.mxu0 0.0
        %523 = vmatmul.mubr.f32.gmra.mxu0 %v391
        %v524 = vpop.f32.mrf.mxu0
        %v525 = vadd.f32 %v357, %v524
        %v526 = vpop.f32.mrf.mxu0
        %527 = vmatprep.mubr.f32.mxu0 0.0
        %528 = vmatmul.mubr.f32.gmra.mxu0 %v394
        %v529 = vpop.f32.mrf.mxu0
        %v530 = vadd.f32 %v357, %v529
        %v531 = vpop.f32.mrf.mxu0
        %532 = vmatprep.mubr.f32.mxu0 0.0
        %533 = vmatmul.mubr.f32.gmra.mxu0 %v397
        %v534 = vpop.f32.mrf.mxu0
        %v535 = vadd.f32 %v357, %v534
        %v536 = vpop.f32.mrf.mxu0
        %537 = vmatprep.mubr.f32.mxu0 0.0
        %538 = vmatmul.mubr.f32.gmra.mxu0 %v400
        %v539 = vpop.f32.mrf.mxu0
        %v540 = vadd.f32 %v357, %v539
        %v541 = vpop.f32.mrf.mxu0
        %542 = vmatprep.mubr.f32.mxu0 0.0
        %543 = vmatmul.mubr.f32.gmra.mxu0 %v403
        %v544 = vpop.f32.mrf.mxu0
        %v545 = vadd.f32 %v357, %v544
        %v546 = vpop.f32.mrf.mxu0
        %547 = vmatprep.mubr.f32.mxu0 0.0
        %548 = vmatmul.mubr.f32.gmra.mxu0 %v406
        %v549 = vpop.f32.mrf.mxu0
        %v550 = vadd.f32 %v357, %v549
        %v551 = vpop.f32.mrf.mxu0
        %552 = vdwg.mxu0
        %v553 = vmax.f32 %v475, 0.0
        %v554 = vmax.f32 %v480, 0.0
        %v555 = vmax.f32 %v485, 0.0
        %v556 = vmax.f32 %v490, 0.0
        %v557 = vmax.f32 %v495, 0.0
        %v558 = vmax.f32 %v500, 0.0
        %v559 = vmax.f32 %v505, 0.0
        %v560 = vmax.f32 %v510, 0.0
        %v561 = vmax.f32 %v515, 0.0
        %v562 = vmax.f32 %v520, 0.0
        %v563 = vmax.f32 %v525, 0.0
        %v564 = vmax.f32 %v530, 0.0
        %v565 = vmax.f32 %v535, 0.0
        %v566 = vmax.f32 %v540, 0.0
        %v567 = vmax.f32 %v545, 0.0
        %v568 = vmax.f32 %v550, 0.0
        %v569 = vld [vmem:[%s3] sm:$0xff]
        %v570 = vld [vmem:[%s3 + $0x8] sm:$0xff]
        %v571 = vld [vmem:[%s3 + $0x10] sm:$0xff]
        %v572 = vld [vmem:[%s3 + $0x18] sm:$0xff]
        %v573 = vld [vmem:[%s4] sm:$0x1]
        %v575 = vlaneseq
        %v576 = vshrl.u32 %v575, 7
        %v577 = vsub.s32 0, %v576
        %v578 = vrot.slane %v573, %v577
        %vm580 = vcmask 261120
        %v582 = vsel %vm580, %v553, 0
        %v585 = vsel %vm580, %v554, 0
        %v588 = vsel %vm580, %v555, 0
        %v591 = vsel %vm580, %v556, 0
        %v594 = vsel %vm580, %v557, 0
        %v597 = vsel %vm580, %v558, 0
        %v600 = vsel %vm580, %v559, 0
        %v603 = vsel %vm580, %v560, 0
        %v606 = vsel %vm580, %v561, 0
        %v609 = vsel %vm580, %v562, 0
        %v612 = vsel %vm580, %v563, 0
        %v615 = vsel %vm580, %v564, 0
        %v618 = vsel %vm580, %v565, 0
        %v621 = vsel %vm580, %v566, 0
        %v624 = vsel %vm580, %v567, 0
        %v627 = vsel %vm580, %v568, 0
        %629 = vmatprep.subr.mxu0 0.0
        %630 = vmatpush1.msra.mxu0 0.0
        %631 = vmatprep.subr.mxu0 0.0
        %632 = vmatpush1.msra.mxu0 0.0
        %633 = vmatprep.subr.mxu0 0.0
        %634 = vmatpush1.msra.mxu0 0.0
        %635 = vmatprep.subr.mxu0 0.0
        %636 = vmatpush1.msra.mxu0 0.0
        %637 = vmatprep.subr.mxu0 0.0
        %638 = vmatpush1.msra.mxu0 0.0
        %639 = vmatprep.subr.mxu0 0.0
        %640 = vmatpush1.msra.mxu0 0.0
        %641 = vmatprep.subr.mxu0 0.0
        %642 = vmatpush1.msra.mxu0 0.0
        %643 = vmatprep.subr.mxu0 0.0
        %644 = vmatpush1.msra.mxu0 0.0
        %645 = vmatprep.subr.mxu0 0.0
        %646 = vmatpush1.msra.mxu0 0.0
        %647 = vmatprep.subr.mxu0 0.0
        %648 = vmatpush1.msra.mxu0 0.0
        %649 = vmatprep.subr.mxu0 0.0
        %650 = vmatpush1.msra.mxu0 0.0
        %651 = vmatprep.subr.mxu0 0.0
        %652 = vmatpush1.msra.mxu0 0.0
        %653 = vmatprep.subr.mxu0 0.0
        %654 = vmatpush1.msra.mxu0 %v572
        %655 = vmatprep.subr.mxu0 0.0
        %656 = vmatpush1.msra.mxu0 %v571
        %657 = vmatprep.subr.mxu0 0.0
        %658 = vmatpush1.msra.mxu0 %v570
        %659 = vmatprep.subr.mxu0 0.0
        %660 = vmatpush1.msra.mxu0 %v569
        %661 = vmatprep.subr.mxu0 0.0
        %662 = vmatpush2.msra.mxu0 0.0
        %663 = vmatprep.subr.mxu0 0.0
        %664 = vmatpush2.msra.mxu0 0.0
        %665 = vmatprep.subr.mxu0 0.0
        %666 = vmatpush2.msra.mxu0 0.0
        %667 = vmatprep.subr.mxu0 0.0
        %668 = vmatpush2.msra.mxu0 0.0
        %669 = vmatprep.subr.mxu0 0.0
        %670 = vmatpush2.msra.mxu0 0.0
        %671 = vmatprep.subr.mxu0 0.0
        %672 = vmatpush2.msra.mxu0 0.0
        %673 = vmatprep.subr.mxu0 0.0
        %674 = vmatpush2.msra.mxu0 0.0
        %675 = vmatprep.subr.mxu0 0.0
        %676 = vmatpush2.msra.mxu0 0.0
        %677 = vmatprep.subr.mxu0 0.0
        %678 = vmatpush2.msra.mxu0 0.0
        %679 = vmatprep.subr.mxu0 0.0
        %680 = vmatpush2.msra.mxu0 0.0
        %681 = vmatprep.subr.mxu0 0.0
        %682 = vmatpush2.msra.mxu0 0.0
        %683 = vmatprep.subr.mxu0 0.0
        %684 = vmatpush2.msra.mxu0 0.0
        %685 = vmatprep.subr.mxu0 0.0
        %686 = vmatpush2.msra.mxu0 0.0
        %687 = vmatprep.subr.mxu0 0.0
        %688 = vmatpush2.msra.mxu0 0.0
        %689 = vmatprep.subr.mxu0 0.0
        %690 = vmatpush2.msra.mxu0 0.0
        %691 = vmatprep.subr.mxu0 0.0
        %692 = vmatpush2.msra.mxu0 0.0
        %693 = vmatprep.mubr.f32.mxu0 0.0
        %694 = vmatmul.mubr.f32.gmra.mxu0 %v582
        %v695 = vpop.f32.mrf.mxu0
        %v696 = vadd.f32 %v578, %v695
        %v697 = vpop.f32.mrf.mxu0
        %698 = vmatprep.mubr.f32.mxu0 0.0
        %699 = vmatmul.mubr.f32.gmra.mxu0 %v585
        %v700 = vpop.f32.mrf.mxu0
        %v701 = vadd.f32 %v578, %v700
        %v702 = vpop.f32.mrf.mxu0
        %703 = vmatprep.mubr.f32.mxu0 0.0
        %704 = vmatmul.mubr.f32.gmra.mxu0 %v588
        %v705 = vpop.f32.mrf.mxu0
        %v706 = vadd.f32 %v578, %v705
        %v707 = vpop.f32.mrf.mxu0
        %708 = vmatprep.mubr.f32.mxu0 0.0
        %709 = vmatmul.mubr.f32.gmra.mxu0 %v591
        %v710 = vpop.f32.mrf.mxu0
        %v711 = vadd.f32 %v578, %v710
        %v712 = vpop.f32.mrf.mxu0
        %713 = vmatprep.mubr.f32.mxu0 0.0
        %714 = vmatmul.mubr.f32.gmra.mxu0 %v594
        %v715 = vpop.f32.mrf.mxu0
        %v716 = vadd.f32 %v578, %v715
        %v717 = vpop.f32.mrf.mxu0
        %718 = vmatprep.mubr.f32.mxu0 0.0
        %719 = vmatmul.mubr.f32.gmra.mxu0 %v597
        %v720 = vpop.f32.mrf.mxu0
        %v721 = vadd.f32 %v578, %v720
        %v722 = vpop.f32.mrf.mxu0
        %723 = vmatprep.mubr.f32.mxu0 0.0
        %724 = vmatmul.mubr.f32.gmra.mxu0 %v600
        %v725 = vpop.f32.mrf.mxu0
        %v726 = vadd.f32 %v578, %v725
        %v727 = vpop.f32.mrf.mxu0
        %728 = vmatprep.mubr.f32.mxu0 0.0
        %729 = vmatmul.mubr.f32.gmra.mxu0 %v603
        %v730 = vpop.f32.mrf.mxu0
        %v731 = vadd.f32 %v578, %v730
        %v732 = vpop.f32.mrf.mxu0
        %733 = vmatprep.mubr.f32.mxu0 0.0
        %734 = vmatmul.mubr.f32.gmra.mxu0 %v606
        %v735 = vpop.f32.mrf.mxu0
        %v736 = vadd.f32 %v578, %v735
        %v737 = vpop.f32.mrf.mxu0
        %738 = vmatprep.mubr.f32.mxu0 0.0
        %739 = vmatmul.mubr.f32.gmra.mxu0 %v609
        %v740 = vpop.f32.mrf.mxu0
        %v741 = vadd.f32 %v578, %v740
        %v742 = vpop.f32.mrf.mxu0
        %743 = vmatprep.mubr.f32.mxu0 0.0
        %744 = vmatmul.mubr.f32.gmra.mxu0 %v612
        %v745 = vpop.f32.mrf.mxu0
        %v746 = vadd.f32 %v578, %v745
        %v747 = vpop.f32.mrf.mxu0
        %748 = vmatprep.mubr.f32.mxu0 0.0
        %749 = vmatmul.mubr.f32.gmra.mxu0 %v615
        %v750 = vpop.f32.mrf.mxu0
        %v751 = vadd.f32 %v578, %v750
        %v752 = vpop.f32.mrf.mxu0
        %753 = vmatprep.mubr.f32.mxu0 0.0
        %754 = vmatmul.mubr.f32.gmra.mxu0 %v618
        %v755 = vpop.f32.mrf.mxu0
        %v756 = vadd.f32 %v578, %v755
        %v757 = vpop.f32.mrf.mxu0
        %758 = vmatprep.mubr.f32.mxu0 0.0
        %759 = vmatmul.mubr.f32.gmra.mxu0 %v621
        %v760 = vpop.f32.mrf.mxu0
        %v761 = vadd.f32 %v578, %v760
        %v762 = vpop.f32.mrf.mxu0
        %763 = vmatprep.mubr.f32.mxu0 0.0
        %764 = vmatmul.mubr.f32.gmra.mxu0 %v624
        %v765 = vpop.f32.mrf.mxu0
        %v766 = vadd.f32 %v578, %v765
        %v767 = vpop.f32.mrf.mxu0
        %768 = vmatprep.mubr.f32.mxu0 0.0
        %769 = vmatmul.mubr.f32.gmra.mxu0 %v627
        %v770 = vpop.f32.mrf.mxu0
        %v771 = vadd.f32 %v578, %v770
        %v772 = vpop.f32.mrf.mxu0
        %773 = vdwg.mxu0
        %v774 = vmax.f32 %v696, 0.0
        %v775 = vmax.f32 %v701, 0.0
        %v776 = vmax.f32 %v706, 0.0
        %v777 = vmax.f32 %v711, 0.0
        %v778 = vmax.f32 %v716, 0.0
        %v779 = vmax.f32 %v721, 0.0
        %v780 = vmax.f32 %v726, 0.0
        %v781 = vmax.f32 %v731, 0.0
        %v782 = vmax.f32 %v736, 0.0
        %v783 = vmax.f32 %v741, 0.0
        %v784 = vmax.f32 %v746, 0.0
        %v785 = vmax.f32 %v751, 0.0
        %v786 = vmax.f32 %v756, 0.0
        %v787 = vmax.f32 %v761, 0.0
        %v788 = vmax.f32 %v766, 0.0
        %v789 = vmax.f32 %v771, 0.0
        %s790 = scalar_lea.vmem %s3, 32
        %v791 = vld [vmem:[%s790] sm:$0xff]
        %v792 = vld [vmem:[%s790 + $0x8] sm:$0xff]
        %v793 = vld [vmem:[%s790 + $0x10] sm:$0xff]
        %v794 = vld [vmem:[%s790 + $0x18] sm:$0xff]
        %s795 = scalar_lea.vmem %s4, 1
        %v796 = vld [vmem:[%s795] sm:$0x1]
        %v798 = vlaneseq
        %v799 = vshrl.u32 %v798, 7
        %v800 = vsub.s32 0, %v799
        %v801 = vrot.slane %v796, %v800
        %v804 = vsel %vm580, %v774, 0
        %v807 = vsel %vm580, %v775, 0
        %v810 = vsel %vm580, %v776, 0
        %v813 = vsel %vm580, %v777, 0
        %v816 = vsel %vm580, %v778, 0
        %v819 = vsel %vm580, %v779, 0
        %v822 = vsel %vm580, %v780, 0
        %v825 = vsel %vm580, %v781, 0
        %v828 = vsel %vm580, %v782, 0
        %v831 = vsel %vm580, %v783, 0
        %v834 = vsel %vm580, %v784, 0
        %v837 = vsel %vm580, %v785, 0
        %v840 = vsel %vm580, %v786, 0
        %v843 = vsel %vm580, %v787, 0
        %v846 = vsel %vm580, %v788, 0
        %v849 = vsel %vm580, %v789, 0
        %851 = vmatprep.subr.mxu0 0.0
        %852 = vmatpush1.msra.mxu0 0.0
        %853 = vmatprep.subr.mxu0 0.0
        %854 = vmatpush1.msra.mxu0 0.0
        %855 = vmatprep.subr.mxu0 0.0
        %856 = vmatpush1.msra.mxu0 0.0
        %857 = vmatprep.subr.mxu0 0.0
        %858 = vmatpush1.msra.mxu0 0.0
        %859 = vmatprep.subr.mxu0 0.0
        %860 = vmatpush1.msra.mxu0 0.0
        %861 = vmatprep.subr.mxu0 0.0
        %862 = vmatpush1.msra.mxu0 0.0
        %863 = vmatprep.subr.mxu0 0.0
        %864 = vmatpush1.msra.mxu0 0.0
        %865 = vmatprep.subr.mxu0 0.0
        %866 = vmatpush1.msra.mxu0 0.0
        %867 = vmatprep.subr.mxu0 0.0
        %868 = vmatpush1.msra.mxu0 0.0
        %869 = vmatprep.subr.mxu0 0.0
        %870 = vmatpush1.msra.mxu0 0.0
        %871 = vmatprep.subr.mxu0 0.0
        %872 = vmatpush1.msra.mxu0 0.0
        %873 = vmatprep.subr.mxu0 0.0
        %874 = vmatpush1.msra.mxu0 0.0
        %875 = vmatprep.subr.mxu0 0.0
        %876 = vmatpush1.msra.mxu0 %v794
        %877 = vmatprep.subr.mxu0 0.0
        %878 = vmatpush1.msra.mxu0 %v793
        %879 = vmatprep.subr.mxu0 0.0
        %880 = vmatpush1.msra.mxu0 %v792
        %881 = vmatprep.subr.mxu0 0.0
        %882 = vmatpush1.msra.mxu0 %v791
        %883 = vmatprep.subr.mxu0 0.0
        %884 = vmatpush2.msra.mxu0 0.0
        %885 = vmatprep.subr.mxu0 0.0
        %886 = vmatpush2.msra.mxu0 0.0
        %887 = vmatprep.subr.mxu0 0.0
        %888 = vmatpush2.msra.mxu0 0.0
        %889 = vmatprep.subr.mxu0 0.0
        %890 = vmatpush2.msra.mxu0 0.0
        %891 = vmatprep.subr.mxu0 0.0
        %892 = vmatpush2.msra.mxu0 0.0
        %893 = vmatprep.subr.mxu0 0.0
        %894 = vmatpush2.msra.mxu0 0.0
        %895 = vmatprep.subr.mxu0 0.0
        %896 = vmatpush2.msra.mxu0 0.0
        %897 = vmatprep.subr.mxu0 0.0
        %898 = vmatpush2.msra.mxu0 0.0
        %899 = vmatprep.subr.mxu0 0.0
        %900 = vmatpush2.msra.mxu0 0.0
        %901 = vmatprep.subr.mxu0 0.0
        %902 = vmatpush2.msra.mxu0 0.0
        %903 = vmatprep.subr.mxu0 0.0
        %904 = vmatpush2.msra.mxu0 0.0
        %905 = vmatprep.subr.mxu0 0.0
        %906 = vmatpush2.msra.mxu0 0.0
        %907 = vmatprep.subr.mxu0 0.0
        %908 = vmatpush2.msra.mxu0 0.0
        %909 = vmatprep.subr.mxu0 0.0
        %910 = vmatpush2.msra.mxu0 0.0
        %911 = vmatprep.subr.mxu0 0.0
        %912 = vmatpush2.msra.mxu0 0.0
        %913 = vmatprep.subr.mxu0 0.0
        %914 = vmatpush2.msra.mxu0 0.0
        %915 = vmatprep.mubr.f32.mxu0 0.0
        %916 = vmatmul.mubr.f32.gmra.mxu0 %v804
        %v917 = vpop.f32.mrf.mxu0
        %v918 = vadd.f32 %v801, %v917
        %v919 = vpop.f32.mrf.mxu0
        %920 = vmatprep.mubr.f32.mxu0 0.0
        %921 = vmatmul.mubr.f32.gmra.mxu0 %v807
        %v922 = vpop.f32.mrf.mxu0
        %v923 = vadd.f32 %v801, %v922
        %v924 = vpop.f32.mrf.mxu0
        %925 = vmatprep.mubr.f32.mxu0 0.0
        %926 = vmatmul.mubr.f32.gmra.mxu0 %v810
        %v927 = vpop.f32.mrf.mxu0
        %v928 = vadd.f32 %v801, %v927
        %v929 = vpop.f32.mrf.mxu0
        %930 = vmatprep.mubr.f32.mxu0 0.0
        %931 = vmatmul.mubr.f32.gmra.mxu0 %v813
        %v932 = vpop.f32.mrf.mxu0
        %v933 = vadd.f32 %v801, %v932
        %v934 = vpop.f32.mrf.mxu0
        %935 = vmatprep.mubr.f32.mxu0 0.0
        %936 = vmatmul.mubr.f32.gmra.mxu0 %v816
        %v937 = vpop.f32.mrf.mxu0
        %v938 = vadd.f32 %v801, %v937
        %v939 = vpop.f32.mrf.mxu0
        %940 = vmatprep.mubr.f32.mxu0 0.0
        %941 = vmatmul.mubr.f32.gmra.mxu0 %v819
        %v942 = vpop.f32.mrf.mxu0
        %v943 = vadd.f32 %v801, %v942
        %v944 = vpop.f32.mrf.mxu0
        %945 = vmatprep.mubr.f32.mxu0 0.0
        %946 = vmatmul.mubr.f32.gmra.mxu0 %v822
        %v947 = vpop.f32.mrf.mxu0
        %v948 = vadd.f32 %v801, %v947
        %v949 = vpop.f32.mrf.mxu0
        %950 = vmatprep.mubr.f32.mxu0 0.0
        %951 = vmatmul.mubr.f32.gmra.mxu0 %v825
        %v952 = vpop.f32.mrf.mxu0
        %v953 = vadd.f32 %v801, %v952
        %v954 = vpop.f32.mrf.mxu0
        %955 = vmatprep.mubr.f32.mxu0 0.0
        %956 = vmatmul.mubr.f32.gmra.mxu0 %v828
        %v957 = vpop.f32.mrf.mxu0
        %v958 = vadd.f32 %v801, %v957
        %v959 = vpop.f32.mrf.mxu0
        %960 = vmatprep.mubr.f32.mxu0 0.0
        %961 = vmatmul.mubr.f32.gmra.mxu0 %v831
        %v962 = vpop.f32.mrf.mxu0
        %v963 = vadd.f32 %v801, %v962
        %v964 = vpop.f32.mrf.mxu0
        %965 = vmatprep.mubr.f32.mxu0 0.0
        %966 = vmatmul.mubr.f32.gmra.mxu0 %v834
        %v967 = vpop.f32.mrf.mxu0
        %v968 = vadd.f32 %v801, %v967
        %v969 = vpop.f32.mrf.mxu0
        %970 = vmatprep.mubr.f32.mxu0 0.0
        %971 = vmatmul.mubr.f32.gmra.mxu0 %v837
        %v972 = vpop.f32.mrf.mxu0
        %v973 = vadd.f32 %v801, %v972
        %v974 = vpop.f32.mrf.mxu0
        %975 = vmatprep.mubr.f32.mxu0 0.0
        %976 = vmatmul.mubr.f32.gmra.mxu0 %v840
        %v977 = vpop.f32.mrf.mxu0
        %v978 = vadd.f32 %v801, %v977
        %v979 = vpop.f32.mrf.mxu0
        %980 = vmatprep.mubr.f32.mxu0 0.0
        %981 = vmatmul.mubr.f32.gmra.mxu0 %v843
        %v982 = vpop.f32.mrf.mxu0
        %v983 = vadd.f32 %v801, %v982
        %v984 = vpop.f32.mrf.mxu0
        %985 = vmatprep.mubr.f32.mxu0 0.0
        %986 = vmatmul.mubr.f32.gmra.mxu0 %v846
        %v987 = vpop.f32.mrf.mxu0
        %v988 = vadd.f32 %v801, %v987
        %v989 = vpop.f32.mrf.mxu0
        %990 = vmatprep.mubr.f32.mxu0 0.0
        %991 = vmatmul.mubr.f32.gmra.mxu0 %v849
        %v992 = vpop.f32.mrf.mxu0
        %v993 = vadd.f32 %v801, %v992
        %v994 = vpop.f32.mrf.mxu0
        %995 = vdwg.mxu0
        %v996 = vmax.f32 %v918, 0.0
        %v997 = vmax.f32 %v923, 0.0
        %v998 = vmax.f32 %v928, 0.0
        %v999 = vmax.f32 %v933, 0.0
        %v1000 = vmax.f32 %v938, 0.0
        %v1001 = vmax.f32 %v943, 0.0
        %v1002 = vmax.f32 %v948, 0.0
        %v1003 = vmax.f32 %v953, 0.0
        %v1004 = vmax.f32 %v958, 0.0
        %v1005 = vmax.f32 %v963, 0.0
        %v1006 = vmax.f32 %v968, 0.0
        %v1007 = vmax.f32 %v973, 0.0
        %v1008 = vmax.f32 %v978, 0.0
        %v1009 = vmax.f32 %v983, 0.0
        %v1010 = vmax.f32 %v988, 0.0
        %v1011 = vmax.f32 %v993, 0.0
        %s1012 = scalar_lea.vmem %s3, 64
        %v1013 = vld [vmem:[%s1012] sm:$0xff]
        %v1014 = vld [vmem:[%s1012 + $0x8] sm:$0xff]
        %v1015 = vld [vmem:[%s1012 + $0x10] sm:$0xff]
        %v1016 = vld [vmem:[%s1012 + $0x18] sm:$0xff]
        %s1017 = scalar_lea.vmem %s4, 2
        %v1018 = vld [vmem:[%s1017] sm:$0x1]
        %v1020 = vlaneseq
        %v1021 = vshrl.u32 %v1020, 7
        %v1022 = vsub.s32 0, %v1021
        %v1023 = vrot.slane %v1018, %v1022
        %v1026 = vsel %vm580, %v996, 0
        %v1029 = vsel %vm580, %v997, 0
        %v1032 = vsel %vm580, %v998, 0
        %v1035 = vsel %vm580, %v999, 0
        %v1038 = vsel %vm580, %v1000, 0
        %v1041 = vsel %vm580, %v1001, 0
        %v1044 = vsel %vm580, %v1002, 0
        %v1047 = vsel %vm580, %v1003, 0
        %v1050 = vsel %vm580, %v1004, 0
        %v1053 = vsel %vm580, %v1005, 0
        %v1056 = vsel %vm580, %v1006, 0
        %v1059 = vsel %vm580, %v1007, 0
        %v1062 = vsel %vm580, %v1008, 0
        %v1065 = vsel %vm580, %v1009, 0
        %v1068 = vsel %vm580, %v1010, 0
        %v1071 = vsel %vm580, %v1011, 0
        %1073 = vmatprep.subr.mxu0 0.0
        %1074 = vmatpush1.msra.mxu0 0.0
        %1075 = vmatprep.subr.mxu0 0.0
        %1076 = vmatpush1.msra.mxu0 0.0
        %1077 = vmatprep.subr.mxu0 0.0
        %1078 = vmatpush1.msra.mxu0 0.0
        %1079 = vmatprep.subr.mxu0 0.0
        %1080 = vmatpush1.msra.mxu0 0.0
        %1081 = vmatprep.subr.mxu0 0.0
        %1082 = vmatpush1.msra.mxu0 0.0
        %1083 = vmatprep.subr.mxu0 0.0
        %1084 = vmatpush1.msra.mxu0 0.0
        %1085 = vmatprep.subr.mxu0 0.0
        %1086 = vmatpush1.msra.mxu0 0.0
        %1087 = vmatprep.subr.mxu0 0.0
        %1088 = vmatpush1.msra.mxu0 0.0
        %1089 = vmatprep.subr.mxu0 0.0
        %1090 = vmatpush1.msra.mxu0 0.0
        %1091 = vmatprep.subr.mxu0 0.0
        %1092 = vmatpush1.msra.mxu0 0.0
        %1093 = vmatprep.subr.mxu0 0.0
        %1094 = vmatpush1.msra.mxu0 0.0
        %1095 = vmatprep.subr.mxu0 0.0
        %1096 = vmatpush1.msra.mxu0 0.0
        %1097 = vmatprep.subr.mxu0 0.0
        %1098 = vmatpush1.msra.mxu0 %v1016
        %1099 = vmatprep.subr.mxu0 0.0
        %1100 = vmatpush1.msra.mxu0 %v1015
        %1101 = vmatprep.subr.mxu0 0.0
        %1102 = vmatpush1.msra.mxu0 %v1014
        %1103 = vmatprep.subr.mxu0 0.0
        %1104 = vmatpush1.msra.mxu0 %v1013
        %1105 = vmatprep.subr.mxu0 0.0
        %1106 = vmatpush2.msra.mxu0 0.0
        %1107 = vmatprep.subr.mxu0 0.0
        %1108 = vmatpush2.msra.mxu0 0.0
        %1109 = vmatprep.subr.mxu0 0.0
        %1110 = vmatpush2.msra.mxu0 0.0
        %1111 = vmatprep.subr.mxu0 0.0
        %1112 = vmatpush2.msra.mxu0 0.0
        %1113 = vmatprep.subr.mxu0 0.0
        %1114 = vmatpush2.msra.mxu0 0.0
        %1115 = vmatprep.subr.mxu0 0.0
        %1116 = vmatpush2.msra.mxu0 0.0
        %1117 = vmatprep.subr.mxu0 0.0
        %1118 = vmatpush2.msra.mxu0 0.0
        %1119 = vmatprep.subr.mxu0 0.0
        %1120 = vmatpush2.msra.mxu0 0.0
        %1121 = vmatprep.subr.mxu0 0.0
        %1122 = vmatpush2.msra.mxu0 0.0
        %1123 = vmatprep.subr.mxu0 0.0
        %1124 = vmatpush2.msra.mxu0 0.0
        %1125 = vmatprep.subr.mxu0 0.0
        %1126 = vmatpush2.msra.mxu0 0.0
        %1127 = vmatprep.subr.mxu0 0.0
        %1128 = vmatpush2.msra.mxu0 0.0
        %1129 = vmatprep.subr.mxu0 0.0
        %1130 = vmatpush2.msra.mxu0 0.0
        %1131 = vmatprep.subr.mxu0 0.0
        %1132 = vmatpush2.msra.mxu0 0.0
        %1133 = vmatprep.subr.mxu0 0.0
        %1134 = vmatpush2.msra.mxu0 0.0
        %1135 = vmatprep.subr.mxu0 0.0
        %1136 = vmatpush2.msra.mxu0 0.0
        %1137 = vmatprep.mubr.f32.mxu0 0.0
        %1138 = vmatmul.mubr.f32.gmra.mxu0 %v1026
        %v1139 = vpop.f32.mrf.mxu0
        %v1140 = vadd.f32 %v1023, %v1139
        %v1141 = vpop.f32.mrf.mxu0
        %1142 = vmatprep.mubr.f32.mxu0 0.0
        %1143 = vmatmul.mubr.f32.gmra.mxu0 %v1029
        %v1144 = vpop.f32.mrf.mxu0
        %v1145 = vadd.f32 %v1023, %v1144
        %v1146 = vpop.f32.mrf.mxu0
        %1147 = vmatprep.mubr.f32.mxu0 0.0
        %1148 = vmatmul.mubr.f32.gmra.mxu0 %v1032
        %v1149 = vpop.f32.mrf.mxu0
        %v1150 = vadd.f32 %v1023, %v1149
        %v1151 = vpop.f32.mrf.mxu0
        %1152 = vmatprep.mubr.f32.mxu0 0.0
        %1153 = vmatmul.mubr.f32.gmra.mxu0 %v1035
        %v1154 = vpop.f32.mrf.mxu0
        %v1155 = vadd.f32 %v1023, %v1154
        %v1156 = vpop.f32.mrf.mxu0
        %1157 = vmatprep.mubr.f32.mxu0 0.0
        %1158 = vmatmul.mubr.f32.gmra.mxu0 %v1038
        %v1159 = vpop.f32.mrf.mxu0
        %v1160 = vadd.f32 %v1023, %v1159
        %v1161 = vpop.f32.mrf.mxu0
        %1162 = vmatprep.mubr.f32.mxu0 0.0
        %1163 = vmatmul.mubr.f32.gmra.mxu0 %v1041
        %v1164 = vpop.f32.mrf.mxu0
        %v1165 = vadd.f32 %v1023, %v1164
        %v1166 = vpop.f32.mrf.mxu0
        %1167 = vmatprep.mubr.f32.mxu0 0.0
        %1168 = vmatmul.mubr.f32.gmra.mxu0 %v1044
        %v1169 = vpop.f32.mrf.mxu0
        %v1170 = vadd.f32 %v1023, %v1169
        %v1171 = vpop.f32.mrf.mxu0
        %1172 = vmatprep.mubr.f32.mxu0 0.0
        %1173 = vmatmul.mubr.f32.gmra.mxu0 %v1047
        %v1174 = vpop.f32.mrf.mxu0
        %v1175 = vadd.f32 %v1023, %v1174
        %v1176 = vpop.f32.mrf.mxu0
        %1177 = vmatprep.mubr.f32.mxu0 0.0
        %1178 = vmatmul.mubr.f32.gmra.mxu0 %v1050
        %v1179 = vpop.f32.mrf.mxu0
        %v1180 = vadd.f32 %v1023, %v1179
        %v1181 = vpop.f32.mrf.mxu0
        %1182 = vmatprep.mubr.f32.mxu0 0.0
        %1183 = vmatmul.mubr.f32.gmra.mxu0 %v1053
        %v1184 = vpop.f32.mrf.mxu0
        %v1185 = vadd.f32 %v1023, %v1184
        %v1186 = vpop.f32.mrf.mxu0
        %1187 = vmatprep.mubr.f32.mxu0 0.0
        %1188 = vmatmul.mubr.f32.gmra.mxu0 %v1056
        %v1189 = vpop.f32.mrf.mxu0
        %v1190 = vadd.f32 %v1023, %v1189
        %v1191 = vpop.f32.mrf.mxu0
        %1192 = vmatprep.mubr.f32.mxu0 0.0
        %1193 = vmatmul.mubr.f32.gmra.mxu0 %v1059
        %v1194 = vpop.f32.mrf.mxu0
        %v1195 = vadd.f32 %v1023, %v1194
        %v1196 = vpop.f32.mrf.mxu0
        %1197 = vmatprep.mubr.f32.mxu0 0.0
        %1198 = vmatmul.mubr.f32.gmra.mxu0 %v1062
        %v1199 = vpop.f32.mrf.mxu0
        %v1200 = vadd.f32 %v1023, %v1199
        %v1201 = vpop.f32.mrf.mxu0
        %1202 = vmatprep.mubr.f32.mxu0 0.0
        %1203 = vmatmul.mubr.f32.gmra.mxu0 %v1065
        %v1204 = vpop.f32.mrf.mxu0
        %v1205 = vadd.f32 %v1023, %v1204
        %v1206 = vpop.f32.mrf.mxu0
        %1207 = vmatprep.mubr.f32.mxu0 0.0
        %1208 = vmatmul.mubr.f32.gmra.mxu0 %v1068
        %v1209 = vpop.f32.mrf.mxu0
        %v1210 = vadd.f32 %v1023, %v1209
        %v1211 = vpop.f32.mrf.mxu0
        %1212 = vmatprep.mubr.f32.mxu0 0.0
        %1213 = vmatmul.mubr.f32.gmra.mxu0 %v1071
        %v1214 = vpop.f32.mrf.mxu0
        %v1215 = vadd.f32 %v1023, %v1214
        %v1216 = vpop.f32.mrf.mxu0
        %1217 = vdwg.mxu0
        %v1218 = vmax.f32 %v1140, 0.0
        %v1219 = vmax.f32 %v1145, 0.0
        %v1220 = vmax.f32 %v1150, 0.0
        %v1221 = vmax.f32 %v1155, 0.0
        %v1222 = vmax.f32 %v1160, 0.0
        %v1223 = vmax.f32 %v1165, 0.0
        %v1224 = vmax.f32 %v1170, 0.0
        %v1225 = vmax.f32 %v1175, 0.0
        %v1226 = vmax.f32 %v1180, 0.0
        %v1227 = vmax.f32 %v1185, 0.0
        %v1228 = vmax.f32 %v1190, 0.0
        %v1229 = vmax.f32 %v1195, 0.0
        %v1230 = vmax.f32 %v1200, 0.0
        %v1231 = vmax.f32 %v1205, 0.0
        %v1232 = vmax.f32 %v1210, 0.0
        %v1233 = vmax.f32 %v1215, 0.0
        %v1234 = vld [vmem:[%s5] sm:$0xff]
        %v1235 = vld [vmem:[%s5 + $0x8] sm:$0xff]
        %v1236 = vld [vmem:[%s5 + $0x10] sm:$0xff]
        %v1237 = vld [vmem:[%s5 + $0x18] sm:$0xff]
        %v1238 = vld [vmem:[%s6] sm:$0x1]
        %v1240 = vlaneseq
        %v1241 = vshrl.u32 %v1240, 7
        %v1242 = vsub.s32 0, %v1241
        %v1243 = vrot.slane %v1238, %v1242
        %v1246 = vsel %vm580, %v1218, 0
        %v1249 = vsel %vm580, %v1219, 0
        %v1252 = vsel %vm580, %v1220, 0
        %v1255 = vsel %vm580, %v1221, 0
        %v1258 = vsel %vm580, %v1222, 0
        %v1261 = vsel %vm580, %v1223, 0
        %v1264 = vsel %vm580, %v1224, 0
        %v1267 = vsel %vm580, %v1225, 0
        %v1270 = vsel %vm580, %v1226, 0
        %v1273 = vsel %vm580, %v1227, 0
        %v1276 = vsel %vm580, %v1228, 0
        %v1279 = vsel %vm580, %v1229, 0
        %v1282 = vsel %vm580, %v1230, 0
        %v1285 = vsel %vm580, %v1231, 0
        %v1288 = vsel %vm580, %v1232, 0
        %v1291 = vsel %vm580, %v1233, 0
        %1293 = vmatprep.subr.mxu0 0.0
        %1294 = vmatpush1.msra.mxu0 0.0
        %1295 = vmatprep.subr.mxu0 0.0
        %1296 = vmatpush1.msra.mxu0 0.0
        %1297 = vmatprep.subr.mxu0 0.0
        %1298 = vmatpush1.msra.mxu0 0.0
        %1299 = vmatprep.subr.mxu0 0.0
        %1300 = vmatpush1.msra.mxu0 0.0
        %1301 = vmatprep.subr.mxu0 0.0
        %1302 = vmatpush1.msra.mxu0 0.0
        %1303 = vmatprep.subr.mxu0 0.0
        %1304 = vmatpush1.msra.mxu0 0.0
        %1305 = vmatprep.subr.mxu0 0.0
        %1306 = vmatpush1.msra.mxu0 0.0
        %1307 = vmatprep.subr.mxu0 0.0
        %1308 = vmatpush1.msra.mxu0 0.0
        %1309 = vmatprep.subr.mxu0 0.0
        %1310 = vmatpush1.msra.mxu0 0.0
        %1311 = vmatprep.subr.mxu0 0.0
        %1312 = vmatpush1.msra.mxu0 0.0
        %1313 = vmatprep.subr.mxu0 0.0
        %1314 = vmatpush1.msra.mxu0 0.0
        %1315 = vmatprep.subr.mxu0 0.0
        %1316 = vmatpush1.msra.mxu0 0.0
        %1317 = vmatprep.subr.mxu0 0.0
        %1318 = vmatpush1.msra.mxu0 %v1237
        %1319 = vmatprep.subr.mxu0 0.0
        %1320 = vmatpush1.msra.mxu0 %v1236
        %1321 = vmatprep.subr.mxu0 0.0
        %1322 = vmatpush1.msra.mxu0 %v1235
        %1323 = vmatprep.subr.mxu0 0.0
        %1324 = vmatpush1.msra.mxu0 %v1234
        %1325 = vmatprep.subr.mxu0 0.0
        %1326 = vmatpush2.msra.mxu0 0.0
        %1327 = vmatprep.subr.mxu0 0.0
        %1328 = vmatpush2.msra.mxu0 0.0
        %1329 = vmatprep.subr.mxu0 0.0
        %1330 = vmatpush2.msra.mxu0 0.0
        %1331 = vmatprep.subr.mxu0 0.0
        %1332 = vmatpush2.msra.mxu0 0.0
        %1333 = vmatprep.subr.mxu0 0.0
        %1334 = vmatpush2.msra.mxu0 0.0
        %1335 = vmatprep.subr.mxu0 0.0
        %1336 = vmatpush2.msra.mxu0 0.0
        %1337 = vmatprep.subr.mxu0 0.0
        %1338 = vmatpush2.msra.mxu0 0.0
        %1339 = vmatprep.subr.mxu0 0.0
        %1340 = vmatpush2.msra.mxu0 0.0
        %1341 = vmatprep.subr.mxu0 0.0
        %1342 = vmatpush2.msra.mxu0 0.0
        %1343 = vmatprep.subr.mxu0 0.0
        %1344 = vmatpush2.msra.mxu0 0.0
        %1345 = vmatprep.subr.mxu0 0.0
        %1346 = vmatpush2.msra.mxu0 0.0
        %1347 = vmatprep.subr.mxu0 0.0
        %1348 = vmatpush2.msra.mxu0 0.0
        %1349 = vmatprep.subr.mxu0 0.0
        %1350 = vmatpush2.msra.mxu0 0.0
        %1351 = vmatprep.subr.mxu0 0.0
        %1352 = vmatpush2.msra.mxu0 0.0
        %1353 = vmatprep.subr.mxu0 0.0
        %1354 = vmatpush2.msra.mxu0 0.0
        %1355 = vmatprep.subr.mxu0 0.0
        %1356 = vmatpush2.msra.mxu0 0.0
        %1357 = vmatprep.mubr.f32.mxu0 0.0
        %1358 = vmatmul.mubr.f32.gmra.mxu0 %v1246
        %v1359 = vpop.f32.mrf.mxu0
        %v1360 = vadd.f32 %v1243, %v1359
        %v1361 = vpop.f32.mrf.mxu0
        %1362 = vmatprep.mubr.f32.mxu0 0.0
        %1363 = vmatmul.mubr.f32.gmra.mxu0 %v1249
        %v1364 = vpop.f32.mrf.mxu0
        %v1365 = vadd.f32 %v1243, %v1364
        %v1366 = vpop.f32.mrf.mxu0
        %1367 = vmatprep.mubr.f32.mxu0 0.0
        %1368 = vmatmul.mubr.f32.gmra.mxu0 %v1252
        %v1369 = vpop.f32.mrf.mxu0
        %v1370 = vadd.f32 %v1243, %v1369
        %v1371 = vpop.f32.mrf.mxu0
        %1372 = vmatprep.mubr.f32.mxu0 0.0
        %1373 = vmatmul.mubr.f32.gmra.mxu0 %v1255
        %v1374 = vpop.f32.mrf.mxu0
        %v1375 = vadd.f32 %v1243, %v1374
        %v1376 = vpop.f32.mrf.mxu0
        %1377 = vmatprep.mubr.f32.mxu0 0.0
        %1378 = vmatmul.mubr.f32.gmra.mxu0 %v1258
        %v1379 = vpop.f32.mrf.mxu0
        %v1380 = vadd.f32 %v1243, %v1379
        %v1381 = vpop.f32.mrf.mxu0
        %1382 = vmatprep.mubr.f32.mxu0 0.0
        %1383 = vmatmul.mubr.f32.gmra.mxu0 %v1261
        %v1384 = vpop.f32.mrf.mxu0
        %v1385 = vadd.f32 %v1243, %v1384
        %v1386 = vpop.f32.mrf.mxu0
        %1387 = vmatprep.mubr.f32.mxu0 0.0
        %1388 = vmatmul.mubr.f32.gmra.mxu0 %v1264
        %v1389 = vpop.f32.mrf.mxu0
        %v1390 = vadd.f32 %v1243, %v1389
        %v1391 = vpop.f32.mrf.mxu0
        %1392 = vmatprep.mubr.f32.mxu0 0.0
        %1393 = vmatmul.mubr.f32.gmra.mxu0 %v1267
        %v1394 = vpop.f32.mrf.mxu0
        %v1395 = vadd.f32 %v1243, %v1394
        %v1396 = vpop.f32.mrf.mxu0
        %1397 = vmatprep.mubr.f32.mxu0 0.0
        %1398 = vmatmul.mubr.f32.gmra.mxu0 %v1270
        %v1399 = vpop.f32.mrf.mxu0
        %v1400 = vadd.f32 %v1243, %v1399
        %v1401 = vpop.f32.mrf.mxu0
        %1402 = vmatprep.mubr.f32.mxu0 0.0
        %1403 = vmatmul.mubr.f32.gmra.mxu0 %v1273
        %v1404 = vpop.f32.mrf.mxu0
        %v1405 = vadd.f32 %v1243, %v1404
        %v1406 = vpop.f32.mrf.mxu0
        %1407 = vmatprep.mubr.f32.mxu0 0.0
        %1408 = vmatmul.mubr.f32.gmra.mxu0 %v1276
        %v1409 = vpop.f32.mrf.mxu0
        %v1410 = vadd.f32 %v1243, %v1409
        %v1411 = vpop.f32.mrf.mxu0
        %1412 = vmatprep.mubr.f32.mxu0 0.0
        %1413 = vmatmul.mubr.f32.gmra.mxu0 %v1279
        %v1414 = vpop.f32.mrf.mxu0
        %v1415 = vadd.f32 %v1243, %v1414
        %v1416 = vpop.f32.mrf.mxu0
        %1417 = vmatprep.mubr.f32.mxu0 0.0
        %1418 = vmatmul.mubr.f32.gmra.mxu0 %v1282
        %v1419 = vpop.f32.mrf.mxu0
        %v1420 = vadd.f32 %v1243, %v1419
        %v1421 = vpop.f32.mrf.mxu0
        %1422 = vmatprep.mubr.f32.mxu0 0.0
        %1423 = vmatmul.mubr.f32.gmra.mxu0 %v1285
        %v1424 = vpop.f32.mrf.mxu0
        %v1425 = vadd.f32 %v1243, %v1424
        %v1426 = vpop.f32.mrf.mxu0
        %1427 = vmatprep.mubr.f32.mxu0 0.0
        %1428 = vmatmul.mubr.f32.gmra.mxu0 %v1288
        %v1429 = vpop.f32.mrf.mxu0
        %v1430 = vadd.f32 %v1243, %v1429
        %v1431 = vpop.f32.mrf.mxu0
        %1432 = vmatprep.mubr.f32.mxu0 0.0
        %1433 = vmatmul.mubr.f32.gmra.mxu0 %v1291
        %v1434 = vpop.f32.mrf.mxu0
        %v1435 = vadd.f32 %v1243, %v1434
        %v1436 = vpop.f32.mrf.mxu0
        %1437 = vdwg.mxu0
        %v1438 = vsub.f32 %v334, %v1360
        %v1439 = vsub.f32 %v335, %v1365
        %v1440 = vsub.f32 %v336, %v1370
        %v1441 = vsub.f32 %v337, %v1375
        %v1442 = vsub.f32 %v338, %v1380
        %v1443 = vsub.f32 %v339, %v1385
        %v1444 = vsub.f32 %v340, %v1390
        %v1445 = vsub.f32 %v341, %v1395
        %v1446 = vsub.f32 %v342, %v1400
        %v1447 = vsub.f32 %v343, %v1405
        %v1448 = vsub.f32 %v344, %v1410
        %v1449 = vsub.f32 %v345, %v1415
        %v1450 = vsub.f32 %v346, %v1420
        %v1451 = vsub.f32 %v347, %v1425
        %v1452 = vsub.f32 %v348, %v1430
        %v1453 = vsub.f32 %v349, %v1435
        %s1454 = scalar_lea.vmem %s1, 16
        %v1455 = vld [vmem:[%s1454] sm:$0xff]
        %v1456 = vld [vmem:[%s1454 + $0x8] sm:$0xff]
        %s1457 = scalar_lea.vmem %s2, 1
        %v1458 = vld [vmem:[%s1457] sm:$0x1]
        %v1460 = vlaneseq
        %v1461 = vshrl.u32 %v1460, 7
        %v1462 = vsub.s32 0, %v1461
        %v1463 = vrot.slane %v1458, %v1462
        %v1466 = vsel %vm359, %v1438, 0
        %v1469 = vsel %vm359, %v1439, 0
        %v1472 = vsel %vm359, %v1440, 0
        %v1475 = vsel %vm359, %v1441, 0
        %v1478 = vsel %vm359, %v1442, 0
        %v1481 = vsel %vm359, %v1443, 0
        %v1484 = vsel %vm359, %v1444, 0
        %v1487 = vsel %vm359, %v1445, 0
        %v1490 = vsel %vm359, %v1446, 0
        %v1493 = vsel %vm359, %v1447, 0
        %v1496 = vsel %vm359, %v1448, 0
        %v1499 = vsel %vm359, %v1449, 0
        %v1502 = vsel %vm359, %v1450, 0
        %v1505 = vsel %vm359, %v1451, 0
        %v1508 = vsel %vm359, %v1452, 0
        %v1511 = vsel %vm359, %v1453, 0
        %1513 = vmatprep.subr.mxu0 0.0
        %1514 = vmatpush1.msra.mxu0 0.0
        %1515 = vmatprep.subr.mxu0 0.0
        %1516 = vmatpush1.msra.mxu0 0.0
        %1517 = vmatprep.subr.mxu0 0.0
        %1518 = vmatpush1.msra.mxu0 0.0
        %1519 = vmatprep.subr.mxu0 0.0
        %1520 = vmatpush1.msra.mxu0 0.0
        %1521 = vmatprep.subr.mxu0 0.0
        %1522 = vmatpush1.msra.mxu0 0.0
        %1523 = vmatprep.subr.mxu0 0.0
        %1524 = vmatpush1.msra.mxu0 0.0
        %1525 = vmatprep.subr.mxu0 0.0
        %1526 = vmatpush1.msra.mxu0 0.0
        %1527 = vmatprep.subr.mxu0 0.0
        %1528 = vmatpush1.msra.mxu0 0.0
        %1529 = vmatprep.subr.mxu0 0.0
        %1530 = vmatpush1.msra.mxu0 0.0
        %1531 = vmatprep.subr.mxu0 0.0
        %1532 = vmatpush1.msra.mxu0 0.0
        %1533 = vmatprep.subr.mxu0 0.0
        %1534 = vmatpush1.msra.mxu0 0.0
        %1535 = vmatprep.subr.mxu0 0.0
        %1536 = vmatpush1.msra.mxu0 0.0
        %1537 = vmatprep.subr.mxu0 0.0
        %1538 = vmatpush1.msra.mxu0 0.0
        %1539 = vmatprep.subr.mxu0 0.0
        %1540 = vmatpush1.msra.mxu0 0.0
        %1541 = vmatprep.subr.mxu0 0.0
        %1542 = vmatpush1.msra.mxu0 %v1456
        %1543 = vmatprep.subr.mxu0 0.0
        %1544 = vmatpush1.msra.mxu0 %v1455
        %1545 = vmatprep.subr.mxu0 0.0
        %1546 = vmatpush2.msra.mxu0 0.0
        %1547 = vmatprep.subr.mxu0 0.0
        %1548 = vmatpush2.msra.mxu0 0.0
        %1549 = vmatprep.subr.mxu0 0.0
        %1550 = vmatpush2.msra.mxu0 0.0
        %1551 = vmatprep.subr.mxu0 0.0
        %1552 = vmatpush2.msra.mxu0 0.0
        %1553 = vmatprep.subr.mxu0 0.0
        %1554 = vmatpush2.msra.mxu0 0.0
        %1555 = vmatprep.subr.mxu0 0.0
        %1556 = vmatpush2.msra.mxu0 0.0
        %1557 = vmatprep.subr.mxu0 0.0
        %1558 = vmatpush2.msra.mxu0 0.0
        %1559 = vmatprep.subr.mxu0 0.0
        %1560 = vmatpush2.msra.mxu0 0.0
        %1561 = vmatprep.subr.mxu0 0.0
        %1562 = vmatpush2.msra.mxu0 0.0
        %1563 = vmatprep.subr.mxu0 0.0
        %1564 = vmatpush2.msra.mxu0 0.0
        %1565 = vmatprep.subr.mxu0 0.0
        %1566 = vmatpush2.msra.mxu0 0.0
        %1567 = vmatprep.subr.mxu0 0.0
        %1568 = vmatpush2.msra.mxu0 0.0
        %1569 = vmatprep.subr.mxu0 0.0
        %1570 = vmatpush2.msra.mxu0 0.0
        %1571 = vmatprep.subr.mxu0 0.0
        %1572 = vmatpush2.msra.mxu0 0.0
        %1573 = vmatprep.subr.mxu0 0.0
        %1574 = vmatpush2.msra.mxu0 0.0
        %1575 = vmatprep.subr.mxu0 0.0
        %1576 = vmatpush2.msra.mxu0 0.0
        %1577 = vmatprep.mubr.f32.mxu0 0.0
        %1578 = vmatmul.mubr.f32.gmra.mxu0 %v1466
        %v1579 = vpop.f32.mrf.mxu0
        %v1580 = vadd.f32 %v1463, %v1579
        %v1581 = vpop.f32.mrf.mxu0
        %1582 = vmatprep.mubr.f32.mxu0 0.0
        %1583 = vmatmul.mubr.f32.gmra.mxu0 %v1469
        %v1584 = vpop.f32.mrf.mxu0
        %v1585 = vadd.f32 %v1463, %v1584
        %v1586 = vpop.f32.mrf.mxu0
        %1587 = vmatprep.mubr.f32.mxu0 0.0
        %1588 = vmatmul.mubr.f32.gmra.mxu0 %v1472
        %v1589 = vpop.f32.mrf.mxu0
        %v1590 = vadd.f32 %v1463, %v1589
        %v1591 = vpop.f32.mrf.mxu0
        %1592 = vmatprep.mubr.f32.mxu0 0.0
        %1593 = vmatmul.mubr.f32.gmra.mxu0 %v1475
        %v1594 = vpop.f32.mrf.mxu0
        %v1595 = vadd.f32 %v1463, %v1594
        %v1596 = vpop.f32.mrf.mxu0
        %1597 = vmatprep.mubr.f32.mxu0 0.0
        %1598 = vmatmul.mubr.f32.gmra.mxu0 %v1478
        %v1599 = vpop.f32.mrf.mxu0
        %v1600 = vadd.f32 %v1463, %v1599
        %v1601 = vpop.f32.mrf.mxu0
        %1602 = vmatprep.mubr.f32.mxu0 0.0
        %1603 = vmatmul.mubr.f32.gmra.mxu0 %v1481
        %v1604 = vpop.f32.mrf.mxu0
        %v1605 = vadd.f32 %v1463, %v1604
        %v1606 = vpop.f32.mrf.mxu0
        %1607 = vmatprep.mubr.f32.mxu0 0.0
        %1608 = vmatmul.mubr.f32.gmra.mxu0 %v1484
        %v1609 = vpop.f32.mrf.mxu0
        %v1610 = vadd.f32 %v1463, %v1609
        %v1611 = vpop.f32.mrf.mxu0
        %1612 = vmatprep.mubr.f32.mxu0 0.0
        %1613 = vmatmul.mubr.f32.gmra.mxu0 %v1487
        %v1614 = vpop.f32.mrf.mxu0
        %v1615 = vadd.f32 %v1463, %v1614
        %v1616 = vpop.f32.mrf.mxu0
        %1617 = vmatprep.mubr.f32.mxu0 0.0
        %1618 = vmatmul.mubr.f32.gmra.mxu0 %v1490
        %v1619 = vpop.f32.mrf.mxu0
        %v1620 = vadd.f32 %v1463, %v1619
        %v1621 = vpop.f32.mrf.mxu0
        %1622 = vmatprep.mubr.f32.mxu0 0.0
        %1623 = vmatmul.mubr.f32.gmra.mxu0 %v1493
        %v1624 = vpop.f32.mrf.mxu0
        %v1625 = vadd.f32 %v1463, %v1624
        %v1626 = vpop.f32.mrf.mxu0
        %1627 = vmatprep.mubr.f32.mxu0 0.0
        %1628 = vmatmul.mubr.f32.gmra.mxu0 %v1496
        %v1629 = vpop.f32.mrf.mxu0
        %v1630 = vadd.f32 %v1463, %v1629
        %v1631 = vpop.f32.mrf.mxu0
        %1632 = vmatprep.mubr.f32.mxu0 0.0
        %1633 = vmatmul.mubr.f32.gmra.mxu0 %v1499
        %v1634 = vpop.f32.mrf.mxu0
        %v1635 = vadd.f32 %v1463, %v1634
        %v1636 = vpop.f32.mrf.mxu0
        %1637 = vmatprep.mubr.f32.mxu0 0.0
        %1638 = vmatmul.mubr.f32.gmra.mxu0 %v1502
        %v1639 = vpop.f32.mrf.mxu0
        %v1640 = vadd.f32 %v1463, %v1639
        %v1641 = vpop.f32.mrf.mxu0
        %1642 = vmatprep.mubr.f32.mxu0 0.0
        %1643 = vmatmul.mubr.f32.gmra.mxu0 %v1505
        %v1644 = vpop.f32.mrf.mxu0
        %v1645 = vadd.f32 %v1463, %v1644
        %v1646 = vpop.f32.mrf.mxu0
        %1647 = vmatprep.mubr.f32.mxu0 0.0
        %1648 = vmatmul.mubr.f32.gmra.mxu0 %v1508
        %v1649 = vpop.f32.mrf.mxu0
        %v1650 = vadd.f32 %v1463, %v1649
        %v1651 = vpop.f32.mrf.mxu0
        %1652 = vmatprep.mubr.f32.mxu0 0.0
        %1653 = vmatmul.mubr.f32.gmra.mxu0 %v1511
        %v1654 = vpop.f32.mrf.mxu0
        %v1655 = vadd.f32 %v1463, %v1654
        %v1656 = vpop.f32.mrf.mxu0
        %1657 = vdwg.mxu0
        %v1658 = vmax.f32 %v1580, 0.0
        %v1659 = vmax.f32 %v1585, 0.0
        %v1660 = vmax.f32 %v1590, 0.0
        %v1661 = vmax.f32 %v1595, 0.0
        %v1662 = vmax.f32 %v1600, 0.0
        %v1663 = vmax.f32 %v1605, 0.0
        %v1664 = vmax.f32 %v1610, 0.0
        %v1665 = vmax.f32 %v1615, 0.0
        %v1666 = vmax.f32 %v1620, 0.0
        %v1667 = vmax.f32 %v1625, 0.0
        %v1668 = vmax.f32 %v1630, 0.0
        %v1669 = vmax.f32 %v1635, 0.0
        %v1670 = vmax.f32 %v1640, 0.0
        %v1671 = vmax.f32 %v1645, 0.0
        %v1672 = vmax.f32 %v1650, 0.0
        %v1673 = vmax.f32 %v1655, 0.0
        %s1674 = scalar_lea.vmem %s3, 96
        %v1675 = vld [vmem:[%s1674] sm:$0xff]
        %v1676 = vld [vmem:[%s1674 + $0x8] sm:$0xff]
        %v1677 = vld [vmem:[%s1674 + $0x10] sm:$0xff]
        %v1678 = vld [vmem:[%s1674 + $0x18] sm:$0xff]
        %s1679 = scalar_lea.vmem %s4, 3
        %v1680 = vld [vmem:[%s1679] sm:$0x1]
        %v1682 = vlaneseq
        %v1683 = vshrl.u32 %v1682, 7
        %v1684 = vsub.s32 0, %v1683
        %v1685 = vrot.slane %v1680, %v1684
        %v1688 = vsel %vm580, %v1658, 0
        %v1691 = vsel %vm580, %v1659, 0
        %v1694 = vsel %vm580, %v1660, 0
        %v1697 = vsel %vm580, %v1661, 0
        %v1700 = vsel %vm580, %v1662, 0
        %v1703 = vsel %vm580, %v1663, 0
        %v1706 = vsel %vm580, %v1664, 0
        %v1709 = vsel %vm580, %v1665, 0
        %v1712 = vsel %vm580, %v1666, 0
        %v1715 = vsel %vm580, %v1667, 0
        %v1718 = vsel %vm580, %v1668, 0
        %v1721 = vsel %vm580, %v1669, 0
        %v1724 = vsel %vm580, %v1670, 0
        %v1727 = vsel %vm580, %v1671, 0
        %v1730 = vsel %vm580, %v1672, 0
        %v1733 = vsel %vm580, %v1673, 0
        %1735 = vmatprep.subr.mxu0 0.0
        %1736 = vmatpush1.msra.mxu0 0.0
        %1737 = vmatprep.subr.mxu0 0.0
        %1738 = vmatpush1.msra.mxu0 0.0
        %1739 = vmatprep.subr.mxu0 0.0
        %1740 = vmatpush1.msra.mxu0 0.0
        %1741 = vmatprep.subr.mxu0 0.0
        %1742 = vmatpush1.msra.mxu0 0.0
        %1743 = vmatprep.subr.mxu0 0.0
        %1744 = vmatpush1.msra.mxu0 0.0
        %1745 = vmatprep.subr.mxu0 0.0
        %1746 = vmatpush1.msra.mxu0 0.0
        %1747 = vmatprep.subr.mxu0 0.0
        %1748 = vmatpush1.msra.mxu0 0.0
        %1749 = vmatprep.subr.mxu0 0.0
        %1750 = vmatpush1.msra.mxu0 0.0
        %1751 = vmatprep.subr.mxu0 0.0
        %1752 = vmatpush1.msra.mxu0 0.0
        %1753 = vmatprep.subr.mxu0 0.0
        %1754 = vmatpush1.msra.mxu0 0.0
        %1755 = vmatprep.subr.mxu0 0.0
        %1756 = vmatpush1.msra.mxu0 0.0
        %1757 = vmatprep.subr.mxu0 0.0
        %1758 = vmatpush1.msra.mxu0 0.0
        %1759 = vmatprep.subr.mxu0 0.0
        %1760 = vmatpush1.msra.mxu0 %v1678
        %1761 = vmatprep.subr.mxu0 0.0
        %1762 = vmatpush1.msra.mxu0 %v1677
        %1763 = vmatprep.subr.mxu0 0.0
        %1764 = vmatpush1.msra.mxu0 %v1676
        %1765 = vmatprep.subr.mxu0 0.0
        %1766 = vmatpush1.msra.mxu0 %v1675
        %1767 = vmatprep.subr.mxu0 0.0
        %1768 = vmatpush2.msra.mxu0 0.0
        %1769 = vmatprep.subr.mxu0 0.0
        %1770 = vmatpush2.msra.mxu0 0.0
        %1771 = vmatprep.subr.mxu0 0.0
        %1772 = vmatpush2.msra.mxu0 0.0
        %1773 = vmatprep.subr.mxu0 0.0
        %1774 = vmatpush2.msra.mxu0 0.0
        %1775 = vmatprep.subr.mxu0 0.0
        %1776 = vmatpush2.msra.mxu0 0.0
        %1777 = vmatprep.subr.mxu0 0.0
        %1778 = vmatpush2.msra.mxu0 0.0
        %1779 = vmatprep.subr.mxu0 0.0
        %1780 = vmatpush2.msra.mxu0 0.0
        %1781 = vmatprep.subr.mxu0 0.0
        %1782 = vmatpush2.msra.mxu0 0.0
        %1783 = vmatprep.subr.mxu0 0.0
        %1784 = vmatpush2.msra.mxu0 0.0
        %1785 = vmatprep.subr.mxu0 0.0
        %1786 = vmatpush2.msra.mxu0 0.0
        %1787 = vmatprep.subr.mxu0 0.0
        %1788 = vmatpush2.msra.mxu0 0.0
        %1789 = vmatprep.subr.mxu0 0.0
        %1790 = vmatpush2.msra.mxu0 0.0
        %1791 = vmatprep.subr.mxu0 0.0
        %1792 = vmatpush2.msra.mxu0 0.0
        %1793 = vmatprep.subr.mxu0 0.0
        %1794 = vmatpush2.msra.mxu0 0.0
        %1795 = vmatprep.subr.mxu0 0.0
        %1796 = vmatpush2.msra.mxu0 0.0
        %1797 = vmatprep.subr.mxu0 0.0
        %1798 = vmatpush2.msra.mxu0 0.0
        %1799 = vmatprep.mubr.f32.mxu0 0.0
        %1800 = vmatmul.mubr.f32.gmra.mxu0 %v1688
        %v1801 = vpop.f32.mrf.mxu0
        %v1802 = vadd.f32 %v1685, %v1801
        %v1803 = vpop.f32.mrf.mxu0
        %1804 = vmatprep.mubr.f32.mxu0 0.0
        %1805 = vmatmul.mubr.f32.gmra.mxu0 %v1691
        %v1806 = vpop.f32.mrf.mxu0
        %v1807 = vadd.f32 %v1685, %v1806
        %v1808 = vpop.f32.mrf.mxu0
        %1809 = vmatprep.mubr.f32.mxu0 0.0
        %1810 = vmatmul.mubr.f32.gmra.mxu0 %v1694
        %v1811 = vpop.f32.mrf.mxu0
        %v1812 = vadd.f32 %v1685, %v1811
        %v1813 = vpop.f32.mrf.mxu0
        %1814 = vmatprep.mubr.f32.mxu0 0.0
        %1815 = vmatmul.mubr.f32.gmra.mxu0 %v1697
        %v1816 = vpop.f32.mrf.mxu0
        %v1817 = vadd.f32 %v1685, %v1816
        %v1818 = vpop.f32.mrf.mxu0
        %1819 = vmatprep.mubr.f32.mxu0 0.0
        %1820 = vmatmul.mubr.f32.gmra.mxu0 %v1700
        %v1821 = vpop.f32.mrf.mxu0
        %v1822 = vadd.f32 %v1685, %v1821
        %v1823 = vpop.f32.mrf.mxu0
        %1824 = vmatprep.mubr.f32.mxu0 0.0
        %1825 = vmatmul.mubr.f32.gmra.mxu0 %v1703
        %v1826 = vpop.f32.mrf.mxu0
        %v1827 = vadd.f32 %v1685, %v1826
        %v1828 = vpop.f32.mrf.mxu0
        %1829 = vmatprep.mubr.f32.mxu0 0.0
        %1830 = vmatmul.mubr.f32.gmra.mxu0 %v1706
        %v1831 = vpop.f32.mrf.mxu0
        %v1832 = vadd.f32 %v1685, %v1831
        %v1833 = vpop.f32.mrf.mxu0
        %1834 = vmatprep.mubr.f32.mxu0 0.0
        %1835 = vmatmul.mubr.f32.gmra.mxu0 %v1709
        %v1836 = vpop.f32.mrf.mxu0
        %v1837 = vadd.f32 %v1685, %v1836
        %v1838 = vpop.f32.mrf.mxu0
        %1839 = vmatprep.mubr.f32.mxu0 0.0
        %1840 = vmatmul.mubr.f32.gmra.mxu0 %v1712
        %v1841 = vpop.f32.mrf.mxu0
        %v1842 = vadd.f32 %v1685, %v1841
        %v1843 = vpop.f32.mrf.mxu0
        %1844 = vmatprep.mubr.f32.mxu0 0.0
        %1845 = vmatmul.mubr.f32.gmra.mxu0 %v1715
        %v1846 = vpop.f32.mrf.mxu0
        %v1847 = vadd.f32 %v1685, %v1846
        %v1848 = vpop.f32.mrf.mxu0
        %1849 = vmatprep.mubr.f32.mxu0 0.0
        %1850 = vmatmul.mubr.f32.gmra.mxu0 %v1718
        %v1851 = vpop.f32.mrf.mxu0
        %v1852 = vadd.f32 %v1685, %v1851
        %v1853 = vpop.f32.mrf.mxu0
        %1854 = vmatprep.mubr.f32.mxu0 0.0
        %1855 = vmatmul.mubr.f32.gmra.mxu0 %v1721
        %v1856 = vpop.f32.mrf.mxu0
        %v1857 = vadd.f32 %v1685, %v1856
        %v1858 = vpop.f32.mrf.mxu0
        %1859 = vmatprep.mubr.f32.mxu0 0.0
        %1860 = vmatmul.mubr.f32.gmra.mxu0 %v1724
        %v1861 = vpop.f32.mrf.mxu0
        %v1862 = vadd.f32 %v1685, %v1861
        %v1863 = vpop.f32.mrf.mxu0
        %1864 = vmatprep.mubr.f32.mxu0 0.0
        %1865 = vmatmul.mubr.f32.gmra.mxu0 %v1727
        %v1866 = vpop.f32.mrf.mxu0
        %v1867 = vadd.f32 %v1685, %v1866
        %v1868 = vpop.f32.mrf.mxu0
        %1869 = vmatprep.mubr.f32.mxu0 0.0
        %1870 = vmatmul.mubr.f32.gmra.mxu0 %v1730
        %v1871 = vpop.f32.mrf.mxu0
        %v1872 = vadd.f32 %v1685, %v1871
        %v1873 = vpop.f32.mrf.mxu0
        %1874 = vmatprep.mubr.f32.mxu0 0.0
        %1875 = vmatmul.mubr.f32.gmra.mxu0 %v1733
        %v1876 = vpop.f32.mrf.mxu0
        %v1877 = vadd.f32 %v1685, %v1876
        %v1878 = vpop.f32.mrf.mxu0
        %1879 = vdwg.mxu0
        %v1880 = vmax.f32 %v1802, 0.0
        %v1881 = vmax.f32 %v1807, 0.0
        %v1882 = vmax.f32 %v1812, 0.0
        %v1883 = vmax.f32 %v1817, 0.0
        %v1884 = vmax.f32 %v1822, 0.0
        %v1885 = vmax.f32 %v1827, 0.0
        %v1886 = vmax.f32 %v1832, 0.0
        %v1887 = vmax.f32 %v1837, 0.0
        %v1888 = vmax.f32 %v1842, 0.0
        %v1889 = vmax.f32 %v1847, 0.0
        %v1890 = vmax.f32 %v1852, 0.0
        %v1891 = vmax.f32 %v1857, 0.0
        %v1892 = vmax.f32 %v1862, 0.0
        %v1893 = vmax.f32 %v1867, 0.0
        %v1894 = vmax.f32 %v1872, 0.0
        %v1895 = vmax.f32 %v1877, 0.0
        %s1896 = scalar_lea.vmem %s3, 128
        %v1897 = vld [vmem:[%s1896] sm:$0xff]
        %v1898 = vld [vmem:[%s1896 + $0x8] sm:$0xff]
        %v1899 = vld [vmem:[%s1896 + $0x10] sm:$0xff]
        %v1900 = vld [vmem:[%s1896 + $0x18] sm:$0xff]
        %s1901 = scalar_lea.vmem %s4, 4
        %v1902 = vld [vmem:[%s1901] sm:$0x1]
        %v1904 = vlaneseq
        %v1905 = vshrl.u32 %v1904, 7
        %v1906 = vsub.s32 0, %v1905
        %v1907 = vrot.slane %v1902, %v1906
        %v1910 = vsel %vm580, %v1880, 0
        %v1913 = vsel %vm580, %v1881, 0
        %v1916 = vsel %vm580, %v1882, 0
        %v1919 = vsel %vm580, %v1883, 0
        %v1922 = vsel %vm580, %v1884, 0
        %v1925 = vsel %vm580, %v1885, 0
        %v1928 = vsel %vm580, %v1886, 0
        %v1931 = vsel %vm580, %v1887, 0
        %v1934 = vsel %vm580, %v1888, 0
        %v1937 = vsel %vm580, %v1889, 0
        %v1940 = vsel %vm580, %v1890, 0
        %v1943 = vsel %vm580, %v1891, 0
        %v1946 = vsel %vm580, %v1892, 0
        %v1949 = vsel %vm580, %v1893, 0
        %v1952 = vsel %vm580, %v1894, 0
        %v1955 = vsel %vm580, %v1895, 0
        %1957 = vmatprep.subr.mxu0 0.0
        %1958 = vmatpush1.msra.mxu0 0.0
        %1959 = vmatprep.subr.mxu0 0.0
        %1960 = vmatpush1.msra.mxu0 0.0
        %1961 = vmatprep.subr.mxu0 0.0
        %1962 = vmatpush1.msra.mxu0 0.0
        %1963 = vmatprep.subr.mxu0 0.0
        %1964 = vmatpush1.msra.mxu0 0.0
        %1965 = vmatprep.subr.mxu0 0.0
        %1966 = vmatpush1.msra.mxu0 0.0
        %1967 = vmatprep.subr.mxu0 0.0
        %1968 = vmatpush1.msra.mxu0 0.0
        %1969 = vmatprep.subr.mxu0 0.0
        %1970 = vmatpush1.msra.mxu0 0.0
        %1971 = vmatprep.subr.mxu0 0.0
        %1972 = vmatpush1.msra.mxu0 0.0
        %1973 = vmatprep.subr.mxu0 0.0
        %1974 = vmatpush1.msra.mxu0 0.0
        %1975 = vmatprep.subr.mxu0 0.0
        %1976 = vmatpush1.msra.mxu0 0.0
        %1977 = vmatprep.subr.mxu0 0.0
        %1978 = vmatpush1.msra.mxu0 0.0
        %1979 = vmatprep.subr.mxu0 0.0
        %1980 = vmatpush1.msra.mxu0 0.0
        %1981 = vmatprep.subr.mxu0 0.0
        %1982 = vmatpush1.msra.mxu0 %v1900
        %1983 = vmatprep.subr.mxu0 0.0
        %1984 = vmatpush1.msra.mxu0 %v1899
        %1985 = vmatprep.subr.mxu0 0.0
        %1986 = vmatpush1.msra.mxu0 %v1898
        %1987 = vmatprep.subr.mxu0 0.0
        %1988 = vmatpush1.msra.mxu0 %v1897
        %1989 = vmatprep.subr.mxu0 0.0
        %1990 = vmatpush2.msra.mxu0 0.0
        %1991 = vmatprep.subr.mxu0 0.0
        %1992 = vmatpush2.msra.mxu0 0.0
        %1993 = vmatprep.subr.mxu0 0.0
        %1994 = vmatpush2.msra.mxu0 0.0
        %1995 = vmatprep.subr.mxu0 0.0
        %1996 = vmatpush2.msra.mxu0 0.0
        %1997 = vmatprep.subr.mxu0 0.0
        %1998 = vmatpush2.msra.mxu0 0.0
        %1999 = vmatprep.subr.mxu0 0.0
        %2000 = vmatpush2.msra.mxu0 0.0
        %2001 = vmatprep.subr.mxu0 0.0
        %2002 = vmatpush2.msra.mxu0 0.0
        %2003 = vmatprep.subr.mxu0 0.0
        %2004 = vmatpush2.msra.mxu0 0.0
        %2005 = vmatprep.subr.mxu0 0.0
        %2006 = vmatpush2.msra.mxu0 0.0
        %2007 = vmatprep.subr.mxu0 0.0
        %2008 = vmatpush2.msra.mxu0 0.0
        %2009 = vmatprep.subr.mxu0 0.0
        %2010 = vmatpush2.msra.mxu0 0.0
        %2011 = vmatprep.subr.mxu0 0.0
        %2012 = vmatpush2.msra.mxu0 0.0
        %2013 = vmatprep.subr.mxu0 0.0
        %2014 = vmatpush2.msra.mxu0 0.0
        %2015 = vmatprep.subr.mxu0 0.0
        %2016 = vmatpush2.msra.mxu0 0.0
        %2017 = vmatprep.subr.mxu0 0.0
        %2018 = vmatpush2.msra.mxu0 0.0
        %2019 = vmatprep.subr.mxu0 0.0
        %2020 = vmatpush2.msra.mxu0 0.0
        %2021 = vmatprep.mubr.f32.mxu0 0.0
        %2022 = vmatmul.mubr.f32.gmra.mxu0 %v1910
        %v2023 = vpop.f32.mrf.mxu0
        %v2024 = vadd.f32 %v1907, %v2023
        %v2025 = vpop.f32.mrf.mxu0
        %2026 = vmatprep.mubr.f32.mxu0 0.0
        %2027 = vmatmul.mubr.f32.gmra.mxu0 %v1913
        %v2028 = vpop.f32.mrf.mxu0
        %v2029 = vadd.f32 %v1907, %v2028
        %v2030 = vpop.f32.mrf.mxu0
        %2031 = vmatprep.mubr.f32.mxu0 0.0
        %2032 = vmatmul.mubr.f32.gmra.mxu0 %v1916
        %v2033 = vpop.f32.mrf.mxu0
        %v2034 = vadd.f32 %v1907, %v2033
        %v2035 = vpop.f32.mrf.mxu0
        %2036 = vmatprep.mubr.f32.mxu0 0.0
        %2037 = vmatmul.mubr.f32.gmra.mxu0 %v1919
        %v2038 = vpop.f32.mrf.mxu0
        %v2039 = vadd.f32 %v1907, %v2038
        %v2040 = vpop.f32.mrf.mxu0
        %2041 = vmatprep.mubr.f32.mxu0 0.0
        %2042 = vmatmul.mubr.f32.gmra.mxu0 %v1922
        %v2043 = vpop.f32.mrf.mxu0
        %v2044 = vadd.f32 %v1907, %v2043
        %v2045 = vpop.f32.mrf.mxu0
        %2046 = vmatprep.mubr.f32.mxu0 0.0
        %2047 = vmatmul.mubr.f32.gmra.mxu0 %v1925
        %v2048 = vpop.f32.mrf.mxu0
        %v2049 = vadd.f32 %v1907, %v2048
        %v2050 = vpop.f32.mrf.mxu0
        %2051 = vmatprep.mubr.f32.mxu0 0.0
        %2052 = vmatmul.mubr.f32.gmra.mxu0 %v1928
        %v2053 = vpop.f32.mrf.mxu0
        %v2054 = vadd.f32 %v1907, %v2053
        %v2055 = vpop.f32.mrf.mxu0
        %2056 = vmatprep.mubr.f32.mxu0 0.0
        %2057 = vmatmul.mubr.f32.gmra.mxu0 %v1931
        %v2058 = vpop.f32.mrf.mxu0
        %v2059 = vadd.f32 %v1907, %v2058
        %v2060 = vpop.f32.mrf.mxu0
        %2061 = vmatprep.mubr.f32.mxu0 0.0
        %2062 = vmatmul.mubr.f32.gmra.mxu0 %v1934
        %v2063 = vpop.f32.mrf.mxu0
        %v2064 = vadd.f32 %v1907, %v2063
        %v2065 = vpop.f32.mrf.mxu0
        %2066 = vmatprep.mubr.f32.mxu0 0.0
        %2067 = vmatmul.mubr.f32.gmra.mxu0 %v1937
        %v2068 = vpop.f32.mrf.mxu0
        %v2069 = vadd.f32 %v1907, %v2068
        %v2070 = vpop.f32.mrf.mxu0
        %2071 = vmatprep.mubr.f32.mxu0 0.0
        %2072 = vmatmul.mubr.f32.gmra.mxu0 %v1940
        %v2073 = vpop.f32.mrf.mxu0
        %v2074 = vadd.f32 %v1907, %v2073
        %v2075 = vpop.f32.mrf.mxu0
        %2076 = vmatprep.mubr.f32.mxu0 0.0
        %2077 = vmatmul.mubr.f32.gmra.mxu0 %v1943
        %v2078 = vpop.f32.mrf.mxu0
        %v2079 = vadd.f32 %v1907, %v2078
        %v2080 = vpop.f32.mrf.mxu0
        %2081 = vmatprep.mubr.f32.mxu0 0.0
        %2082 = vmatmul.mubr.f32.gmra.mxu0 %v1946
        %v2083 = vpop.f32.mrf.mxu0
        %v2084 = vadd.f32 %v1907, %v2083
        %v2085 = vpop.f32.mrf.mxu0
        %2086 = vmatprep.mubr.f32.mxu0 0.0
        %2087 = vmatmul.mubr.f32.gmra.mxu0 %v1949
        %v2088 = vpop.f32.mrf.mxu0
        %v2089 = vadd.f32 %v1907, %v2088
        %v2090 = vpop.f32.mrf.mxu0
        %2091 = vmatprep.mubr.f32.mxu0 0.0
        %2092 = vmatmul.mubr.f32.gmra.mxu0 %v1952
        %v2093 = vpop.f32.mrf.mxu0
        %v2094 = vadd.f32 %v1907, %v2093
        %v2095 = vpop.f32.mrf.mxu0
        %2096 = vmatprep.mubr.f32.mxu0 0.0
        %2097 = vmatmul.mubr.f32.gmra.mxu0 %v1955
        %v2098 = vpop.f32.mrf.mxu0
        %v2099 = vadd.f32 %v1907, %v2098
        %v2100 = vpop.f32.mrf.mxu0
        %2101 = vdwg.mxu0
        %v2102 = vmax.f32 %v2024, 0.0
        %v2103 = vmax.f32 %v2029, 0.0
        %v2104 = vmax.f32 %v2034, 0.0
        %v2105 = vmax.f32 %v2039, 0.0
        %v2106 = vmax.f32 %v2044, 0.0
        %v2107 = vmax.f32 %v2049, 0.0
        %v2108 = vmax.f32 %v2054, 0.0
        %v2109 = vmax.f32 %v2059, 0.0
        %v2110 = vmax.f32 %v2064, 0.0
        %v2111 = vmax.f32 %v2069, 0.0
        %v2112 = vmax.f32 %v2074, 0.0
        %v2113 = vmax.f32 %v2079, 0.0
        %v2114 = vmax.f32 %v2084, 0.0
        %v2115 = vmax.f32 %v2089, 0.0
        %v2116 = vmax.f32 %v2094, 0.0
        %v2117 = vmax.f32 %v2099, 0.0
        %s2118 = scalar_lea.vmem %s3, 160
        %v2119 = vld [vmem:[%s2118] sm:$0xff]
        %v2120 = vld [vmem:[%s2118 + $0x8] sm:$0xff]
        %v2121 = vld [vmem:[%s2118 + $0x10] sm:$0xff]
        %v2122 = vld [vmem:[%s2118 + $0x18] sm:$0xff]
        %s2123 = scalar_lea.vmem %s4, 5
        %v2124 = vld [vmem:[%s2123] sm:$0x1]
        %v2126 = vlaneseq
        %v2127 = vshrl.u32 %v2126, 7
        %v2128 = vsub.s32 0, %v2127
        %v2129 = vrot.slane %v2124, %v2128
        %v2132 = vsel %vm580, %v2102, 0
        %v2135 = vsel %vm580, %v2103, 0
        %v2138 = vsel %vm580, %v2104, 0
        %v2141 = vsel %vm580, %v2105, 0
        %v2144 = vsel %vm580, %v2106, 0
        %v2147 = vsel %vm580, %v2107, 0
        %v2150 = vsel %vm580, %v2108, 0
        %v2153 = vsel %vm580, %v2109, 0
        %v2156 = vsel %vm580, %v2110, 0
        %v2159 = vsel %vm580, %v2111, 0
        %v2162 = vsel %vm580, %v2112, 0
        %v2165 = vsel %vm580, %v2113, 0
        %v2168 = vsel %vm580, %v2114, 0
        %v2171 = vsel %vm580, %v2115, 0
        %v2174 = vsel %vm580, %v2116, 0
        %v2177 = vsel %vm580, %v2117, 0
        %2179 = vmatprep.subr.mxu0 0.0
        %2180 = vmatpush1.msra.mxu0 0.0
        %2181 = vmatprep.subr.mxu0 0.0
        %2182 = vmatpush1.msra.mxu0 0.0
        %2183 = vmatprep.subr.mxu0 0.0
        %2184 = vmatpush1.msra.mxu0 0.0
        %2185 = vmatprep.subr.mxu0 0.0
        %2186 = vmatpush1.msra.mxu0 0.0
        %2187 = vmatprep.subr.mxu0 0.0
        %2188 = vmatpush1.msra.mxu0 0.0
        %2189 = vmatprep.subr.mxu0 0.0
        %2190 = vmatpush1.msra.mxu0 0.0
        %2191 = vmatprep.subr.mxu0 0.0
        %2192 = vmatpush1.msra.mxu0 0.0
        %2193 = vmatprep.subr.mxu0 0.0
        %2194 = vmatpush1.msra.mxu0 0.0
        %2195 = vmatprep.subr.mxu0 0.0
        %2196 = vmatpush1.msra.mxu0 0.0
        %2197 = vmatprep.subr.mxu0 0.0
        %2198 = vmatpush1.msra.mxu0 0.0
        %2199 = vmatprep.subr.mxu0 0.0
        %2200 = vmatpush1.msra.mxu0 0.0
        %2201 = vmatprep.subr.mxu0 0.0
        %2202 = vmatpush1.msra.mxu0 0.0
        %2203 = vmatprep.subr.mxu0 0.0
        %2204 = vmatpush1.msra.mxu0 %v2122
        %2205 = vmatprep.subr.mxu0 0.0
        %2206 = vmatpush1.msra.mxu0 %v2121
        %2207 = vmatprep.subr.mxu0 0.0
        %2208 = vmatpush1.msra.mxu0 %v2120
        %2209 = vmatprep.subr.mxu0 0.0
        %2210 = vmatpush1.msra.mxu0 %v2119
        %2211 = vmatprep.subr.mxu0 0.0
        %2212 = vmatpush2.msra.mxu0 0.0
        %2213 = vmatprep.subr.mxu0 0.0
        %2214 = vmatpush2.msra.mxu0 0.0
        %2215 = vmatprep.subr.mxu0 0.0
        %2216 = vmatpush2.msra.mxu0 0.0
        %2217 = vmatprep.subr.mxu0 0.0
        %2218 = vmatpush2.msra.mxu0 0.0
        %2219 = vmatprep.subr.mxu0 0.0
        %2220 = vmatpush2.msra.mxu0 0.0
        %2221 = vmatprep.subr.mxu0 0.0
        %2222 = vmatpush2.msra.mxu0 0.0
        %2223 = vmatprep.subr.mxu0 0.0
        %2224 = vmatpush2.msra.mxu0 0.0
        %2225 = vmatprep.subr.mxu0 0.0
        %2226 = vmatpush2.msra.mxu0 0.0
        %2227 = vmatprep.subr.mxu0 0.0
        %2228 = vmatpush2.msra.mxu0 0.0
        %2229 = vmatprep.subr.mxu0 0.0
        %2230 = vmatpush2.msra.mxu0 0.0
        %2231 = vmatprep.subr.mxu0 0.0
        %2232 = vmatpush2.msra.mxu0 0.0
        %2233 = vmatprep.subr.mxu0 0.0
        %2234 = vmatpush2.msra.mxu0 0.0
        %2235 = vmatprep.subr.mxu0 0.0
        %2236 = vmatpush2.msra.mxu0 0.0
        %2237 = vmatprep.subr.mxu0 0.0
        %2238 = vmatpush2.msra.mxu0 0.0
        %2239 = vmatprep.subr.mxu0 0.0
        %2240 = vmatpush2.msra.mxu0 0.0
        %2241 = vmatprep.subr.mxu0 0.0
        %2242 = vmatpush2.msra.mxu0 0.0
        %2243 = vmatprep.mubr.f32.mxu0 0.0
        %2244 = vmatmul.mubr.f32.gmra.mxu0 %v2132
        %v2245 = vpop.f32.mrf.mxu0
        %v2246 = vadd.f32 %v2129, %v2245
        %v2247 = vpop.f32.mrf.mxu0
        %2248 = vmatprep.mubr.f32.mxu0 0.0
        %2249 = vmatmul.mubr.f32.gmra.mxu0 %v2135
        %v2250 = vpop.f32.mrf.mxu0
        %v2251 = vadd.f32 %v2129, %v2250
        %v2252 = vpop.f32.mrf.mxu0
        %2253 = vmatprep.mubr.f32.mxu0 0.0
        %2254 = vmatmul.mubr.f32.gmra.mxu0 %v2138
        %v2255 = vpop.f32.mrf.mxu0
        %v2256 = vadd.f32 %v2129, %v2255
        %v2257 = vpop.f32.mrf.mxu0
        %2258 = vmatprep.mubr.f32.mxu0 0.0
        %2259 = vmatmul.mubr.f32.gmra.mxu0 %v2141
        %v2260 = vpop.f32.mrf.mxu0
        %v2261 = vadd.f32 %v2129, %v2260
        %v2262 = vpop.f32.mrf.mxu0
        %2263 = vmatprep.mubr.f32.mxu0 0.0
        %2264 = vmatmul.mubr.f32.gmra.mxu0 %v2144
        %v2265 = vpop.f32.mrf.mxu0
        %v2266 = vadd.f32 %v2129, %v2265
        %v2267 = vpop.f32.mrf.mxu0
        %2268 = vmatprep.mubr.f32.mxu0 0.0
        %2269 = vmatmul.mubr.f32.gmra.mxu0 %v2147
        %v2270 = vpop.f32.mrf.mxu0
        %v2271 = vadd.f32 %v2129, %v2270
        %v2272 = vpop.f32.mrf.mxu0
        %2273 = vmatprep.mubr.f32.mxu0 0.0
        %2274 = vmatmul.mubr.f32.gmra.mxu0 %v2150
        %v2275 = vpop.f32.mrf.mxu0
        %v2276 = vadd.f32 %v2129, %v2275
        %v2277 = vpop.f32.mrf.mxu0
        %2278 = vmatprep.mubr.f32.mxu0 0.0
        %2279 = vmatmul.mubr.f32.gmra.mxu0 %v2153
        %v2280 = vpop.f32.mrf.mxu0
        %v2281 = vadd.f32 %v2129, %v2280
        %v2282 = vpop.f32.mrf.mxu0
        %2283 = vmatprep.mubr.f32.mxu0 0.0
        %2284 = vmatmul.mubr.f32.gmra.mxu0 %v2156
        %v2285 = vpop.f32.mrf.mxu0
        %v2286 = vadd.f32 %v2129, %v2285
        %v2287 = vpop.f32.mrf.mxu0
        %2288 = vmatprep.mubr.f32.mxu0 0.0
        %2289 = vmatmul.mubr.f32.gmra.mxu0 %v2159
        %v2290 = vpop.f32.mrf.mxu0
        %v2291 = vadd.f32 %v2129, %v2290
        %v2292 = vpop.f32.mrf.mxu0
        %2293 = vmatprep.mubr.f32.mxu0 0.0
        %2294 = vmatmul.mubr.f32.gmra.mxu0 %v2162
        %v2295 = vpop.f32.mrf.mxu0
        %v2296 = vadd.f32 %v2129, %v2295
        %v2297 = vpop.f32.mrf.mxu0
        %2298 = vmatprep.mubr.f32.mxu0 0.0
        %2299 = vmatmul.mubr.f32.gmra.mxu0 %v2165
        %v2300 = vpop.f32.mrf.mxu0
        %v2301 = vadd.f32 %v2129, %v2300
        %v2302 = vpop.f32.mrf.mxu0
        %2303 = vmatprep.mubr.f32.mxu0 0.0
        %2304 = vmatmul.mubr.f32.gmra.mxu0 %v2168
        %v2305 = vpop.f32.mrf.mxu0
        %v2306 = vadd.f32 %v2129, %v2305
        %v2307 = vpop.f32.mrf.mxu0
        %2308 = vmatprep.mubr.f32.mxu0 0.0
        %2309 = vmatmul.mubr.f32.gmra.mxu0 %v2171
        %v2310 = vpop.f32.mrf.mxu0
        %v2311 = vadd.f32 %v2129, %v2310
        %v2312 = vpop.f32.mrf.mxu0
        %2313 = vmatprep.mubr.f32.mxu0 0.0
        %2314 = vmatmul.mubr.f32.gmra.mxu0 %v2174
        %v2315 = vpop.f32.mrf.mxu0
        %v2316 = vadd.f32 %v2129, %v2315
        %v2317 = vpop.f32.mrf.mxu0
        %2318 = vmatprep.mubr.f32.mxu0 0.0
        %2319 = vmatmul.mubr.f32.gmra.mxu0 %v2177
        %v2320 = vpop.f32.mrf.mxu0
        %v2321 = vadd.f32 %v2129, %v2320
        %v2322 = vpop.f32.mrf.mxu0
        %2323 = vdwg.mxu0
        %v2324 = vmax.f32 %v2246, 0.0
        %v2325 = vmax.f32 %v2251, 0.0
        %v2326 = vmax.f32 %v2256, 0.0
        %v2327 = vmax.f32 %v2261, 0.0
        %v2328 = vmax.f32 %v2266, 0.0
        %v2329 = vmax.f32 %v2271, 0.0
        %v2330 = vmax.f32 %v2276, 0.0
        %v2331 = vmax.f32 %v2281, 0.0
        %v2332 = vmax.f32 %v2286, 0.0
        %v2333 = vmax.f32 %v2291, 0.0
        %v2334 = vmax.f32 %v2296, 0.0
        %v2335 = vmax.f32 %v2301, 0.0
        %v2336 = vmax.f32 %v2306, 0.0
        %v2337 = vmax.f32 %v2311, 0.0
        %v2338 = vmax.f32 %v2316, 0.0
        %v2339 = vmax.f32 %v2321, 0.0
        %s2340 = scalar_lea.vmem %s5, 32
        %v2341 = vld [vmem:[%s2340] sm:$0xff]
        %v2342 = vld [vmem:[%s2340 + $0x8] sm:$0xff]
        %v2343 = vld [vmem:[%s2340 + $0x10] sm:$0xff]
        %v2344 = vld [vmem:[%s2340 + $0x18] sm:$0xff]
        %s2345 = scalar_lea.vmem %s6, 1
        %v2346 = vld [vmem:[%s2345] sm:$0x1]
        %v2348 = vlaneseq
        %v2349 = vshrl.u32 %v2348, 7
        %v2350 = vsub.s32 0, %v2349
        %v2351 = vrot.slane %v2346, %v2350
        %v2354 = vsel %vm580, %v2324, 0
        %v2357 = vsel %vm580, %v2325, 0
        %v2360 = vsel %vm580, %v2326, 0
        %v2363 = vsel %vm580, %v2327, 0
        %v2366 = vsel %vm580, %v2328, 0
        %v2369 = vsel %vm580, %v2329, 0
        %v2372 = vsel %vm580, %v2330, 0
        %v2375 = vsel %vm580, %v2331, 0
        %v2378 = vsel %vm580, %v2332, 0
        %v2381 = vsel %vm580, %v2333, 0
        %v2384 = vsel %vm580, %v2334, 0
        %v2387 = vsel %vm580, %v2335, 0
        %v2390 = vsel %vm580, %v2336, 0
        %v2393 = vsel %vm580, %v2337, 0
        %v2396 = vsel %vm580, %v2338, 0
        %v2399 = vsel %vm580, %v2339, 0
        %2401 = vmatprep.subr.mxu0 0.0
        %2402 = vmatpush1.msra.mxu0 0.0
        %2403 = vmatprep.subr.mxu0 0.0
        %2404 = vmatpush1.msra.mxu0 0.0
        %2405 = vmatprep.subr.mxu0 0.0
        %2406 = vmatpush1.msra.mxu0 0.0
        %2407 = vmatprep.subr.mxu0 0.0
        %2408 = vmatpush1.msra.mxu0 0.0
        %2409 = vmatprep.subr.mxu0 0.0
        %2410 = vmatpush1.msra.mxu0 0.0
        %2411 = vmatprep.subr.mxu0 0.0
        %2412 = vmatpush1.msra.mxu0 0.0
        %2413 = vmatprep.subr.mxu0 0.0
        %2414 = vmatpush1.msra.mxu0 0.0
        %2415 = vmatprep.subr.mxu0 0.0
        %2416 = vmatpush1.msra.mxu0 0.0
        %2417 = vmatprep.subr.mxu0 0.0
        %2418 = vmatpush1.msra.mxu0 0.0
        %2419 = vmatprep.subr.mxu0 0.0
        %2420 = vmatpush1.msra.mxu0 0.0
        %2421 = vmatprep.subr.mxu0 0.0
        %2422 = vmatpush1.msra.mxu0 0.0
        %2423 = vmatprep.subr.mxu0 0.0
        %2424 = vmatpush1.msra.mxu0 0.0
        %2425 = vmatprep.subr.mxu0 0.0
        %2426 = vmatpush1.msra.mxu0 %v2344
        %2427 = vmatprep.subr.mxu0 0.0
        %2428 = vmatpush1.msra.mxu0 %v2343
        %2429 = vmatprep.subr.mxu0 0.0
        %2430 = vmatpush1.msra.mxu0 %v2342
        %2431 = vmatprep.subr.mxu0 0.0
        %2432 = vmatpush1.msra.mxu0 %v2341
        %2433 = vmatprep.subr.mxu0 0.0
        %2434 = vmatpush2.msra.mxu0 0.0
        %2435 = vmatprep.subr.mxu0 0.0
        %2436 = vmatpush2.msra.mxu0 0.0
        %2437 = vmatprep.subr.mxu0 0.0
        %2438 = vmatpush2.msra.mxu0 0.0
        %2439 = vmatprep.subr.mxu0 0.0
        %2440 = vmatpush2.msra.mxu0 0.0
        %2441 = vmatprep.subr.mxu0 0.0
        %2442 = vmatpush2.msra.mxu0 0.0
        %2443 = vmatprep.subr.mxu0 0.0
        %2444 = vmatpush2.msra.mxu0 0.0
        %2445 = vmatprep.subr.mxu0 0.0
        %2446 = vmatpush2.msra.mxu0 0.0
        %2447 = vmatprep.subr.mxu0 0.0
        %2448 = vmatpush2.msra.mxu0 0.0
        %2449 = vmatprep.subr.mxu0 0.0
        %2450 = vmatpush2.msra.mxu0 0.0
        %2451 = vmatprep.subr.mxu0 0.0
        %2452 = vmatpush2.msra.mxu0 0.0
        %2453 = vmatprep.subr.mxu0 0.0
        %2454 = vmatpush2.msra.mxu0 0.0
        %2455 = vmatprep.subr.mxu0 0.0
        %2456 = vmatpush2.msra.mxu0 0.0
        %2457 = vmatprep.subr.mxu0 0.0
        %2458 = vmatpush2.msra.mxu0 0.0
        %2459 = vmatprep.subr.mxu0 0.0
        %2460 = vmatpush2.msra.mxu0 0.0
        %2461 = vmatprep.subr.mxu0 0.0
        %2462 = vmatpush2.msra.mxu0 0.0
        %2463 = vmatprep.subr.mxu0 0.0
        %2464 = vmatpush2.msra.mxu0 0.0
        %2465 = vmatprep.mubr.f32.mxu0 0.0
        %2466 = vmatmul.mubr.f32.gmra.mxu0 %v2354
        %v2467 = vpop.f32.mrf.mxu0
        %v2468 = vadd.f32 %v2351, %v2467
        %v2469 = vpop.f32.mrf.mxu0
        %2470 = vmatprep.mubr.f32.mxu0 0.0
        %2471 = vmatmul.mubr.f32.gmra.mxu0 %v2357
        %v2472 = vpop.f32.mrf.mxu0
        %v2473 = vadd.f32 %v2351, %v2472
        %v2474 = vpop.f32.mrf.mxu0
        %2475 = vmatprep.mubr.f32.mxu0 0.0
        %2476 = vmatmul.mubr.f32.gmra.mxu0 %v2360
        %v2477 = vpop.f32.mrf.mxu0
        %v2478 = vadd.f32 %v2351, %v2477
        %v2479 = vpop.f32.mrf.mxu0
        %2480 = vmatprep.mubr.f32.mxu0 0.0
        %2481 = vmatmul.mubr.f32.gmra.mxu0 %v2363
        %v2482 = vpop.f32.mrf.mxu0
        %v2483 = vadd.f32 %v2351, %v2482
        %v2484 = vpop.f32.mrf.mxu0
        %2485 = vmatprep.mubr.f32.mxu0 0.0
        %2486 = vmatmul.mubr.f32.gmra.mxu0 %v2366
        %v2487 = vpop.f32.mrf.mxu0
        %v2488 = vadd.f32 %v2351, %v2487
        %v2489 = vpop.f32.mrf.mxu0
        %2490 = vmatprep.mubr.f32.mxu0 0.0
        %2491 = vmatmul.mubr.f32.gmra.mxu0 %v2369
        %v2492 = vpop.f32.mrf.mxu0
        %v2493 = vadd.f32 %v2351, %v2492
        %v2494 = vpop.f32.mrf.mxu0
        %2495 = vmatprep.mubr.f32.mxu0 0.0
        %2496 = vmatmul.mubr.f32.gmra.mxu0 %v2372
        %v2497 = vpop.f32.mrf.mxu0
        %v2498 = vadd.f32 %v2351, %v2497
        %v2499 = vpop.f32.mrf.mxu0
        %2500 = vmatprep.mubr.f32.mxu0 0.0
        %2501 = vmatmul.mubr.f32.gmra.mxu0 %v2375
        %v2502 = vpop.f32.mrf.mxu0
        %v2503 = vadd.f32 %v2351, %v2502
        %v2504 = vpop.f32.mrf.mxu0
        %2505 = vmatprep.mubr.f32.mxu0 0.0
        %2506 = vmatmul.mubr.f32.gmra.mxu0 %v2378
        %v2507 = vpop.f32.mrf.mxu0
        %v2508 = vadd.f32 %v2351, %v2507
        %v2509 = vpop.f32.mrf.mxu0
        %2510 = vmatprep.mubr.f32.mxu0 0.0
        %2511 = vmatmul.mubr.f32.gmra.mxu0 %v2381
        %v2512 = vpop.f32.mrf.mxu0
        %v2513 = vadd.f32 %v2351, %v2512
        %v2514 = vpop.f32.mrf.mxu0
        %2515 = vmatprep.mubr.f32.mxu0 0.0
        %2516 = vmatmul.mubr.f32.gmra.mxu0 %v2384
        %v2517 = vpop.f32.mrf.mxu0
        %v2518 = vadd.f32 %v2351, %v2517
        %v2519 = vpop.f32.mrf.mxu0
        %2520 = vmatprep.mubr.f32.mxu0 0.0
        %2521 = vmatmul.mubr.f32.gmra.mxu0 %v2387
        %v2522 = vpop.f32.mrf.mxu0
        %v2523 = vadd.f32 %v2351, %v2522
        %v2524 = vpop.f32.mrf.mxu0
        %2525 = vmatprep.mubr.f32.mxu0 0.0
        %2526 = vmatmul.mubr.f32.gmra.mxu0 %v2390
        %v2527 = vpop.f32.mrf.mxu0
        %v2528 = vadd.f32 %v2351, %v2527
        %v2529 = vpop.f32.mrf.mxu0
        %2530 = vmatprep.mubr.f32.mxu0 0.0
        %2531 = vmatmul.mubr.f32.gmra.mxu0 %v2393
        %v2532 = vpop.f32.mrf.mxu0
        %v2533 = vadd.f32 %v2351, %v2532
        %v2534 = vpop.f32.mrf.mxu0
        %2535 = vmatprep.mubr.f32.mxu0 0.0
        %2536 = vmatmul.mubr.f32.gmra.mxu0 %v2396
        %v2537 = vpop.f32.mrf.mxu0
        %v2538 = vadd.f32 %v2351, %v2537
        %v2539 = vpop.f32.mrf.mxu0
        %2540 = vmatprep.mubr.f32.mxu0 0.0
        %2541 = vmatmul.mubr.f32.gmra.mxu0 %v2399
        %v2542 = vpop.f32.mrf.mxu0
        %v2543 = vadd.f32 %v2351, %v2542
        %v2544 = vpop.f32.mrf.mxu0
        %2545 = vdwg.mxu0
        %v2546 = vsub.f32 %v1438, %v2468
        %v2547 = vsub.f32 %v1439, %v2473
        %v2548 = vsub.f32 %v1440, %v2478
        %v2549 = vsub.f32 %v1441, %v2483
        %v2550 = vsub.f32 %v1442, %v2488
        %v2551 = vsub.f32 %v1443, %v2493
        %v2552 = vsub.f32 %v1444, %v2498
        %v2553 = vsub.f32 %v1445, %v2503
        %v2554 = vsub.f32 %v1446, %v2508
        %v2555 = vsub.f32 %v1447, %v2513
        %v2556 = vsub.f32 %v1448, %v2518
        %v2557 = vsub.f32 %v1449, %v2523
        %v2558 = vsub.f32 %v1450, %v2528
        %v2559 = vsub.f32 %v1451, %v2533
        %v2560 = vsub.f32 %v1452, %v2538
        %v2561 = vsub.f32 %v1453, %v2543
        %v2563 = vsel %vm359, %v2546, 0
        %v2566 = vsel %vm359, %v2547, 0
        %v2569 = vsel %vm359, %v2548, 0
        %v2572 = vsel %vm359, %v2549, 0
        %v2575 = vsel %vm359, %v2550, 0
        %v2578 = vsel %vm359, %v2551, 0
        %v2581 = vsel %vm359, %v2552, 0
        %v2584 = vsel %vm359, %v2553, 0
        %v2587 = vsel %vm359, %v2554, 0
        %v2590 = vsel %vm359, %v2555, 0
        %v2593 = vsel %vm359, %v2556, 0
        %v2596 = vsel %vm359, %v2557, 0
        %v2599 = vsel %vm359, %v2558, 0
        %v2602 = vsel %vm359, %v2559, 0
        %v2605 = vsel %vm359, %v2560, 0
        %v2608 = vsel %vm359, %v2561, 0
        %2610 = vmatprep.subr.mxu0 0.0
        %2611 = vmatpush1.msra.mxu0 0.0
        %2612 = vmatprep.subr.mxu0 0.0
        %2613 = vmatpush1.msra.mxu0 0.0
        %2614 = vmatprep.subr.mxu0 0.0
        %2615 = vmatpush1.msra.mxu0 0.0
        %2616 = vmatprep.subr.mxu0 0.0
        %2617 = vmatpush1.msra.mxu0 0.0
        %2618 = vmatprep.subr.mxu0 0.0
        %2619 = vmatpush1.msra.mxu0 0.0
        %2620 = vmatprep.subr.mxu0 0.0
        %2621 = vmatpush1.msra.mxu0 0.0
        %2622 = vmatprep.subr.mxu0 0.0
        %2623 = vmatpush1.msra.mxu0 0.0
        %2624 = vmatprep.subr.mxu0 0.0
        %2625 = vmatpush1.msra.mxu0 0.0
        %2626 = vmatprep.subr.mxu0 0.0
        %2627 = vmatpush1.msra.mxu0 0.0
        %2628 = vmatprep.subr.mxu0 0.0
        %2629 = vmatpush1.msra.mxu0 0.0
        %2630 = vmatprep.subr.mxu0 0.0
        %2631 = vmatpush1.msra.mxu0 0.0
        %2632 = vmatprep.subr.mxu0 0.0
        %2633 = vmatpush1.msra.mxu0 0.0
        %2634 = vmatprep.subr.mxu0 0.0
        %2635 = vmatpush1.msra.mxu0 0.0
        %2636 = vmatprep.subr.mxu0 0.0
        %2637 = vmatpush1.msra.mxu0 0.0
        %2638 = vmatprep.subr.mxu0 0.0
        %2639 = vmatpush1.msra.mxu0 %v351
        %2640 = vmatprep.subr.mxu0 0.0
        %2641 = vmatpush1.msra.mxu0 %v350
        %2642 = vmatprep.subr.mxu0 0.0
        %2643 = vmatpush2.msra.mxu0 0.0
        %2644 = vmatprep.subr.mxu0 0.0
        %2645 = vmatpush2.msra.mxu0 0.0
        %2646 = vmatprep.subr.mxu0 0.0
        %2647 = vmatpush2.msra.mxu0 0.0
        %2648 = vmatprep.subr.mxu0 0.0
        %2649 = vmatpush2.msra.mxu0 0.0
        %2650 = vmatprep.subr.mxu0 0.0
        %2651 = vmatpush2.msra.mxu0 0.0
        %2652 = vmatprep.subr.mxu0 0.0
        %2653 = vmatpush2.msra.mxu0 0.0
        %2654 = vmatprep.subr.mxu0 0.0
        %2655 = vmatpush2.msra.mxu0 0.0
        %2656 = vmatprep.subr.mxu0 0.0
        %2657 = vmatpush2.msra.mxu0 0.0
        %2658 = vmatprep.subr.mxu0 0.0
        %2659 = vmatpush2.msra.mxu0 0.0
        %2660 = vmatprep.subr.mxu0 0.0
        %2661 = vmatpush2.msra.mxu0 0.0
        %2662 = vmatprep.subr.mxu0 0.0
        %2663 = vmatpush2.msra.mxu0 0.0
        %2664 = vmatprep.subr.mxu0 0.0
        %2665 = vmatpush2.msra.mxu0 0.0
        %2666 = vmatprep.subr.mxu0 0.0
        %2667 = vmatpush2.msra.mxu0 0.0
        %2668 = vmatprep.subr.mxu0 0.0
        %2669 = vmatpush2.msra.mxu0 0.0
        %2670 = vmatprep.subr.mxu0 0.0
        %2671 = vmatpush2.msra.mxu0 0.0
        %2672 = vmatprep.subr.mxu0 0.0
        %2673 = vmatpush2.msra.mxu0 0.0
        %2674 = vmatprep.mubr.f32.mxu0 0.0
        %2675 = vmatmul.mubr.f32.gmra.mxu0 %v2563
        %v2676 = vpop.f32.mrf.mxu0
        %v2677 = vadd.f32 %v357, %v2676
        %v2678 = vpop.f32.mrf.mxu0
        %2679 = vmatprep.mubr.f32.mxu0 0.0
        %2680 = vmatmul.mubr.f32.gmra.mxu0 %v2566
        %v2681 = vpop.f32.mrf.mxu0
        %v2682 = vadd.f32 %v357, %v2681
        %v2683 = vpop.f32.mrf.mxu0
        %2684 = vmatprep.mubr.f32.mxu0 0.0
        %2685 = vmatmul.mubr.f32.gmra.mxu0 %v2569
        %v2686 = vpop.f32.mrf.mxu0
        %v2687 = vadd.f32 %v357, %v2686
        %v2688 = vpop.f32.mrf.mxu0
        %2689 = vmatprep.mubr.f32.mxu0 0.0
        %2690 = vmatmul.mubr.f32.gmra.mxu0 %v2572
        %v2691 = vpop.f32.mrf.mxu0
        %v2692 = vadd.f32 %v357, %v2691
        %v2693 = vpop.f32.mrf.mxu0
        %2694 = vmatprep.mubr.f32.mxu0 0.0
        %2695 = vmatmul.mubr.f32.gmra.mxu0 %v2575
        %v2696 = vpop.f32.mrf.mxu0
        %v2697 = vadd.f32 %v357, %v2696
        %v2698 = vpop.f32.mrf.mxu0
        %2699 = vmatprep.mubr.f32.mxu0 0.0
        %2700 = vmatmul.mubr.f32.gmra.mxu0 %v2578
        %v2701 = vpop.f32.mrf.mxu0
        %v2702 = vadd.f32 %v357, %v2701
        %v2703 = vpop.f32.mrf.mxu0
        %2704 = vmatprep.mubr.f32.mxu0 0.0
        %2705 = vmatmul.mubr.f32.gmra.mxu0 %v2581
        %v2706 = vpop.f32.mrf.mxu0
        %v2707 = vadd.f32 %v357, %v2706
        %v2708 = vpop.f32.mrf.mxu0
        %2709 = vmatprep.mubr.f32.mxu0 0.0
        %2710 = vmatmul.mubr.f32.gmra.mxu0 %v2584
        %v2711 = vpop.f32.mrf.mxu0
        %v2712 = vadd.f32 %v357, %v2711
        %v2713 = vpop.f32.mrf.mxu0
        %2714 = vmatprep.mubr.f32.mxu0 0.0
        %2715 = vmatmul.mubr.f32.gmra.mxu0 %v2587
        %v2716 = vpop.f32.mrf.mxu0
        %v2717 = vadd.f32 %v357, %v2716
        %v2718 = vpop.f32.mrf.mxu0
        %2719 = vmatprep.mubr.f32.mxu0 0.0
        %2720 = vmatmul.mubr.f32.gmra.mxu0 %v2590
        %v2721 = vpop.f32.mrf.mxu0
        %v2722 = vadd.f32 %v357, %v2721
        %v2723 = vpop.f32.mrf.mxu0
        %2724 = vmatprep.mubr.f32.mxu0 0.0
        %2725 = vmatmul.mubr.f32.gmra.mxu0 %v2593
        %v2726 = vpop.f32.mrf.mxu0
        %v2727 = vadd.f32 %v357, %v2726
        %v2728 = vpop.f32.mrf.mxu0
        %2729 = vmatprep.mubr.f32.mxu0 0.0
        %2730 = vmatmul.mubr.f32.gmra.mxu0 %v2596
        %v2731 = vpop.f32.mrf.mxu0
        %v2732 = vadd.f32 %v357, %v2731
        %v2733 = vpop.f32.mrf.mxu0
        %2734 = vmatprep.mubr.f32.mxu0 0.0
        %2735 = vmatmul.mubr.f32.gmra.mxu0 %v2599
        %v2736 = vpop.f32.mrf.mxu0
        %v2737 = vadd.f32 %v357, %v2736
        %v2738 = vpop.f32.mrf.mxu0
        %2739 = vmatprep.mubr.f32.mxu0 0.0
        %2740 = vmatmul.mubr.f32.gmra.mxu0 %v2602
        %v2741 = vpop.f32.mrf.mxu0
        %v2742 = vadd.f32 %v357, %v2741
        %v2743 = vpop.f32.mrf.mxu0
        %2744 = vmatprep.mubr.f32.mxu0 0.0
        %2745 = vmatmul.mubr.f32.gmra.mxu0 %v2605
        %v2746 = vpop.f32.mrf.mxu0
        %v2747 = vadd.f32 %v357, %v2746
        %v2748 = vpop.f32.mrf.mxu0
        %2749 = vmatprep.mubr.f32.mxu0 0.0
        %2750 = vmatmul.mubr.f32.gmra.mxu0 %v2608
        %v2751 = vpop.f32.mrf.mxu0
        %v2752 = vadd.f32 %v357, %v2751
        %v2753 = vpop.f32.mrf.mxu0
        %2754 = vdwg.mxu0
        %v2755 = vmax.f32 %v2677, 0.0
        %v2756 = vmax.f32 %v2682, 0.0
        %v2757 = vmax.f32 %v2687, 0.0
        %v2758 = vmax.f32 %v2692, 0.0
        %v2759 = vmax.f32 %v2697, 0.0
        %v2760 = vmax.f32 %v2702, 0.0
        %v2761 = vmax.f32 %v2707, 0.0
        %v2762 = vmax.f32 %v2712, 0.0
        %v2763 = vmax.f32 %v2717, 0.0
        %v2764 = vmax.f32 %v2722, 0.0
        %v2765 = vmax.f32 %v2727, 0.0
        %v2766 = vmax.f32 %v2732, 0.0
        %v2767 = vmax.f32 %v2737, 0.0
        %v2768 = vmax.f32 %v2742, 0.0
        %v2769 = vmax.f32 %v2747, 0.0
        %v2770 = vmax.f32 %v2752, 0.0
        %v2772 = vsel %vm580, %v2755, 0
        %v2775 = vsel %vm580, %v2756, 0
        %v2778 = vsel %vm580, %v2757, 0
        %v2781 = vsel %vm580, %v2758, 0
        %v2784 = vsel %vm580, %v2759, 0
        %v2787 = vsel %vm580, %v2760, 0
        %v2790 = vsel %vm580, %v2761, 0
        %v2793 = vsel %vm580, %v2762, 0
        %v2796 = vsel %vm580, %v2763, 0
        %v2799 = vsel %vm580, %v2764, 0
        %v2802 = vsel %vm580, %v2765, 0
        %v2805 = vsel %vm580, %v2766, 0
        %v2808 = vsel %vm580, %v2767, 0
        %v2811 = vsel %vm580, %v2768, 0
        %v2814 = vsel %vm580, %v2769, 0
        %v2817 = vsel %vm580, %v2770, 0
        %2819 = vmatprep.subr.mxu0 0.0
        %2820 = vmatpush1.msra.mxu0 0.0
        %2821 = vmatprep.subr.mxu0 0.0
        %2822 = vmatpush1.msra.mxu0 0.0
        %2823 = vmatprep.subr.mxu0 0.0
        %2824 = vmatpush1.msra.mxu0 0.0
        %2825 = vmatprep.subr.mxu0 0.0
        %2826 = vmatpush1.msra.mxu0 0.0
        %2827 = vmatprep.subr.mxu0 0.0
        %2828 = vmatpush1.msra.mxu0 0.0
        %2829 = vmatprep.subr.mxu0 0.0
        %2830 = vmatpush1.msra.mxu0 0.0
        %2831 = vmatprep.subr.mxu0 0.0
        %2832 = vmatpush1.msra.mxu0 0.0
        %2833 = vmatprep.subr.mxu0 0.0
        %2834 = vmatpush1.msra.mxu0 0.0
        %2835 = vmatprep.subr.mxu0 0.0
        %2836 = vmatpush1.msra.mxu0 0.0
        %2837 = vmatprep.subr.mxu0 0.0
        %2838 = vmatpush1.msra.mxu0 0.0
        %2839 = vmatprep.subr.mxu0 0.0
        %2840 = vmatpush1.msra.mxu0 0.0
        %2841 = vmatprep.subr.mxu0 0.0
        %2842 = vmatpush1.msra.mxu0 0.0
        %2843 = vmatprep.subr.mxu0 0.0
        %2844 = vmatpush1.msra.mxu0 %v572
        %2845 = vmatprep.subr.mxu0 0.0
        %2846 = vmatpush1.msra.mxu0 %v571
        %2847 = vmatprep.subr.mxu0 0.0
        %2848 = vmatpush1.msra.mxu0 %v570
        %2849 = vmatprep.subr.mxu0 0.0
        %2850 = vmatpush1.msra.mxu0 %v569
        %2851 = vmatprep.subr.mxu0 0.0
        %2852 = vmatpush2.msra.mxu0 0.0
        %2853 = vmatprep.subr.mxu0 0.0
        %2854 = vmatpush2.msra.mxu0 0.0
        %2855 = vmatprep.subr.mxu0 0.0
        %2856 = vmatpush2.msra.mxu0 0.0
        %2857 = vmatprep.subr.mxu0 0.0
        %2858 = vmatpush2.msra.mxu0 0.0
        %2859 = vmatprep.subr.mxu0 0.0
        %2860 = vmatpush2.msra.mxu0 0.0
        %2861 = vmatprep.subr.mxu0 0.0
        %2862 = vmatpush2.msra.mxu0 0.0
        %2863 = vmatprep.subr.mxu0 0.0
        %2864 = vmatpush2.msra.mxu0 0.0
        %2865 = vmatprep.subr.mxu0 0.0
        %2866 = vmatpush2.msra.mxu0 0.0
        %2867 = vmatprep.subr.mxu0 0.0
        %2868 = vmatpush2.msra.mxu0 0.0
        %2869 = vmatprep.subr.mxu0 0.0
        %2870 = vmatpush2.msra.mxu0 0.0
        %2871 = vmatprep.subr.mxu0 0.0
        %2872 = vmatpush2.msra.mxu0 0.0
        %2873 = vmatprep.subr.mxu0 0.0
        %2874 = vmatpush2.msra.mxu0 0.0
        %2875 = vmatprep.subr.mxu0 0.0
        %2876 = vmatpush2.msra.mxu0 0.0
        %2877 = vmatprep.subr.mxu0 0.0
        %2878 = vmatpush2.msra.mxu0 0.0
        %2879 = vmatprep.subr.mxu0 0.0
        %2880 = vmatpush2.msra.mxu0 0.0
        %2881 = vmatprep.subr.mxu0 0.0
        %2882 = vmatpush2.msra.mxu0 0.0
        %2883 = vmatprep.mubr.f32.mxu0 0.0
        %2884 = vmatmul.mubr.f32.gmra.mxu0 %v2772
        %v2885 = vpop.f32.mrf.mxu0
        %v2886 = vadd.f32 %v578, %v2885
        %v2887 = vpop.f32.mrf.mxu0
        %2888 = vmatprep.mubr.f32.mxu0 0.0
        %2889 = vmatmul.mubr.f32.gmra.mxu0 %v2775
        %v2890 = vpop.f32.mrf.mxu0
        %v2891 = vadd.f32 %v578, %v2890
        %v2892 = vpop.f32.mrf.mxu0
        %2893 = vmatprep.mubr.f32.mxu0 0.0
        %2894 = vmatmul.mubr.f32.gmra.mxu0 %v2778
        %v2895 = vpop.f32.mrf.mxu0
        %v2896 = vadd.f32 %v578, %v2895
        %v2897 = vpop.f32.mrf.mxu0
        %2898 = vmatprep.mubr.f32.mxu0 0.0
        %2899 = vmatmul.mubr.f32.gmra.mxu0 %v2781
        %v2900 = vpop.f32.mrf.mxu0
        %v2901 = vadd.f32 %v578, %v2900
        %v2902 = vpop.f32.mrf.mxu0
        %2903 = vmatprep.mubr.f32.mxu0 0.0
        %2904 = vmatmul.mubr.f32.gmra.mxu0 %v2784
        %v2905 = vpop.f32.mrf.mxu0
        %v2906 = vadd.f32 %v578, %v2905
        %v2907 = vpop.f32.mrf.mxu0
        %2908 = vmatprep.mubr.f32.mxu0 0.0
        %2909 = vmatmul.mubr.f32.gmra.mxu0 %v2787
        %v2910 = vpop.f32.mrf.mxu0
        %v2911 = vadd.f32 %v578, %v2910
        %v2912 = vpop.f32.mrf.mxu0
        %2913 = vmatprep.mubr.f32.mxu0 0.0
        %2914 = vmatmul.mubr.f32.gmra.mxu0 %v2790
        %v2915 = vpop.f32.mrf.mxu0
        %v2916 = vadd.f32 %v578, %v2915
        %v2917 = vpop.f32.mrf.mxu0
        %2918 = vmatprep.mubr.f32.mxu0 0.0
        %2919 = vmatmul.mubr.f32.gmra.mxu0 %v2793
        %v2920 = vpop.f32.mrf.mxu0
        %v2921 = vadd.f32 %v578, %v2920
        %v2922 = vpop.f32.mrf.mxu0
        %2923 = vmatprep.mubr.f32.mxu0 0.0
        %2924 = vmatmul.mubr.f32.gmra.mxu0 %v2796
        %v2925 = vpop.f32.mrf.mxu0
        %v2926 = vadd.f32 %v578, %v2925
        %v2927 = vpop.f32.mrf.mxu0
        %2928 = vmatprep.mubr.f32.mxu0 0.0
        %2929 = vmatmul.mubr.f32.gmra.mxu0 %v2799
        %v2930 = vpop.f32.mrf.mxu0
        %v2931 = vadd.f32 %v578, %v2930
        %v2932 = vpop.f32.mrf.mxu0
        %2933 = vmatprep.mubr.f32.mxu0 0.0
        %2934 = vmatmul.mubr.f32.gmra.mxu0 %v2802
        %v2935 = vpop.f32.mrf.mxu0
        %v2936 = vadd.f32 %v578, %v2935
        %v2937 = vpop.f32.mrf.mxu0
        %2938 = vmatprep.mubr.f32.mxu0 0.0
        %2939 = vmatmul.mubr.f32.gmra.mxu0 %v2805
        %v2940 = vpop.f32.mrf.mxu0
        %v2941 = vadd.f32 %v578, %v2940
        %v2942 = vpop.f32.mrf.mxu0
        %2943 = vmatprep.mubr.f32.mxu0 0.0
        %2944 = vmatmul.mubr.f32.gmra.mxu0 %v2808
        %v2945 = vpop.f32.mrf.mxu0
        %v2946 = vadd.f32 %v578, %v2945
        %v2947 = vpop.f32.mrf.mxu0
        %2948 = vmatprep.mubr.f32.mxu0 0.0
        %2949 = vmatmul.mubr.f32.gmra.mxu0 %v2811
        %v2950 = vpop.f32.mrf.mxu0
        %v2951 = vadd.f32 %v578, %v2950
        %v2952 = vpop.f32.mrf.mxu0
        %2953 = vmatprep.mubr.f32.mxu0 0.0
        %2954 = vmatmul.mubr.f32.gmra.mxu0 %v2814
        %v2955 = vpop.f32.mrf.mxu0
        %v2956 = vadd.f32 %v578, %v2955
        %v2957 = vpop.f32.mrf.mxu0
        %2958 = vmatprep.mubr.f32.mxu0 0.0
        %2959 = vmatmul.mubr.f32.gmra.mxu0 %v2817
        %v2960 = vpop.f32.mrf.mxu0
        %v2961 = vadd.f32 %v578, %v2960
        %v2962 = vpop.f32.mrf.mxu0
        %2963 = vdwg.mxu0
        %v2964 = vmax.f32 %v2886, 0.0
        %v2965 = vmax.f32 %v2891, 0.0
        %v2966 = vmax.f32 %v2896, 0.0
        %v2967 = vmax.f32 %v2901, 0.0
        %v2968 = vmax.f32 %v2906, 0.0
        %v2969 = vmax.f32 %v2911, 0.0
        %v2970 = vmax.f32 %v2916, 0.0
        %v2971 = vmax.f32 %v2921, 0.0
        %v2972 = vmax.f32 %v2926, 0.0
        %v2973 = vmax.f32 %v2931, 0.0
        %v2974 = vmax.f32 %v2936, 0.0
        %v2975 = vmax.f32 %v2941, 0.0
        %v2976 = vmax.f32 %v2946, 0.0
        %v2977 = vmax.f32 %v2951, 0.0
        %v2978 = vmax.f32 %v2956, 0.0
        %v2979 = vmax.f32 %v2961, 0.0
        %v2981 = vsel %vm580, %v2964, 0
        %v2984 = vsel %vm580, %v2965, 0
        %v2987 = vsel %vm580, %v2966, 0
        %v2990 = vsel %vm580, %v2967, 0
        %v2993 = vsel %vm580, %v2968, 0
        %v2996 = vsel %vm580, %v2969, 0
        %v2999 = vsel %vm580, %v2970, 0
        %v3002 = vsel %vm580, %v2971, 0
        %v3005 = vsel %vm580, %v2972, 0
        %v3008 = vsel %vm580, %v2973, 0
        %v3011 = vsel %vm580, %v2974, 0
        %v3014 = vsel %vm580, %v2975, 0
        %v3017 = vsel %vm580, %v2976, 0
        %v3020 = vsel %vm580, %v2977, 0
        %v3023 = vsel %vm580, %v2978, 0
        %v3026 = vsel %vm580, %v2979, 0
        %3028 = vmatprep.subr.mxu0 0.0
        %3029 = vmatpush1.msra.mxu0 0.0
        %3030 = vmatprep.subr.mxu0 0.0
        %3031 = vmatpush1.msra.mxu0 0.0
        %3032 = vmatprep.subr.mxu0 0.0
        %3033 = vmatpush1.msra.mxu0 0.0
        %3034 = vmatprep.subr.mxu0 0.0
        %3035 = vmatpush1.msra.mxu0 0.0
        %3036 = vmatprep.subr.mxu0 0.0
        %3037 = vmatpush1.msra.mxu0 0.0
        %3038 = vmatprep.subr.mxu0 0.0
        %3039 = vmatpush1.msra.mxu0 0.0
        %3040 = vmatprep.subr.mxu0 0.0
        %3041 = vmatpush1.msra.mxu0 0.0
        %3042 = vmatprep.subr.mxu0 0.0
        %3043 = vmatpush1.msra.mxu0 0.0
        %3044 = vmatprep.subr.mxu0 0.0
        %3045 = vmatpush1.msra.mxu0 0.0
        %3046 = vmatprep.subr.mxu0 0.0
        %3047 = vmatpush1.msra.mxu0 0.0
        %3048 = vmatprep.subr.mxu0 0.0
        %3049 = vmatpush1.msra.mxu0 0.0
        %3050 = vmatprep.subr.mxu0 0.0
        %3051 = vmatpush1.msra.mxu0 0.0
        %3052 = vmatprep.subr.mxu0 0.0
        %3053 = vmatpush1.msra.mxu0 %v794
        %3054 = vmatprep.subr.mxu0 0.0
        %3055 = vmatpush1.msra.mxu0 %v793
        %3056 = vmatprep.subr.mxu0 0.0
        %3057 = vmatpush1.msra.mxu0 %v792
        %3058 = vmatprep.subr.mxu0 0.0
        %3059 = vmatpush1.msra.mxu0 %v791
        %3060 = vmatprep.subr.mxu0 0.0
        %3061 = vmatpush2.msra.mxu0 0.0
        %3062 = vmatprep.subr.mxu0 0.0
        %3063 = vmatpush2.msra.mxu0 0.0
        %3064 = vmatprep.subr.mxu0 0.0
        %3065 = vmatpush2.msra.mxu0 0.0
        %3066 = vmatprep.subr.mxu0 0.0
        %3067 = vmatpush2.msra.mxu0 0.0
        %3068 = vmatprep.subr.mxu0 0.0
        %3069 = vmatpush2.msra.mxu0 0.0
        %3070 = vmatprep.subr.mxu0 0.0
        %3071 = vmatpush2.msra.mxu0 0.0
        %3072 = vmatprep.subr.mxu0 0.0
        %3073 = vmatpush2.msra.mxu0 0.0
        %3074 = vmatprep.subr.mxu0 0.0
        %3075 = vmatpush2.msra.mxu0 0.0
        %3076 = vmatprep.subr.mxu0 0.0
        %3077 = vmatpush2.msra.mxu0 0.0
        %3078 = vmatprep.subr.mxu0 0.0
        %3079 = vmatpush2.msra.mxu0 0.0
        %3080 = vmatprep.subr.mxu0 0.0
        %3081 = vmatpush2.msra.mxu0 0.0
        %3082 = vmatprep.subr.mxu0 0.0
        %3083 = vmatpush2.msra.mxu0 0.0
        %3084 = vmatprep.subr.mxu0 0.0
        %3085 = vmatpush2.msra.mxu0 0.0
        %3086 = vmatprep.subr.mxu0 0.0
        %3087 = vmatpush2.msra.mxu0 0.0
        %3088 = vmatprep.subr.mxu0 0.0
        %3089 = vmatpush2.msra.mxu0 0.0
        %3090 = vmatprep.subr.mxu0 0.0
        %3091 = vmatpush2.msra.mxu0 0.0
        %3092 = vmatprep.mubr.f32.mxu0 0.0
        %3093 = vmatmul.mubr.f32.gmra.mxu0 %v2981
        %v3094 = vpop.f32.mrf.mxu0
        %v3095 = vadd.f32 %v801, %v3094
        %v3096 = vpop.f32.mrf.mxu0
        %3097 = vmatprep.mubr.f32.mxu0 0.0
        %3098 = vmatmul.mubr.f32.gmra.mxu0 %v2984
        %v3099 = vpop.f32.mrf.mxu0
        %v3100 = vadd.f32 %v801, %v3099
        %v3101 = vpop.f32.mrf.mxu0
        %3102 = vmatprep.mubr.f32.mxu0 0.0
        %3103 = vmatmul.mubr.f32.gmra.mxu0 %v2987
        %v3104 = vpop.f32.mrf.mxu0
        %v3105 = vadd.f32 %v801, %v3104
        %v3106 = vpop.f32.mrf.mxu0
        %3107 = vmatprep.mubr.f32.mxu0 0.0
        %3108 = vmatmul.mubr.f32.gmra.mxu0 %v2990
        %v3109 = vpop.f32.mrf.mxu0
        %v3110 = vadd.f32 %v801, %v3109
        %v3111 = vpop.f32.mrf.mxu0
        %3112 = vmatprep.mubr.f32.mxu0 0.0
        %3113 = vmatmul.mubr.f32.gmra.mxu0 %v2993
        %v3114 = vpop.f32.mrf.mxu0
        %v3115 = vadd.f32 %v801, %v3114
        %v3116 = vpop.f32.mrf.mxu0
        %3117 = vmatprep.mubr.f32.mxu0 0.0
        %3118 = vmatmul.mubr.f32.gmra.mxu0 %v2996
        %v3119 = vpop.f32.mrf.mxu0
        %v3120 = vadd.f32 %v801, %v3119
        %v3121 = vpop.f32.mrf.mxu0
        %3122 = vmatprep.mubr.f32.mxu0 0.0
        %3123 = vmatmul.mubr.f32.gmra.mxu0 %v2999
        %v3124 = vpop.f32.mrf.mxu0
        %v3125 = vadd.f32 %v801, %v3124
        %v3126 = vpop.f32.mrf.mxu0
        %3127 = vmatprep.mubr.f32.mxu0 0.0
        %3128 = vmatmul.mubr.f32.gmra.mxu0 %v3002
        %v3129 = vpop.f32.mrf.mxu0
        %v3130 = vadd.f32 %v801, %v3129
        %v3131 = vpop.f32.mrf.mxu0
        %3132 = vmatprep.mubr.f32.mxu0 0.0
        %3133 = vmatmul.mubr.f32.gmra.mxu0 %v3005
        %v3134 = vpop.f32.mrf.mxu0
        %v3135 = vadd.f32 %v801, %v3134
        %v3136 = vpop.f32.mrf.mxu0
        %3137 = vmatprep.mubr.f32.mxu0 0.0
        %3138 = vmatmul.mubr.f32.gmra.mxu0 %v3008
        %v3139 = vpop.f32.mrf.mxu0
        %v3140 = vadd.f32 %v801, %v3139
        %v3141 = vpop.f32.mrf.mxu0
        %3142 = vmatprep.mubr.f32.mxu0 0.0
        %3143 = vmatmul.mubr.f32.gmra.mxu0 %v3011
        %v3144 = vpop.f32.mrf.mxu0
        %v3145 = vadd.f32 %v801, %v3144
        %v3146 = vpop.f32.mrf.mxu0
        %3147 = vmatprep.mubr.f32.mxu0 0.0
        %3148 = vmatmul.mubr.f32.gmra.mxu0 %v3014
        %v3149 = vpop.f32.mrf.mxu0
        %v3150 = vadd.f32 %v801, %v3149
        %v3151 = vpop.f32.mrf.mxu0
        %3152 = vmatprep.mubr.f32.mxu0 0.0
        %3153 = vmatmul.mubr.f32.gmra.mxu0 %v3017
        %v3154 = vpop.f32.mrf.mxu0
        %v3155 = vadd.f32 %v801, %v3154
        %v3156 = vpop.f32.mrf.mxu0
        %3157 = vmatprep.mubr.f32.mxu0 0.0
        %3158 = vmatmul.mubr.f32.gmra.mxu0 %v3020
        %v3159 = vpop.f32.mrf.mxu0
        %v3160 = vadd.f32 %v801, %v3159
        %v3161 = vpop.f32.mrf.mxu0
        %3162 = vmatprep.mubr.f32.mxu0 0.0
        %3163 = vmatmul.mubr.f32.gmra.mxu0 %v3023
        %v3164 = vpop.f32.mrf.mxu0
        %v3165 = vadd.f32 %v801, %v3164
        %v3166 = vpop.f32.mrf.mxu0
        %3167 = vmatprep.mubr.f32.mxu0 0.0
        %3168 = vmatmul.mubr.f32.gmra.mxu0 %v3026
        %v3169 = vpop.f32.mrf.mxu0
        %v3170 = vadd.f32 %v801, %v3169
        %v3171 = vpop.f32.mrf.mxu0
        %3172 = vdwg.mxu0
        %v3173 = vmax.f32 %v3095, 0.0
        %v3174 = vmax.f32 %v3100, 0.0
        %v3175 = vmax.f32 %v3105, 0.0
        %v3176 = vmax.f32 %v3110, 0.0
        %v3177 = vmax.f32 %v3115, 0.0
        %v3178 = vmax.f32 %v3120, 0.0
        %v3179 = vmax.f32 %v3125, 0.0
        %v3180 = vmax.f32 %v3130, 0.0
        %v3181 = vmax.f32 %v3135, 0.0
        %v3182 = vmax.f32 %v3140, 0.0
        %v3183 = vmax.f32 %v3145, 0.0
        %v3184 = vmax.f32 %v3150, 0.0
        %v3185 = vmax.f32 %v3155, 0.0
        %v3186 = vmax.f32 %v3160, 0.0
        %v3187 = vmax.f32 %v3165, 0.0
        %v3188 = vmax.f32 %v3170, 0.0
        %v3190 = vsel %vm580, %v3173, 0
        %v3193 = vsel %vm580, %v3174, 0
        %v3196 = vsel %vm580, %v3175, 0
        %v3199 = vsel %vm580, %v3176, 0
        %v3202 = vsel %vm580, %v3177, 0
        %v3205 = vsel %vm580, %v3178, 0
        %v3208 = vsel %vm580, %v3179, 0
        %v3211 = vsel %vm580, %v3180, 0
        %v3214 = vsel %vm580, %v3181, 0
        %v3217 = vsel %vm580, %v3182, 0
        %v3220 = vsel %vm580, %v3183, 0
        %v3223 = vsel %vm580, %v3184, 0
        %v3226 = vsel %vm580, %v3185, 0
        %v3229 = vsel %vm580, %v3186, 0
        %v3232 = vsel %vm580, %v3187, 0
        %v3235 = vsel %vm580, %v3188, 0
        %3237 = vmatprep.subr.mxu0 0.0
        %3238 = vmatpush1.msra.mxu0 0.0
        %3239 = vmatprep.subr.mxu0 0.0
        %3240 = vmatpush1.msra.mxu0 0.0
        %3241 = vmatprep.subr.mxu0 0.0
        %3242 = vmatpush1.msra.mxu0 0.0
        %3243 = vmatprep.subr.mxu0 0.0
        %3244 = vmatpush1.msra.mxu0 0.0
        %3245 = vmatprep.subr.mxu0 0.0
        %3246 = vmatpush1.msra.mxu0 0.0
        %3247 = vmatprep.subr.mxu0 0.0
        %3248 = vmatpush1.msra.mxu0 0.0
        %3249 = vmatprep.subr.mxu0 0.0
        %3250 = vmatpush1.msra.mxu0 0.0
        %3251 = vmatprep.subr.mxu0 0.0
        %3252 = vmatpush1.msra.mxu0 0.0
        %3253 = vmatprep.subr.mxu0 0.0
        %3254 = vmatpush1.msra.mxu0 0.0
        %3255 = vmatprep.subr.mxu0 0.0
        %3256 = vmatpush1.msra.mxu0 0.0
        %3257 = vmatprep.subr.mxu0 0.0
        %3258 = vmatpush1.msra.mxu0 0.0
        %3259 = vmatprep.subr.mxu0 0.0
        %3260 = vmatpush1.msra.mxu0 0.0
        %3261 = vmatprep.subr.mxu0 0.0
        %3262 = vmatpush1.msra.mxu0 %v1016
        %3263 = vmatprep.subr.mxu0 0.0
        %3264 = vmatpush1.msra.mxu0 %v1015
        %3265 = vmatprep.subr.mxu0 0.0
        %3266 = vmatpush1.msra.mxu0 %v1014
        %3267 = vmatprep.subr.mxu0 0.0
        %3268 = vmatpush1.msra.mxu0 %v1013
        %3269 = vmatprep.subr.mxu0 0.0
        %3270 = vmatpush2.msra.mxu0 0.0
        %3271 = vmatprep.subr.mxu0 0.0
        %3272 = vmatpush2.msra.mxu0 0.0
        %3273 = vmatprep.subr.mxu0 0.0
        %3274 = vmatpush2.msra.mxu0 0.0
        %3275 = vmatprep.subr.mxu0 0.0
        %3276 = vmatpush2.msra.mxu0 0.0
        %3277 = vmatprep.subr.mxu0 0.0
        %3278 = vmatpush2.msra.mxu0 0.0
        %3279 = vmatprep.subr.mxu0 0.0
        %3280 = vmatpush2.msra.mxu0 0.0
        %3281 = vmatprep.subr.mxu0 0.0
        %3282 = vmatpush2.msra.mxu0 0.0
        %3283 = vmatprep.subr.mxu0 0.0
        %3284 = vmatpush2.msra.mxu0 0.0
        %3285 = vmatprep.subr.mxu0 0.0
        %3286 = vmatpush2.msra.mxu0 0.0
        %3287 = vmatprep.subr.mxu0 0.0
        %3288 = vmatpush2.msra.mxu0 0.0
        %3289 = vmatprep.subr.mxu0 0.0
        %3290 = vmatpush2.msra.mxu0 0.0
        %3291 = vmatprep.subr.mxu0 0.0
        %3292 = vmatpush2.msra.mxu0 0.0
        %3293 = vmatprep.subr.mxu0 0.0
        %3294 = vmatpush2.msra.mxu0 0.0
        %3295 = vmatprep.subr.mxu0 0.0
        %3296 = vmatpush2.msra.mxu0 0.0
        %3297 = vmatprep.subr.mxu0 0.0
        %3298 = vmatpush2.msra.mxu0 0.0
        %3299 = vmatprep.subr.mxu0 0.0
        %3300 = vmatpush2.msra.mxu0 0.0
        %3301 = vmatprep.mubr.f32.mxu0 0.0
        %3302 = vmatmul.mubr.f32.gmra.mxu0 %v3190
        %v3303 = vpop.f32.mrf.mxu0
        %v3304 = vadd.f32 %v1023, %v3303
        %v3305 = vpop.f32.mrf.mxu0
        %3306 = vmatprep.mubr.f32.mxu0 0.0
        %3307 = vmatmul.mubr.f32.gmra.mxu0 %v3193
        %v3308 = vpop.f32.mrf.mxu0
        %v3309 = vadd.f32 %v1023, %v3308
        %v3310 = vpop.f32.mrf.mxu0
        %3311 = vmatprep.mubr.f32.mxu0 0.0
        %3312 = vmatmul.mubr.f32.gmra.mxu0 %v3196
        %v3313 = vpop.f32.mrf.mxu0
        %v3314 = vadd.f32 %v1023, %v3313
        %v3315 = vpop.f32.mrf.mxu0
        %3316 = vmatprep.mubr.f32.mxu0 0.0
        %3317 = vmatmul.mubr.f32.gmra.mxu0 %v3199
        %v3318 = vpop.f32.mrf.mxu0
        %v3319 = vadd.f32 %v1023, %v3318
        %v3320 = vpop.f32.mrf.mxu0
        %3321 = vmatprep.mubr.f32.mxu0 0.0
        %3322 = vmatmul.mubr.f32.gmra.mxu0 %v3202
        %v3323 = vpop.f32.mrf.mxu0
        %v3324 = vadd.f32 %v1023, %v3323
        %v3325 = vpop.f32.mrf.mxu0
        %3326 = vmatprep.mubr.f32.mxu0 0.0
        %3327 = vmatmul.mubr.f32.gmra.mxu0 %v3205
        %v3328 = vpop.f32.mrf.mxu0
        %v3329 = vadd.f32 %v1023, %v3328
        %v3330 = vpop.f32.mrf.mxu0
        %3331 = vmatprep.mubr.f32.mxu0 0.0
        %3332 = vmatmul.mubr.f32.gmra.mxu0 %v3208
        %v3333 = vpop.f32.mrf.mxu0
        %v3334 = vadd.f32 %v1023, %v3333
        %v3335 = vpop.f32.mrf.mxu0
        %3336 = vmatprep.mubr.f32.mxu0 0.0
        %3337 = vmatmul.mubr.f32.gmra.mxu0 %v3211
        %v3338 = vpop.f32.mrf.mxu0
        %v3339 = vadd.f32 %v1023, %v3338
        %v3340 = vpop.f32.mrf.mxu0
        %3341 = vmatprep.mubr.f32.mxu0 0.0
        %3342 = vmatmul.mubr.f32.gmra.mxu0 %v3214
        %v3343 = vpop.f32.mrf.mxu0
        %v3344 = vadd.f32 %v1023, %v3343
        %v3345 = vpop.f32.mrf.mxu0
        %3346 = vmatprep.mubr.f32.mxu0 0.0
        %3347 = vmatmul.mubr.f32.gmra.mxu0 %v3217
        %v3348 = vpop.f32.mrf.mxu0
        %v3349 = vadd.f32 %v1023, %v3348
        %v3350 = vpop.f32.mrf.mxu0
        %3351 = vmatprep.mubr.f32.mxu0 0.0
        %3352 = vmatmul.mubr.f32.gmra.mxu0 %v3220
        %v3353 = vpop.f32.mrf.mxu0
        %v3354 = vadd.f32 %v1023, %v3353
        %v3355 = vpop.f32.mrf.mxu0
        %3356 = vmatprep.mubr.f32.mxu0 0.0
        %3357 = vmatmul.mubr.f32.gmra.mxu0 %v3223
        %v3358 = vpop.f32.mrf.mxu0
        %v3359 = vadd.f32 %v1023, %v3358
        %v3360 = vpop.f32.mrf.mxu0
        %3361 = vmatprep.mubr.f32.mxu0 0.0
        %3362 = vmatmul.mubr.f32.gmra.mxu0 %v3226
        %v3363 = vpop.f32.mrf.mxu0
        %v3364 = vadd.f32 %v1023, %v3363
        %v3365 = vpop.f32.mrf.mxu0
        %3366 = vmatprep.mubr.f32.mxu0 0.0
        %3367 = vmatmul.mubr.f32.gmra.mxu0 %v3229
        %v3368 = vpop.f32.mrf.mxu0
        %v3369 = vadd.f32 %v1023, %v3368
        %v3370 = vpop.f32.mrf.mxu0
        %3371 = vmatprep.mubr.f32.mxu0 0.0
        %3372 = vmatmul.mubr.f32.gmra.mxu0 %v3232
        %v3373 = vpop.f32.mrf.mxu0
        %v3374 = vadd.f32 %v1023, %v3373
        %v3375 = vpop.f32.mrf.mxu0
        %3376 = vmatprep.mubr.f32.mxu0 0.0
        %3377 = vmatmul.mubr.f32.gmra.mxu0 %v3235
        %v3378 = vpop.f32.mrf.mxu0
        %v3379 = vadd.f32 %v1023, %v3378
        %v3380 = vpop.f32.mrf.mxu0
        %3381 = vdwg.mxu0
        %v3382 = vmax.f32 %v3304, 0.0
        %v3383 = vmax.f32 %v3309, 0.0
        %v3384 = vmax.f32 %v3314, 0.0
        %v3385 = vmax.f32 %v3319, 0.0
        %v3386 = vmax.f32 %v3324, 0.0
        %v3387 = vmax.f32 %v3329, 0.0
        %v3388 = vmax.f32 %v3334, 0.0
        %v3389 = vmax.f32 %v3339, 0.0
        %v3390 = vmax.f32 %v3344, 0.0
        %v3391 = vmax.f32 %v3349, 0.0
        %v3392 = vmax.f32 %v3354, 0.0
        %v3393 = vmax.f32 %v3359, 0.0
        %v3394 = vmax.f32 %v3364, 0.0
        %v3395 = vmax.f32 %v3369, 0.0
        %v3396 = vmax.f32 %v3374, 0.0
        %v3397 = vmax.f32 %v3379, 0.0
        %v3398 = vld [vmem:[%s7] sm:$0xff]
        %v3399 = vld [vmem:[%s7 + $0x8] sm:$0xff]
        %v3400 = vld [vmem:[%s7 + $0x10] sm:$0xff]
        %v3401 = vld [vmem:[%s7 + $0x18] sm:$0xff]
        %v3402 = vld [vmem:[%s7 + $0x20] sm:$0xff]
        %v3403 = vld [vmem:[%s7 + $0x28] sm:$0xff]
        %v3404 = vld [vmem:[%s7 + $0x30] sm:$0xff]
        %v3405 = vld [vmem:[%s7 + $0x38] sm:$0xff]
        %v3406 = vld [vmem:[%s8] sm:$0x3]
        %v3408 = vlaneseq
        %v3409 = vshrl.u32 %v3408, 7
        %v3410 = vsub.s32 0, %v3409
        %v3411 = vrot.slane %v3406, %v3410
        %v3412 = vlaneseq
        %v3413 = vshrl.u32 %v3412, 7
        %v3414 = vsub.s32 1, %v3413
        %v3415 = vrot.slane %v3406, %v3414
        %v3419 = vsel %vm580, %v3382, 0
        %v3422 = vsel %vm580, %v3383, 0
        %v3425 = vsel %vm580, %v3384, 0
        %v3428 = vsel %vm580, %v3385, 0
        %v3431 = vsel %vm580, %v3386, 0
        %v3434 = vsel %vm580, %v3387, 0
        %v3437 = vsel %vm580, %v3388, 0
        %v3440 = vsel %vm580, %v3389, 0
        %v3443 = vsel %vm580, %v3390, 0
        %v3446 = vsel %vm580, %v3391, 0
        %v3449 = vsel %vm580, %v3392, 0
        %v3452 = vsel %vm580, %v3393, 0
        %v3455 = vsel %vm580, %v3394, 0
        %v3458 = vsel %vm580, %v3395, 0
        %v3461 = vsel %vm580, %v3396, 0
        %v3464 = vsel %vm580, %v3397, 0
        %3466 = vmatprep.subr.mxu0 0.0
        %3467 = vmatpush1.msra.mxu0 0.0
        %3468 = vmatprep.subr.mxu0 0.0
        %3469 = vmatpush1.msra.mxu0 0.0
        %3470 = vmatprep.subr.mxu0 0.0
        %3471 = vmatpush1.msra.mxu0 0.0
        %3472 = vmatprep.subr.mxu0 0.0
        %3473 = vmatpush1.msra.mxu0 0.0
        %3474 = vmatprep.subr.mxu0 0.0
        %3475 = vmatpush1.msra.mxu0 0.0
        %3476 = vmatprep.subr.mxu0 0.0
        %3477 = vmatpush1.msra.mxu0 0.0
        %3478 = vmatprep.subr.mxu0 0.0
        %3479 = vmatpush1.msra.mxu0 0.0
        %3480 = vmatprep.subr.mxu0 0.0
        %3481 = vmatpush1.msra.mxu0 0.0
        %3482 = vmatprep.subr.mxu0 0.0
        %3483 = vmatpush1.msra.mxu0 0.0
        %3484 = vmatprep.subr.mxu0 0.0
        %3485 = vmatpush1.msra.mxu0 0.0
        %3486 = vmatprep.subr.mxu0 0.0
        %3487 = vmatpush1.msra.mxu0 0.0
        %3488 = vmatprep.subr.mxu0 0.0
        %3489 = vmatpush1.msra.mxu0 0.0
        %3490 = vmatprep.subr.mxu0 %v3405
        %3491 = vmatpush1.msra.mxu0 %v3404
        %3492 = vmatprep.subr.mxu0 %v3403
        %3493 = vmatpush1.msra.mxu0 %v3402
        %3494 = vmatprep.subr.mxu0 %v3401
        %3495 = vmatpush1.msra.mxu0 %v3400
        %3496 = vmatprep.subr.mxu0 %v3399
        %3497 = vmatpush1.msra.mxu0 %v3398
        %3498 = vmatprep.subr.mxu0 0.0
        %3499 = vmatpush2.msra.mxu0 0.0
        %3500 = vmatprep.subr.mxu0 0.0
        %3501 = vmatpush2.msra.mxu0 0.0
        %3502 = vmatprep.subr.mxu0 0.0
        %3503 = vmatpush2.msra.mxu0 0.0
        %3504 = vmatprep.subr.mxu0 0.0
        %3505 = vmatpush2.msra.mxu0 0.0
        %3506 = vmatprep.subr.mxu0 0.0
        %3507 = vmatpush2.msra.mxu0 0.0
        %3508 = vmatprep.subr.mxu0 0.0
        %3509 = vmatpush2.msra.mxu0 0.0
        %3510 = vmatprep.subr.mxu0 0.0
        %3511 = vmatpush2.msra.mxu0 0.0
        %3512 = vmatprep.subr.mxu0 0.0
        %3513 = vmatpush2.msra.mxu0 0.0
        %3514 = vmatprep.subr.mxu0 0.0
        %3515 = vmatpush2.msra.mxu0 0.0
        %3516 = vmatprep.subr.mxu0 0.0
        %3517 = vmatpush2.msra.mxu0 0.0
        %3518 = vmatprep.subr.mxu0 0.0
        %3519 = vmatpush2.msra.mxu0 0.0
        %3520 = vmatprep.subr.mxu0 0.0
        %3521 = vmatpush2.msra.mxu0 0.0
        %3522 = vmatprep.subr.mxu0 0.0
        %3523 = vmatpush2.msra.mxu0 0.0
        %3524 = vmatprep.subr.mxu0 0.0
        %3525 = vmatpush2.msra.mxu0 0.0
        %3526 = vmatprep.subr.mxu0 0.0
        %3527 = vmatpush2.msra.mxu0 0.0
        %3528 = vmatprep.subr.mxu0 0.0
        %3529 = vmatpush2.msra.mxu0 0.0
        %3530 = vmatprep.mubr.f32.mxu0 0.0
        %3531 = vmatmul.mubr.f32.gmra.mxu0 %v3419
        %v3532 = vpop.f32.mrf.mxu0
        %v3533 = vadd.f32 %v3411, %v3532
        %v3534 = vpop.f32.mrf.mxu0
        %v3535 = vadd.f32 %v3415, %v3534
        %3536 = vmatprep.mubr.f32.mxu0 0.0
        %3537 = vmatmul.mubr.f32.gmra.mxu0 %v3422
        %v3538 = vpop.f32.mrf.mxu0
        %v3539 = vadd.f32 %v3411, %v3538
        %v3540 = vpop.f32.mrf.mxu0
        %v3541 = vadd.f32 %v3415, %v3540
        %3542 = vmatprep.mubr.f32.mxu0 0.0
        %3543 = vmatmul.mubr.f32.gmra.mxu0 %v3425
        %v3544 = vpop.f32.mrf.mxu0
        %v3545 = vadd.f32 %v3411, %v3544
        %v3546 = vpop.f32.mrf.mxu0
        %v3547 = vadd.f32 %v3415, %v3546
        %3548 = vmatprep.mubr.f32.mxu0 0.0
        %3549 = vmatmul.mubr.f32.gmra.mxu0 %v3428
        %v3550 = vpop.f32.mrf.mxu0
        %v3551 = vadd.f32 %v3411, %v3550
        %v3552 = vpop.f32.mrf.mxu0
        %v3553 = vadd.f32 %v3415, %v3552
        %3554 = vmatprep.mubr.f32.mxu0 0.0
        %3555 = vmatmul.mubr.f32.gmra.mxu0 %v3431
        %v3556 = vpop.f32.mrf.mxu0
        %v3557 = vadd.f32 %v3411, %v3556
        %v3558 = vpop.f32.mrf.mxu0
        %v3559 = vadd.f32 %v3415, %v3558
        %3560 = vmatprep.mubr.f32.mxu0 0.0
        %3561 = vmatmul.mubr.f32.gmra.mxu0 %v3434
        %v3562 = vpop.f32.mrf.mxu0
        %v3563 = vadd.f32 %v3411, %v3562
        %v3564 = vpop.f32.mrf.mxu0
        %v3565 = vadd.f32 %v3415, %v3564
        %3566 = vmatprep.mubr.f32.mxu0 0.0
        %3567 = vmatmul.mubr.f32.gmra.mxu0 %v3437
        %v3568 = vpop.f32.mrf.mxu0
        %v3569 = vadd.f32 %v3411, %v3568
        %v3570 = vpop.f32.mrf.mxu0
        %v3571 = vadd.f32 %v3415, %v3570
        %3572 = vmatprep.mubr.f32.mxu0 0.0
        %3573 = vmatmul.mubr.f32.gmra.mxu0 %v3440
        %v3574 = vpop.f32.mrf.mxu0
        %v3575 = vadd.f32 %v3411, %v3574
        %v3576 = vpop.f32.mrf.mxu0
        %v3577 = vadd.f32 %v3415, %v3576
        %3578 = vmatprep.mubr.f32.mxu0 0.0
        %3579 = vmatmul.mubr.f32.gmra.mxu0 %v3443
        %v3580 = vpop.f32.mrf.mxu0
        %v3581 = vadd.f32 %v3411, %v3580
        %v3582 = vpop.f32.mrf.mxu0
        %v3583 = vadd.f32 %v3415, %v3582
        %3584 = vmatprep.mubr.f32.mxu0 0.0
        %3585 = vmatmul.mubr.f32.gmra.mxu0 %v3446
        %v3586 = vpop.f32.mrf.mxu0
        %v3587 = vadd.f32 %v3411, %v3586
        %v3588 = vpop.f32.mrf.mxu0
        %v3589 = vadd.f32 %v3415, %v3588
        %3590 = vmatprep.mubr.f32.mxu0 0.0
        %3591 = vmatmul.mubr.f32.gmra.mxu0 %v3449
        %v3592 = vpop.f32.mrf.mxu0
        %v3593 = vadd.f32 %v3411, %v3592
        %v3594 = vpop.f32.mrf.mxu0
        %v3595 = vadd.f32 %v3415, %v3594
        %3596 = vmatprep.mubr.f32.mxu0 0.0
        %3597 = vmatmul.mubr.f32.gmra.mxu0 %v3452
        %v3598 = vpop.f32.mrf.mxu0
        %v3599 = vadd.f32 %v3411, %v3598
        %v3600 = vpop.f32.mrf.mxu0
        %v3601 = vadd.f32 %v3415, %v3600
        %3602 = vmatprep.mubr.f32.mxu0 0.0
        %3603 = vmatmul.mubr.f32.gmra.mxu0 %v3455
        %v3604 = vpop.f32.mrf.mxu0
        %v3605 = vadd.f32 %v3411, %v3604
        %v3606 = vpop.f32.mrf.mxu0
        %v3607 = vadd.f32 %v3415, %v3606
        %3608 = vmatprep.mubr.f32.mxu0 0.0
        %3609 = vmatmul.mubr.f32.gmra.mxu0 %v3458
        %v3610 = vpop.f32.mrf.mxu0
        %v3611 = vadd.f32 %v3411, %v3610
        %v3612 = vpop.f32.mrf.mxu0
        %v3613 = vadd.f32 %v3415, %v3612
        %3614 = vmatprep.mubr.f32.mxu0 0.0
        %3615 = vmatmul.mubr.f32.gmra.mxu0 %v3461
        %v3616 = vpop.f32.mrf.mxu0
        %v3617 = vadd.f32 %v3411, %v3616
        %v3618 = vpop.f32.mrf.mxu0
        %v3619 = vadd.f32 %v3415, %v3618
        %3620 = vmatprep.mubr.f32.mxu0 0.0
        %3621 = vmatmul.mubr.f32.gmra.mxu0 %v3464
        %v3622 = vpop.f32.mrf.mxu0
        %v3623 = vadd.f32 %v3411, %v3622
        %v3624 = vpop.f32.mrf.mxu0
        %v3625 = vadd.f32 %v3415, %v3624
        %3626 = vdwg.mxu0
        %v3627 = vadd.f32 %v3533, 0.0
        %v3628 = vadd.f32 %v3539, 0.0
        %v3629 = vadd.f32 %v3545, 0.0
        %v3630 = vadd.f32 %v3551, 0.0
        %v3631 = vadd.f32 %v3557, 0.0
        %v3632 = vadd.f32 %v3563, 0.0
        %v3633 = vadd.f32 %v3569, 0.0
        %v3634 = vadd.f32 %v3575, 0.0
        %v3635 = vadd.f32 %v3581, 0.0
        %v3636 = vadd.f32 %v3587, 0.0
        %v3637 = vadd.f32 %v3593, 0.0
        %v3638 = vadd.f32 %v3599, 0.0
        %v3639 = vadd.f32 %v3605, 0.0
        %v3640 = vadd.f32 %v3611, 0.0
        %v3641 = vadd.f32 %v3617, 0.0
        %v3642 = vadd.f32 %v3623, 0.0
        %v3643 = vsub.f32 %v2546, %v3535
        %v3644 = vsub.f32 %v2547, %v3541
        %v3645 = vsub.f32 %v2548, %v3547
        %v3646 = vsub.f32 %v2549, %v3553
        %v3647 = vsub.f32 %v2550, %v3559
        %v3648 = vsub.f32 %v2551, %v3565
        %v3649 = vsub.f32 %v2552, %v3571
        %v3650 = vsub.f32 %v2553, %v3577
        %v3651 = vsub.f32 %v2554, %v3583
        %v3652 = vsub.f32 %v2555, %v3589
        %v3653 = vsub.f32 %v2556, %v3595
        %v3654 = vsub.f32 %v2557, %v3601
        %v3655 = vsub.f32 %v2558, %v3607
        %v3656 = vsub.f32 %v2559, %v3613
        %v3657 = vsub.f32 %v2560, %v3619
        %v3658 = vsub.f32 %v2561, %v3625
        %v3660 = vsel %vm359, %v3643, 0
        %v3663 = vsel %vm359, %v3644, 0
        %v3666 = vsel %vm359, %v3645, 0
        %v3669 = vsel %vm359, %v3646, 0
        %v3672 = vsel %vm359, %v3647, 0
        %v3675 = vsel %vm359, %v3648, 0
        %v3678 = vsel %vm359, %v3649, 0
        %v3681 = vsel %vm359, %v3650, 0
        %v3684 = vsel %vm359, %v3651, 0
        %v3687 = vsel %vm359, %v3652, 0
        %v3690 = vsel %vm359, %v3653, 0
        %v3693 = vsel %vm359, %v3654, 0
        %v3696 = vsel %vm359, %v3655, 0
        %v3699 = vsel %vm359, %v3656, 0
        %v3702 = vsel %vm359, %v3657, 0
        %v3705 = vsel %vm359, %v3658, 0
        %3707 = vmatprep.subr.mxu0 0.0
        %3708 = vmatpush1.msra.mxu0 0.0
        %3709 = vmatprep.subr.mxu0 0.0
        %3710 = vmatpush1.msra.mxu0 0.0
        %3711 = vmatprep.subr.mxu0 0.0
        %3712 = vmatpush1.msra.mxu0 0.0
        %3713 = vmatprep.subr.mxu0 0.0
        %3714 = vmatpush1.msra.mxu0 0.0
        %3715 = vmatprep.subr.mxu0 0.0
        %3716 = vmatpush1.msra.mxu0 0.0
        %3717 = vmatprep.subr.mxu0 0.0
        %3718 = vmatpush1.msra.mxu0 0.0
        %3719 = vmatprep.subr.mxu0 0.0
        %3720 = vmatpush1.msra.mxu0 0.0
        %3721 = vmatprep.subr.mxu0 0.0
        %3722 = vmatpush1.msra.mxu0 0.0
        %3723 = vmatprep.subr.mxu0 0.0
        %3724 = vmatpush1.msra.mxu0 0.0
        %3725 = vmatprep.subr.mxu0 0.0
        %3726 = vmatpush1.msra.mxu0 0.0
        %3727 = vmatprep.subr.mxu0 0.0
        %3728 = vmatpush1.msra.mxu0 0.0
        %3729 = vmatprep.subr.mxu0 0.0
        %3730 = vmatpush1.msra.mxu0 0.0
        %3731 = vmatprep.subr.mxu0 0.0
        %3732 = vmatpush1.msra.mxu0 0.0
        %3733 = vmatprep.subr.mxu0 0.0
        %3734 = vmatpush1.msra.mxu0 0.0
        %3735 = vmatprep.subr.mxu0 0.0
        %3736 = vmatpush1.msra.mxu0 %v1456
        %3737 = vmatprep.subr.mxu0 0.0
        %3738 = vmatpush1.msra.mxu0 %v1455
        %3739 = vmatprep.subr.mxu0 0.0
        %3740 = vmatpush2.msra.mxu0 0.0
        %3741 = vmatprep.subr.mxu0 0.0
        %3742 = vmatpush2.msra.mxu0 0.0
        %3743 = vmatprep.subr.mxu0 0.0
        %3744 = vmatpush2.msra.mxu0 0.0
        %3745 = vmatprep.subr.mxu0 0.0
        %3746 = vmatpush2.msra.mxu0 0.0
        %3747 = vmatprep.subr.mxu0 0.0
        %3748 = vmatpush2.msra.mxu0 0.0
        %3749 = vmatprep.subr.mxu0 0.0
        %3750 = vmatpush2.msra.mxu0 0.0
        %3751 = vmatprep.subr.mxu0 0.0
        %3752 = vmatpush2.msra.mxu0 0.0
        %3753 = vmatprep.subr.mxu0 0.0
        %3754 = vmatpush2.msra.mxu0 0.0
        %3755 = vmatprep.subr.mxu0 0.0
        %3756 = vmatpush2.msra.mxu0 0.0
        %3757 = vmatprep.subr.mxu0 0.0
        %3758 = vmatpush2.msra.mxu0 0.0
        %3759 = vmatprep.subr.mxu0 0.0
        %3760 = vmatpush2.msra.mxu0 0.0
        %3761 = vmatprep.subr.mxu0 0.0
        %3762 = vmatpush2.msra.mxu0 0.0
        %3763 = vmatprep.subr.mxu0 0.0
        %3764 = vmatpush2.msra.mxu0 0.0
        %3765 = vmatprep.subr.mxu0 0.0
        %3766 = vmatpush2.msra.mxu0 0.0
        %3767 = vmatprep.subr.mxu0 0.0
        %3768 = vmatpush2.msra.mxu0 0.0
        %3769 = vmatprep.subr.mxu0 0.0
        %3770 = vmatpush2.msra.mxu0 0.0
        %3771 = vmatprep.mubr.f32.mxu0 0.0
        %3772 = vmatmul.mubr.f32.gmra.mxu0 %v3660
        %v3773 = vpop.f32.mrf.mxu0
        %v3774 = vadd.f32 %v1463, %v3773
        %v3775 = vpop.f32.mrf.mxu0
        %3776 = vmatprep.mubr.f32.mxu0 0.0
        %3777 = vmatmul.mubr.f32.gmra.mxu0 %v3663
        %v3778 = vpop.f32.mrf.mxu0
        %v3779 = vadd.f32 %v1463, %v3778
        %v3780 = vpop.f32.mrf.mxu0
        %3781 = vmatprep.mubr.f32.mxu0 0.0
        %3782 = vmatmul.mubr.f32.gmra.mxu0 %v3666
        %v3783 = vpop.f32.mrf.mxu0
        %v3784 = vadd.f32 %v1463, %v3783
        %v3785 = vpop.f32.mrf.mxu0
        %3786 = vmatprep.mubr.f32.mxu0 0.0
        %3787 = vmatmul.mubr.f32.gmra.mxu0 %v3669
        %v3788 = vpop.f32.mrf.mxu0
        %v3789 = vadd.f32 %v1463, %v3788
        %v3790 = vpop.f32.mrf.mxu0
        %3791 = vmatprep.mubr.f32.mxu0 0.0
        %3792 = vmatmul.mubr.f32.gmra.mxu0 %v3672
        %v3793 = vpop.f32.mrf.mxu0
        %v3794 = vadd.f32 %v1463, %v3793
        %v3795 = vpop.f32.mrf.mxu0
        %3796 = vmatprep.mubr.f32.mxu0 0.0
        %3797 = vmatmul.mubr.f32.gmra.mxu0 %v3675
        %v3798 = vpop.f32.mrf.mxu0
        %v3799 = vadd.f32 %v1463, %v3798
        %v3800 = vpop.f32.mrf.mxu0
        %3801 = vmatprep.mubr.f32.mxu0 0.0
        %3802 = vmatmul.mubr.f32.gmra.mxu0 %v3678
        %v3803 = vpop.f32.mrf.mxu0
        %v3804 = vadd.f32 %v1463, %v3803
        %v3805 = vpop.f32.mrf.mxu0
        %3806 = vmatprep.mubr.f32.mxu0 0.0
        %3807 = vmatmul.mubr.f32.gmra.mxu0 %v3681
        %v3808 = vpop.f32.mrf.mxu0
        %v3809 = vadd.f32 %v1463, %v3808
        %v3810 = vpop.f32.mrf.mxu0
        %3811 = vmatprep.mubr.f32.mxu0 0.0
        %3812 = vmatmul.mubr.f32.gmra.mxu0 %v3684
        %v3813 = vpop.f32.mrf.mxu0
        %v3814 = vadd.f32 %v1463, %v3813
        %v3815 = vpop.f32.mrf.mxu0
        %3816 = vmatprep.mubr.f32.mxu0 0.0
        %3817 = vmatmul.mubr.f32.gmra.mxu0 %v3687
        %v3818 = vpop.f32.mrf.mxu0
        %v3819 = vadd.f32 %v1463, %v3818
        %v3820 = vpop.f32.mrf.mxu0
        %3821 = vmatprep.mubr.f32.mxu0 0.0
        %3822 = vmatmul.mubr.f32.gmra.mxu0 %v3690
        %v3823 = vpop.f32.mrf.mxu0
        %v3824 = vadd.f32 %v1463, %v3823
        %v3825 = vpop.f32.mrf.mxu0
        %3826 = vmatprep.mubr.f32.mxu0 0.0
        %3827 = vmatmul.mubr.f32.gmra.mxu0 %v3693
        %v3828 = vpop.f32.mrf.mxu0
        %v3829 = vadd.f32 %v1463, %v3828
        %v3830 = vpop.f32.mrf.mxu0
        %3831 = vmatprep.mubr.f32.mxu0 0.0
        %3832 = vmatmul.mubr.f32.gmra.mxu0 %v3696
        %v3833 = vpop.f32.mrf.mxu0
        %v3834 = vadd.f32 %v1463, %v3833
        %v3835 = vpop.f32.mrf.mxu0
        %3836 = vmatprep.mubr.f32.mxu0 0.0
        %3837 = vmatmul.mubr.f32.gmra.mxu0 %v3699
        %v3838 = vpop.f32.mrf.mxu0
        %v3839 = vadd.f32 %v1463, %v3838
        %v3840 = vpop.f32.mrf.mxu0
        %3841 = vmatprep.mubr.f32.mxu0 0.0
        %3842 = vmatmul.mubr.f32.gmra.mxu0 %v3702
        %v3843 = vpop.f32.mrf.mxu0
        %v3844 = vadd.f32 %v1463, %v3843
        %v3845 = vpop.f32.mrf.mxu0
        %3846 = vmatprep.mubr.f32.mxu0 0.0
        %3847 = vmatmul.mubr.f32.gmra.mxu0 %v3705
        %v3848 = vpop.f32.mrf.mxu0
        %v3849 = vadd.f32 %v1463, %v3848
        %v3850 = vpop.f32.mrf.mxu0
        %3851 = vdwg.mxu0
        %v3852 = vmax.f32 %v3774, 0.0
        %v3853 = vmax.f32 %v3779, 0.0
        %v3854 = vmax.f32 %v3784, 0.0
        %v3855 = vmax.f32 %v3789, 0.0
        %v3856 = vmax.f32 %v3794, 0.0
        %v3857 = vmax.f32 %v3799, 0.0
        %v3858 = vmax.f32 %v3804, 0.0
        %v3859 = vmax.f32 %v3809, 0.0
        %v3860 = vmax.f32 %v3814, 0.0
        %v3861 = vmax.f32 %v3819, 0.0
        %v3862 = vmax.f32 %v3824, 0.0
        %v3863 = vmax.f32 %v3829, 0.0
        %v3864 = vmax.f32 %v3834, 0.0
        %v3865 = vmax.f32 %v3839, 0.0
        %v3866 = vmax.f32 %v3844, 0.0
        %v3867 = vmax.f32 %v3849, 0.0
        %v3869 = vsel %vm580, %v3852, 0
        %v3872 = vsel %vm580, %v3853, 0
        %v3875 = vsel %vm580, %v3854, 0
        %v3878 = vsel %vm580, %v3855, 0
        %v3881 = vsel %vm580, %v3856, 0
        %v3884 = vsel %vm580, %v3857, 0
        %v3887 = vsel %vm580, %v3858, 0
        %v3890 = vsel %vm580, %v3859, 0
        %v3893 = vsel %vm580, %v3860, 0
        %v3896 = vsel %vm580, %v3861, 0
        %v3899 = vsel %vm580, %v3862, 0
        %v3902 = vsel %vm580, %v3863, 0
        %v3905 = vsel %vm580, %v3864, 0
        %v3908 = vsel %vm580, %v3865, 0
        %v3911 = vsel %vm580, %v3866, 0
        %v3914 = vsel %vm580, %v3867, 0
        %3916 = vmatprep.subr.mxu0 0.0
        %3917 = vmatpush1.msra.mxu0 0.0
        %3918 = vmatprep.subr.mxu0 0.0
        %3919 = vmatpush1.msra.mxu0 0.0
        %3920 = vmatprep.subr.mxu0 0.0
        %3921 = vmatpush1.msra.mxu0 0.0
        %3922 = vmatprep.subr.mxu0 0.0
        %3923 = vmatpush1.msra.mxu0 0.0
        %3924 = vmatprep.subr.mxu0 0.0
        %3925 = vmatpush1.msra.mxu0 0.0
        %3926 = vmatprep.subr.mxu0 0.0
        %3927 = vmatpush1.msra.mxu0 0.0
        %3928 = vmatprep.subr.mxu0 0.0
        %3929 = vmatpush1.msra.mxu0 0.0
        %3930 = vmatprep.subr.mxu0 0.0
        %3931 = vmatpush1.msra.mxu0 0.0
        %3932 = vmatprep.subr.mxu0 0.0
        %3933 = vmatpush1.msra.mxu0 0.0
        %3934 = vmatprep.subr.mxu0 0.0
        %3935 = vmatpush1.msra.mxu0 0.0
        %3936 = vmatprep.subr.mxu0 0.0
        %3937 = vmatpush1.msra.mxu0 0.0
        %3938 = vmatprep.subr.mxu0 0.0
        %3939 = vmatpush1.msra.mxu0 0.0
        %3940 = vmatprep.subr.mxu0 0.0
        %3941 = vmatpush1.msra.mxu0 %v1678
        %3942 = vmatprep.subr.mxu0 0.0
        %3943 = vmatpush1.msra.mxu0 %v1677
        %3944 = vmatprep.subr.mxu0 0.0
        %3945 = vmatpush1.msra.mxu0 %v1676
        %3946 = vmatprep.subr.mxu0 0.0
        %3947 = vmatpush1.msra.mxu0 %v1675
        %3948 = vmatprep.subr.mxu0 0.0
        %3949 = vmatpush2.msra.mxu0 0.0
        %3950 = vmatprep.subr.mxu0 0.0
        %3951 = vmatpush2.msra.mxu0 0.0
        %3952 = vmatprep.subr.mxu0 0.0
        %3953 = vmatpush2.msra.mxu0 0.0
        %3954 = vmatprep.subr.mxu0 0.0
        %3955 = vmatpush2.msra.mxu0 0.0
        %3956 = vmatprep.subr.mxu0 0.0
        %3957 = vmatpush2.msra.mxu0 0.0
        %3958 = vmatprep.subr.mxu0 0.0
        %3959 = vmatpush2.msra.mxu0 0.0
        %3960 = vmatprep.subr.mxu0 0.0
        %3961 = vmatpush2.msra.mxu0 0.0
        %3962 = vmatprep.subr.mxu0 0.0
        %3963 = vmatpush2.msra.mxu0 0.0
        %3964 = vmatprep.subr.mxu0 0.0
        %3965 = vmatpush2.msra.mxu0 0.0
        %3966 = vmatprep.subr.mxu0 0.0
        %3967 = vmatpush2.msra.mxu0 0.0
        %3968 = vmatprep.subr.mxu0 0.0
        %3969 = vmatpush2.msra.mxu0 0.0
        %3970 = vmatprep.subr.mxu0 0.0
        %3971 = vmatpush2.msra.mxu0 0.0
        %3972 = vmatprep.subr.mxu0 0.0
        %3973 = vmatpush2.msra.mxu0 0.0
        %3974 = vmatprep.subr.mxu0 0.0
        %3975 = vmatpush2.msra.mxu0 0.0
        %3976 = vmatprep.subr.mxu0 0.0
        %3977 = vmatpush2.msra.mxu0 0.0
        %3978 = vmatprep.subr.mxu0 0.0
        %3979 = vmatpush2.msra.mxu0 0.0
        %3980 = vmatprep.mubr.f32.mxu0 0.0
        %3981 = vmatmul.mubr.f32.gmra.mxu0 %v3869
        %v3982 = vpop.f32.mrf.mxu0
        %v3983 = vadd.f32 %v1685, %v3982
        %v3984 = vpop.f32.mrf.mxu0
        %3985 = vmatprep.mubr.f32.mxu0 0.0
        %3986 = vmatmul.mubr.f32.gmra.mxu0 %v3872
        %v3987 = vpop.f32.mrf.mxu0
        %v3988 = vadd.f32 %v1685, %v3987
        %v3989 = vpop.f32.mrf.mxu0
        %3990 = vmatprep.mubr.f32.mxu0 0.0
        %3991 = vmatmul.mubr.f32.gmra.mxu0 %v3875
        %v3992 = vpop.f32.mrf.mxu0
        %v3993 = vadd.f32 %v1685, %v3992
        %v3994 = vpop.f32.mrf.mxu0
        %3995 = vmatprep.mubr.f32.mxu0 0.0
        %3996 = vmatmul.mubr.f32.gmra.mxu0 %v3878
        %v3997 = vpop.f32.mrf.mxu0
        %v3998 = vadd.f32 %v1685, %v3997
        %v3999 = vpop.f32.mrf.mxu0
        %4000 = vmatprep.mubr.f32.mxu0 0.0
        %4001 = vmatmul.mubr.f32.gmra.mxu0 %v3881
        %v4002 = vpop.f32.mrf.mxu0
        %v4003 = vadd.f32 %v1685, %v4002
        %v4004 = vpop.f32.mrf.mxu0
        %4005 = vmatprep.mubr.f32.mxu0 0.0
        %4006 = vmatmul.mubr.f32.gmra.mxu0 %v3884
        %v4007 = vpop.f32.mrf.mxu0
        %v4008 = vadd.f32 %v1685, %v4007
        %v4009 = vpop.f32.mrf.mxu0
        %4010 = vmatprep.mubr.f32.mxu0 0.0
        %4011 = vmatmul.mubr.f32.gmra.mxu0 %v3887
        %v4012 = vpop.f32.mrf.mxu0
        %v4013 = vadd.f32 %v1685, %v4012
        %v4014 = vpop.f32.mrf.mxu0
        %4015 = vmatprep.mubr.f32.mxu0 0.0
        %4016 = vmatmul.mubr.f32.gmra.mxu0 %v3890
        %v4017 = vpop.f32.mrf.mxu0
        %v4018 = vadd.f32 %v1685, %v4017
        %v4019 = vpop.f32.mrf.mxu0
        %4020 = vmatprep.mubr.f32.mxu0 0.0
        %4021 = vmatmul.mubr.f32.gmra.mxu0 %v3893
        %v4022 = vpop.f32.mrf.mxu0
        %v4023 = vadd.f32 %v1685, %v4022
        %v4024 = vpop.f32.mrf.mxu0
        %4025 = vmatprep.mubr.f32.mxu0 0.0
        %4026 = vmatmul.mubr.f32.gmra.mxu0 %v3896
        %v4027 = vpop.f32.mrf.mxu0
        %v4028 = vadd.f32 %v1685, %v4027
        %v4029 = vpop.f32.mrf.mxu0
        %4030 = vmatprep.mubr.f32.mxu0 0.0
        %4031 = vmatmul.mubr.f32.gmra.mxu0 %v3899
        %v4032 = vpop.f32.mrf.mxu0
        %v4033 = vadd.f32 %v1685, %v4032
        %v4034 = vpop.f32.mrf.mxu0
        %4035 = vmatprep.mubr.f32.mxu0 0.0
        %4036 = vmatmul.mubr.f32.gmra.mxu0 %v3902
        %v4037 = vpop.f32.mrf.mxu0
        %v4038 = vadd.f32 %v1685, %v4037
        %v4039 = vpop.f32.mrf.mxu0
        %4040 = vmatprep.mubr.f32.mxu0 0.0
        %4041 = vmatmul.mubr.f32.gmra.mxu0 %v3905
        %v4042 = vpop.f32.mrf.mxu0
        %v4043 = vadd.f32 %v1685, %v4042
        %v4044 = vpop.f32.mrf.mxu0
        %4045 = vmatprep.mubr.f32.mxu0 0.0
        %4046 = vmatmul.mubr.f32.gmra.mxu0 %v3908
        %v4047 = vpop.f32.mrf.mxu0
        %v4048 = vadd.f32 %v1685, %v4047
        %v4049 = vpop.f32.mrf.mxu0
        %4050 = vmatprep.mubr.f32.mxu0 0.0
        %4051 = vmatmul.mubr.f32.gmra.mxu0 %v3911
        %v4052 = vpop.f32.mrf.mxu0
        %v4053 = vadd.f32 %v1685, %v4052
        %v4054 = vpop.f32.mrf.mxu0
        %4055 = vmatprep.mubr.f32.mxu0 0.0
        %4056 = vmatmul.mubr.f32.gmra.mxu0 %v3914
        %v4057 = vpop.f32.mrf.mxu0
        %v4058 = vadd.f32 %v1685, %v4057
        %v4059 = vpop.f32.mrf.mxu0
        %4060 = vdwg.mxu0
        %v4061 = vmax.f32 %v3983, 0.0
        %v4062 = vmax.f32 %v3988, 0.0
        %v4063 = vmax.f32 %v3993, 0.0
        %v4064 = vmax.f32 %v3998, 0.0
        %v4065 = vmax.f32 %v4003, 0.0
        %v4066 = vmax.f32 %v4008, 0.0
        %v4067 = vmax.f32 %v4013, 0.0
        %v4068 = vmax.f32 %v4018, 0.0
        %v4069 = vmax.f32 %v4023, 0.0
        %v4070 = vmax.f32 %v4028, 0.0
        %v4071 = vmax.f32 %v4033, 0.0
        %v4072 = vmax.f32 %v4038, 0.0
        %v4073 = vmax.f32 %v4043, 0.0
        %v4074 = vmax.f32 %v4048, 0.0
        %v4075 = vmax.f32 %v4053, 0.0
        %v4076 = vmax.f32 %v4058, 0.0
        %v4078 = vsel %vm580, %v4061, 0
        %v4081 = vsel %vm580, %v4062, 0
        %v4084 = vsel %vm580, %v4063, 0
        %v4087 = vsel %vm580, %v4064, 0
        %v4090 = vsel %vm580, %v4065, 0
        %v4093 = vsel %vm580, %v4066, 0
        %v4096 = vsel %vm580, %v4067, 0
        %v4099 = vsel %vm580, %v4068, 0
        %v4102 = vsel %vm580, %v4069, 0
        %v4105 = vsel %vm580, %v4070, 0
        %v4108 = vsel %vm580, %v4071, 0
        %v4111 = vsel %vm580, %v4072, 0
        %v4114 = vsel %vm580, %v4073, 0
        %v4117 = vsel %vm580, %v4074, 0
        %v4120 = vsel %vm580, %v4075, 0
        %v4123 = vsel %vm580, %v4076, 0
        %4125 = vmatprep.subr.mxu0 0.0
        %4126 = vmatpush1.msra.mxu0 0.0
        %4127 = vmatprep.subr.mxu0 0.0
        %4128 = vmatpush1.msra.mxu0 0.0
        %4129 = vmatprep.subr.mxu0 0.0
        %4130 = vmatpush1.msra.mxu0 0.0
        %4131 = vmatprep.subr.mxu0 0.0
        %4132 = vmatpush1.msra.mxu0 0.0
        %4133 = vmatprep.subr.mxu0 0.0
        %4134 = vmatpush1.msra.mxu0 0.0
        %4135 = vmatprep.subr.mxu0 0.0
        %4136 = vmatpush1.msra.mxu0 0.0
        %4137 = vmatprep.subr.mxu0 0.0
        %4138 = vmatpush1.msra.mxu0 0.0
        %4139 = vmatprep.subr.mxu0 0.0
        %4140 = vmatpush1.msra.mxu0 0.0
        %4141 = vmatprep.subr.mxu0 0.0
        %4142 = vmatpush1.msra.mxu0 0.0
        %4143 = vmatprep.subr.mxu0 0.0
        %4144 = vmatpush1.msra.mxu0 0.0
        %4145 = vmatprep.subr.mxu0 0.0
        %4146 = vmatpush1.msra.mxu0 0.0
        %4147 = vmatprep.subr.mxu0 0.0
        %4148 = vmatpush1.msra.mxu0 0.0
        %4149 = vmatprep.subr.mxu0 0.0
        %4150 = vmatpush1.msra.mxu0 %v1900
        %4151 = vmatprep.subr.mxu0 0.0
        %4152 = vmatpush1.msra.mxu0 %v1899
        %4153 = vmatprep.subr.mxu0 0.0
        %4154 = vmatpush1.msra.mxu0 %v1898
        %4155 = vmatprep.subr.mxu0 0.0
        %4156 = vmatpush1.msra.mxu0 %v1897
        %4157 = vmatprep.subr.mxu0 0.0
        %4158 = vmatpush2.msra.mxu0 0.0
        %4159 = vmatprep.subr.mxu0 0.0
        %4160 = vmatpush2.msra.mxu0 0.0
        %4161 = vmatprep.subr.mxu0 0.0
        %4162 = vmatpush2.msra.mxu0 0.0
        %4163 = vmatprep.subr.mxu0 0.0
        %4164 = vmatpush2.msra.mxu0 0.0
        %4165 = vmatprep.subr.mxu0 0.0
        %4166 = vmatpush2.msra.mxu0 0.0
        %4167 = vmatprep.subr.mxu0 0.0
        %4168 = vmatpush2.msra.mxu0 0.0
        %4169 = vmatprep.subr.mxu0 0.0
        %4170 = vmatpush2.msra.mxu0 0.0
        %4171 = vmatprep.subr.mxu0 0.0
        %4172 = vmatpush2.msra.mxu0 0.0
        %4173 = vmatprep.subr.mxu0 0.0
        %4174 = vmatpush2.msra.mxu0 0.0
        %4175 = vmatprep.subr.mxu0 0.0
        %4176 = vmatpush2.msra.mxu0 0.0
        %4177 = vmatprep.subr.mxu0 0.0
        %4178 = vmatpush2.msra.mxu0 0.0
        %4179 = vmatprep.subr.mxu0 0.0
        %4180 = vmatpush2.msra.mxu0 0.0
        %4181 = vmatprep.subr.mxu0 0.0
        %4182 = vmatpush2.msra.mxu0 0.0
        %4183 = vmatprep.subr.mxu0 0.0
        %4184 = vmatpush2.msra.mxu0 0.0
        %4185 = vmatprep.subr.mxu0 0.0
        %4186 = vmatpush2.msra.mxu0 0.0
        %4187 = vmatprep.subr.mxu0 0.0
        %4188 = vmatpush2.msra.mxu0 0.0
        %4189 = vmatprep.mubr.f32.mxu0 0.0
        %4190 = vmatmul.mubr.f32.gmra.mxu0 %v4078
        %v4191 = vpop.f32.mrf.mxu0
        %v4192 = vadd.f32 %v1907, %v4191
        %v4193 = vpop.f32.mrf.mxu0
        %4194 = vmatprep.mubr.f32.mxu0 0.0
        %4195 = vmatmul.mubr.f32.gmra.mxu0 %v4081
        %v4196 = vpop.f32.mrf.mxu0
        %v4197 = vadd.f32 %v1907, %v4196
        %v4198 = vpop.f32.mrf.mxu0
        %4199 = vmatprep.mubr.f32.mxu0 0.0
        %4200 = vmatmul.mubr.f32.gmra.mxu0 %v4084
        %v4201 = vpop.f32.mrf.mxu0
        %v4202 = vadd.f32 %v1907, %v4201
        %v4203 = vpop.f32.mrf.mxu0
        %4204 = vmatprep.mubr.f32.mxu0 0.0
        %4205 = vmatmul.mubr.f32.gmra.mxu0 %v4087
        %v4206 = vpop.f32.mrf.mxu0
        %v4207 = vadd.f32 %v1907, %v4206
        %v4208 = vpop.f32.mrf.mxu0
        %4209 = vmatprep.mubr.f32.mxu0 0.0
        %4210 = vmatmul.mubr.f32.gmra.mxu0 %v4090
        %v4211 = vpop.f32.mrf.mxu0
        %v4212 = vadd.f32 %v1907, %v4211
        %v4213 = vpop.f32.mrf.mxu0
        %4214 = vmatprep.mubr.f32.mxu0 0.0
        %4215 = vmatmul.mubr.f32.gmra.mxu0 %v4093
        %v4216 = vpop.f32.mrf.mxu0
        %v4217 = vadd.f32 %v1907, %v4216
        %v4218 = vpop.f32.mrf.mxu0
        %4219 = vmatprep.mubr.f32.mxu0 0.0
        %4220 = vmatmul.mubr.f32.gmra.mxu0 %v4096
        %v4221 = vpop.f32.mrf.mxu0
        %v4222 = vadd.f32 %v1907, %v4221
        %v4223 = vpop.f32.mrf.mxu0
        %4224 = vmatprep.mubr.f32.mxu0 0.0
        %4225 = vmatmul.mubr.f32.gmra.mxu0 %v4099
        %v4226 = vpop.f32.mrf.mxu0
        %v4227 = vadd.f32 %v1907, %v4226
        %v4228 = vpop.f32.mrf.mxu0
        %4229 = vmatprep.mubr.f32.mxu0 0.0
        %4230 = vmatmul.mubr.f32.gmra.mxu0 %v4102
        %v4231 = vpop.f32.mrf.mxu0
        %v4232 = vadd.f32 %v1907, %v4231
        %v4233 = vpop.f32.mrf.mxu0
        %4234 = vmatprep.mubr.f32.mxu0 0.0
        %4235 = vmatmul.mubr.f32.gmra.mxu0 %v4105
        %v4236 = vpop.f32.mrf.mxu0
        %v4237 = vadd.f32 %v1907, %v4236
        %v4238 = vpop.f32.mrf.mxu0
        %4239 = vmatprep.mubr.f32.mxu0 0.0
        %4240 = vmatmul.mubr.f32.gmra.mxu0 %v4108
        %v4241 = vpop.f32.mrf.mxu0
        %v4242 = vadd.f32 %v1907, %v4241
        %v4243 = vpop.f32.mrf.mxu0
        %4244 = vmatprep.mubr.f32.mxu0 0.0
        %4245 = vmatmul.mubr.f32.gmra.mxu0 %v4111
        %v4246 = vpop.f32.mrf.mxu0
        %v4247 = vadd.f32 %v1907, %v4246
        %v4248 = vpop.f32.mrf.mxu0
        %4249 = vmatprep.mubr.f32.mxu0 0.0
        %4250 = vmatmul.mubr.f32.gmra.mxu0 %v4114
        %v4251 = vpop.f32.mrf.mxu0
        %v4252 = vadd.f32 %v1907, %v4251
        %v4253 = vpop.f32.mrf.mxu0
        %4254 = vmatprep.mubr.f32.mxu0 0.0
        %4255 = vmatmul.mubr.f32.gmra.mxu0 %v4117
        %v4256 = vpop.f32.mrf.mxu0
        %v4257 = vadd.f32 %v1907, %v4256
        %v4258 = vpop.f32.mrf.mxu0
        %4259 = vmatprep.mubr.f32.mxu0 0.0
        %4260 = vmatmul.mubr.f32.gmra.mxu0 %v4120
        %v4261 = vpop.f32.mrf.mxu0
        %v4262 = vadd.f32 %v1907, %v4261
        %v4263 = vpop.f32.mrf.mxu0
        %4264 = vmatprep.mubr.f32.mxu0 0.0
        %4265 = vmatmul.mubr.f32.gmra.mxu0 %v4123
        %v4266 = vpop.f32.mrf.mxu0
        %v4267 = vadd.f32 %v1907, %v4266
        %v4268 = vpop.f32.mrf.mxu0
        %4269 = vdwg.mxu0
        %v4270 = vmax.f32 %v4192, 0.0
        %v4271 = vmax.f32 %v4197, 0.0
        %v4272 = vmax.f32 %v4202, 0.0
        %v4273 = vmax.f32 %v4207, 0.0
        %v4274 = vmax.f32 %v4212, 0.0
        %v4275 = vmax.f32 %v4217, 0.0
        %v4276 = vmax.f32 %v4222, 0.0
        %v4277 = vmax.f32 %v4227, 0.0
        %v4278 = vmax.f32 %v4232, 0.0
        %v4279 = vmax.f32 %v4237, 0.0
        %v4280 = vmax.f32 %v4242, 0.0
        %v4281 = vmax.f32 %v4247, 0.0
        %v4282 = vmax.f32 %v4252, 0.0
        %v4283 = vmax.f32 %v4257, 0.0
        %v4284 = vmax.f32 %v4262, 0.0
        %v4285 = vmax.f32 %v4267, 0.0
        %v4287 = vsel %vm580, %v4270, 0
        %v4290 = vsel %vm580, %v4271, 0
        %v4293 = vsel %vm580, %v4272, 0
        %v4296 = vsel %vm580, %v4273, 0
        %v4299 = vsel %vm580, %v4274, 0
        %v4302 = vsel %vm580, %v4275, 0
        %v4305 = vsel %vm580, %v4276, 0
        %v4308 = vsel %vm580, %v4277, 0
        %v4311 = vsel %vm580, %v4278, 0
        %v4314 = vsel %vm580, %v4279, 0
        %v4317 = vsel %vm580, %v4280, 0
        %v4320 = vsel %vm580, %v4281, 0
        %v4323 = vsel %vm580, %v4282, 0
        %v4326 = vsel %vm580, %v4283, 0
        %v4329 = vsel %vm580, %v4284, 0
        %v4332 = vsel %vm580, %v4285, 0
        %4334 = vmatprep.subr.mxu0 0.0
        %4335 = vmatpush1.msra.mxu0 0.0
        %4336 = vmatprep.subr.mxu0 0.0
        %4337 = vmatpush1.msra.mxu0 0.0
        %4338 = vmatprep.subr.mxu0 0.0
        %4339 = vmatpush1.msra.mxu0 0.0
        %4340 = vmatprep.subr.mxu0 0.0
        %4341 = vmatpush1.msra.mxu0 0.0
        %4342 = vmatprep.subr.mxu0 0.0
        %4343 = vmatpush1.msra.mxu0 0.0
        %4344 = vmatprep.subr.mxu0 0.0
        %4345 = vmatpush1.msra.mxu0 0.0
        %4346 = vmatprep.subr.mxu0 0.0
        %4347 = vmatpush1.msra.mxu0 0.0
        %4348 = vmatprep.subr.mxu0 0.0
        %4349 = vmatpush1.msra.mxu0 0.0
        %4350 = vmatprep.subr.mxu0 0.0
        %4351 = vmatpush1.msra.mxu0 0.0
        %4352 = vmatprep.subr.mxu0 0.0
        %4353 = vmatpush1.msra.mxu0 0.0
        %4354 = vmatprep.subr.mxu0 0.0
        %4355 = vmatpush1.msra.mxu0 0.0
        %4356 = vmatprep.subr.mxu0 0.0
        %4357 = vmatpush1.msra.mxu0 0.0
        %4358 = vmatprep.subr.mxu0 0.0
        %4359 = vmatpush1.msra.mxu0 %v2122
        %4360 = vmatprep.subr.mxu0 0.0
        %4361 = vmatpush1.msra.mxu0 %v2121
        %4362 = vmatprep.subr.mxu0 0.0
        %4363 = vmatpush1.msra.mxu0 %v2120
        %4364 = vmatprep.subr.mxu0 0.0
        %4365 = vmatpush1.msra.mxu0 %v2119
        %4366 = vmatprep.subr.mxu0 0.0
        %4367 = vmatpush2.msra.mxu0 0.0
        %4368 = vmatprep.subr.mxu0 0.0
        %4369 = vmatpush2.msra.mxu0 0.0
        %4370 = vmatprep.subr.mxu0 0.0
        %4371 = vmatpush2.msra.mxu0 0.0
        %4372 = vmatprep.subr.mxu0 0.0
        %4373 = vmatpush2.msra.mxu0 0.0
        %4374 = vmatprep.subr.mxu0 0.0
        %4375 = vmatpush2.msra.mxu0 0.0
        %4376 = vmatprep.subr.mxu0 0.0
        %4377 = vmatpush2.msra.mxu0 0.0
        %4378 = vmatprep.subr.mxu0 0.0
        %4379 = vmatpush2.msra.mxu0 0.0
        %4380 = vmatprep.subr.mxu0 0.0
        %4381 = vmatpush2.msra.mxu0 0.0
        %4382 = vmatprep.subr.mxu0 0.0
        %4383 = vmatpush2.msra.mxu0 0.0
        %4384 = vmatprep.subr.mxu0 0.0
        %4385 = vmatpush2.msra.mxu0 0.0
        %4386 = vmatprep.subr.mxu0 0.0
        %4387 = vmatpush2.msra.mxu0 0.0
        %4388 = vmatprep.subr.mxu0 0.0
        %4389 = vmatpush2.msra.mxu0 0.0
        %4390 = vmatprep.subr.mxu0 0.0
        %4391 = vmatpush2.msra.mxu0 0.0
        %4392 = vmatprep.subr.mxu0 0.0
        %4393 = vmatpush2.msra.mxu0 0.0
        %4394 = vmatprep.subr.mxu0 0.0
        %4395 = vmatpush2.msra.mxu0 0.0
        %4396 = vmatprep.subr.mxu0 0.0
        %4397 = vmatpush2.msra.mxu0 0.0
        %4398 = vmatprep.mubr.f32.mxu0 0.0
        %4399 = vmatmul.mubr.f32.gmra.mxu0 %v4287
        %v4400 = vpop.f32.mrf.mxu0
        %v4401 = vadd.f32 %v2129, %v4400
        %v4402 = vpop.f32.mrf.mxu0
        %4403 = vmatprep.mubr.f32.mxu0 0.0
        %4404 = vmatmul.mubr.f32.gmra.mxu0 %v4290
        %v4405 = vpop.f32.mrf.mxu0
        %v4406 = vadd.f32 %v2129, %v4405
        %v4407 = vpop.f32.mrf.mxu0
        %4408 = vmatprep.mubr.f32.mxu0 0.0
        %4409 = vmatmul.mubr.f32.gmra.mxu0 %v4293
        %v4410 = vpop.f32.mrf.mxu0
        %v4411 = vadd.f32 %v2129, %v4410
        %v4412 = vpop.f32.mrf.mxu0
        %4413 = vmatprep.mubr.f32.mxu0 0.0
        %4414 = vmatmul.mubr.f32.gmra.mxu0 %v4296
        %v4415 = vpop.f32.mrf.mxu0
        %v4416 = vadd.f32 %v2129, %v4415
        %v4417 = vpop.f32.mrf.mxu0
        %4418 = vmatprep.mubr.f32.mxu0 0.0
        %4419 = vmatmul.mubr.f32.gmra.mxu0 %v4299
        %v4420 = vpop.f32.mrf.mxu0
        %v4421 = vadd.f32 %v2129, %v4420
        %v4422 = vpop.f32.mrf.mxu0
        %4423 = vmatprep.mubr.f32.mxu0 0.0
        %4424 = vmatmul.mubr.f32.gmra.mxu0 %v4302
        %v4425 = vpop.f32.mrf.mxu0
        %v4426 = vadd.f32 %v2129, %v4425
        %v4427 = vpop.f32.mrf.mxu0
        %4428 = vmatprep.mubr.f32.mxu0 0.0
        %4429 = vmatmul.mubr.f32.gmra.mxu0 %v4305
        %v4430 = vpop.f32.mrf.mxu0
        %v4431 = vadd.f32 %v2129, %v4430
        %v4432 = vpop.f32.mrf.mxu0
        %4433 = vmatprep.mubr.f32.mxu0 0.0
        %4434 = vmatmul.mubr.f32.gmra.mxu0 %v4308
        %v4435 = vpop.f32.mrf.mxu0
        %v4436 = vadd.f32 %v2129, %v4435
        %v4437 = vpop.f32.mrf.mxu0
        %4438 = vmatprep.mubr.f32.mxu0 0.0
        %4439 = vmatmul.mubr.f32.gmra.mxu0 %v4311
        %v4440 = vpop.f32.mrf.mxu0
        %v4441 = vadd.f32 %v2129, %v4440
        %v4442 = vpop.f32.mrf.mxu0
        %4443 = vmatprep.mubr.f32.mxu0 0.0
        %4444 = vmatmul.mubr.f32.gmra.mxu0 %v4314
        %v4445 = vpop.f32.mrf.mxu0
        %v4446 = vadd.f32 %v2129, %v4445
        %v4447 = vpop.f32.mrf.mxu0
        %4448 = vmatprep.mubr.f32.mxu0 0.0
        %4449 = vmatmul.mubr.f32.gmra.mxu0 %v4317
        %v4450 = vpop.f32.mrf.mxu0
        %v4451 = vadd.f32 %v2129, %v4450
        %v4452 = vpop.f32.mrf.mxu0
        %4453 = vmatprep.mubr.f32.mxu0 0.0
        %4454 = vmatmul.mubr.f32.gmra.mxu0 %v4320
        %v4455 = vpop.f32.mrf.mxu0
        %v4456 = vadd.f32 %v2129, %v4455
        %v4457 = vpop.f32.mrf.mxu0
        %4458 = vmatprep.mubr.f32.mxu0 0.0
        %4459 = vmatmul.mubr.f32.gmra.mxu0 %v4323
        %v4460 = vpop.f32.mrf.mxu0
        %v4461 = vadd.f32 %v2129, %v4460
        %v4462 = vpop.f32.mrf.mxu0
        %4463 = vmatprep.mubr.f32.mxu0 0.0
        %4464 = vmatmul.mubr.f32.gmra.mxu0 %v4326
        %v4465 = vpop.f32.mrf.mxu0
        %v4466 = vadd.f32 %v2129, %v4465
        %v4467 = vpop.f32.mrf.mxu0
        %4468 = vmatprep.mubr.f32.mxu0 0.0
        %4469 = vmatmul.mubr.f32.gmra.mxu0 %v4329
        %v4470 = vpop.f32.mrf.mxu0
        %v4471 = vadd.f32 %v2129, %v4470
        %v4472 = vpop.f32.mrf.mxu0
        %4473 = vmatprep.mubr.f32.mxu0 0.0
        %4474 = vmatmul.mubr.f32.gmra.mxu0 %v4332
        %v4475 = vpop.f32.mrf.mxu0
        %v4476 = vadd.f32 %v2129, %v4475
        %v4477 = vpop.f32.mrf.mxu0
        %4478 = vdwg.mxu0
        %v4479 = vmax.f32 %v4401, 0.0
        %v4480 = vmax.f32 %v4406, 0.0
        %v4481 = vmax.f32 %v4411, 0.0
        %v4482 = vmax.f32 %v4416, 0.0
        %v4483 = vmax.f32 %v4421, 0.0
        %v4484 = vmax.f32 %v4426, 0.0
        %v4485 = vmax.f32 %v4431, 0.0
        %v4486 = vmax.f32 %v4436, 0.0
        %v4487 = vmax.f32 %v4441, 0.0
        %v4488 = vmax.f32 %v4446, 0.0
        %v4489 = vmax.f32 %v4451, 0.0
        %v4490 = vmax.f32 %v4456, 0.0
        %v4491 = vmax.f32 %v4461, 0.0
        %v4492 = vmax.f32 %v4466, 0.0
        %v4493 = vmax.f32 %v4471, 0.0
        %v4494 = vmax.f32 %v4476, 0.0
        %s4495 = scalar_lea.vmem %s7, 64
        %v4496 = vld [vmem:[%s4495] sm:$0xff]
        %v4497 = vld [vmem:[%s4495 + $0x8] sm:$0xff]
        %v4498 = vld [vmem:[%s4495 + $0x10] sm:$0xff]
        %v4499 = vld [vmem:[%s4495 + $0x18] sm:$0xff]
        %v4500 = vld [vmem:[%s4495 + $0x20] sm:$0xff]
        %v4501 = vld [vmem:[%s4495 + $0x28] sm:$0xff]
        %v4502 = vld [vmem:[%s4495 + $0x30] sm:$0xff]
        %v4503 = vld [vmem:[%s4495 + $0x38] sm:$0xff]
        %s4504 = scalar_lea.vmem %s8, 2
        %v4505 = vld [vmem:[%s4504] sm:$0x3]
        %v4507 = vlaneseq
        %v4508 = vshrl.u32 %v4507, 7
        %v4509 = vsub.s32 0, %v4508
        %v4510 = vrot.slane %v4505, %v4509
        %v4513 = vsel %vm580, %v4479, 0
        %v4516 = vsel %vm580, %v4480, 0
        %v4519 = vsel %vm580, %v4481, 0
        %v4522 = vsel %vm580, %v4482, 0
        %v4525 = vsel %vm580, %v4483, 0
        %v4528 = vsel %vm580, %v4484, 0
        %v4531 = vsel %vm580, %v4485, 0
        %v4534 = vsel %vm580, %v4486, 0
        %v4537 = vsel %vm580, %v4487, 0
        %v4540 = vsel %vm580, %v4488, 0
        %v4543 = vsel %vm580, %v4489, 0
        %v4546 = vsel %vm580, %v4490, 0
        %v4549 = vsel %vm580, %v4491, 0
        %v4552 = vsel %vm580, %v4492, 0
        %v4555 = vsel %vm580, %v4493, 0
        %v4558 = vsel %vm580, %v4494, 0
        %4560 = vmatprep.subr.mxu0 0.0
        %4561 = vmatpush1.msra.mxu0 0.0
        %4562 = vmatprep.subr.mxu0 0.0
        %4563 = vmatpush1.msra.mxu0 0.0
        %4564 = vmatprep.subr.mxu0 0.0
        %4565 = vmatpush1.msra.mxu0 0.0
        %4566 = vmatprep.subr.mxu0 0.0
        %4567 = vmatpush1.msra.mxu0 0.0
        %4568 = vmatprep.subr.mxu0 0.0
        %4569 = vmatpush1.msra.mxu0 0.0
        %4570 = vmatprep.subr.mxu0 0.0
        %4571 = vmatpush1.msra.mxu0 0.0
        %4572 = vmatprep.subr.mxu0 0.0
        %4573 = vmatpush1.msra.mxu0 0.0
        %4574 = vmatprep.subr.mxu0 0.0
        %4575 = vmatpush1.msra.mxu0 0.0
        %4576 = vmatprep.subr.mxu0 0.0
        %4577 = vmatpush1.msra.mxu0 0.0
        %4578 = vmatprep.subr.mxu0 0.0
        %4579 = vmatpush1.msra.mxu0 0.0
        %4580 = vmatprep.subr.mxu0 0.0
        %4581 = vmatpush1.msra.mxu0 0.0
        %4582 = vmatprep.subr.mxu0 0.0
        %4583 = vmatpush1.msra.mxu0 0.0
        %4584 = vmatprep.subr.mxu0 %v4503
        %4585 = vmatpush1.msra.mxu0 %v4502
        %4586 = vmatprep.subr.mxu0 %v4501
        %4587 = vmatpush1.msra.mxu0 %v4500
        %4588 = vmatprep.subr.mxu0 %v4499
        %4589 = vmatpush1.msra.mxu0 %v4498
        %4590 = vmatprep.subr.mxu0 %v4497
        %4591 = vmatpush1.msra.mxu0 %v4496
        %4592 = vmatprep.subr.mxu0 0.0
        %4593 = vmatpush2.msra.mxu0 0.0
        %4594 = vmatprep.subr.mxu0 0.0
        %4595 = vmatpush2.msra.mxu0 0.0
        %4596 = vmatprep.subr.mxu0 0.0
        %4597 = vmatpush2.msra.mxu0 0.0
        %4598 = vmatprep.subr.mxu0 0.0
        %4599 = vmatpush2.msra.mxu0 0.0
        %4600 = vmatprep.subr.mxu0 0.0
        %4601 = vmatpush2.msra.mxu0 0.0
        %4602 = vmatprep.subr.mxu0 0.0
        %4603 = vmatpush2.msra.mxu0 0.0
        %4604 = vmatprep.subr.mxu0 0.0
        %4605 = vmatpush2.msra.mxu0 0.0
        %4606 = vmatprep.subr.mxu0 0.0
        %4607 = vmatpush2.msra.mxu0 0.0
        %4608 = vmatprep.subr.mxu0 0.0
        %4609 = vmatpush2.msra.mxu0 0.0
        %4610 = vmatprep.subr.mxu0 0.0
        %4611 = vmatpush2.msra.mxu0 0.0
        %4612 = vmatprep.subr.mxu0 0.0
        %4613 = vmatpush2.msra.mxu0 0.0
        %4614 = vmatprep.subr.mxu0 0.0
        %4615 = vmatpush2.msra.mxu0 0.0
        %4616 = vmatprep.subr.mxu0 0.0
        %4617 = vmatpush2.msra.mxu0 0.0
        %4618 = vmatprep.subr.mxu0 0.0
        %4619 = vmatpush2.msra.mxu0 0.0
        %4620 = vmatprep.subr.mxu0 0.0
        %4621 = vmatpush2.msra.mxu0 0.0
        %4622 = vmatprep.subr.mxu0 0.0
        %4623 = vmatpush2.msra.mxu0 0.0
        %4624 = vmatprep.mubr.f32.mxu0 0.0
        %4625 = vmatmul.mubr.f32.gmra.mxu0 %v4513
        %v4626 = vpop.f32.mrf.mxu0
        %v4627 = vadd.f32 %v4510, %v4626
        %v4628 = vpop.f32.mrf.mxu0
        %4629 = vmatprep.mubr.f32.mxu0 0.0
        %4630 = vmatmul.mubr.f32.gmra.mxu0 %v4516
        %v4631 = vpop.f32.mrf.mxu0
        %v4632 = vadd.f32 %v4510, %v4631
        %v4633 = vpop.f32.mrf.mxu0
        %4634 = vmatprep.mubr.f32.mxu0 0.0
        %4635 = vmatmul.mubr.f32.gmra.mxu0 %v4519
        %v4636 = vpop.f32.mrf.mxu0
        %v4637 = vadd.f32 %v4510, %v4636
        %v4638 = vpop.f32.mrf.mxu0
        %4639 = vmatprep.mubr.f32.mxu0 0.0
        %4640 = vmatmul.mubr.f32.gmra.mxu0 %v4522
        %v4641 = vpop.f32.mrf.mxu0
        %v4642 = vadd.f32 %v4510, %v4641
        %v4643 = vpop.f32.mrf.mxu0
        %4644 = vmatprep.mubr.f32.mxu0 0.0
        %4645 = vmatmul.mubr.f32.gmra.mxu0 %v4525
        %v4646 = vpop.f32.mrf.mxu0
        %v4647 = vadd.f32 %v4510, %v4646
        %v4648 = vpop.f32.mrf.mxu0
        %4649 = vmatprep.mubr.f32.mxu0 0.0
        %4650 = vmatmul.mubr.f32.gmra.mxu0 %v4528
        %v4651 = vpop.f32.mrf.mxu0
        %v4652 = vadd.f32 %v4510, %v4651
        %v4653 = vpop.f32.mrf.mxu0
        %4654 = vmatprep.mubr.f32.mxu0 0.0
        %4655 = vmatmul.mubr.f32.gmra.mxu0 %v4531
        %v4656 = vpop.f32.mrf.mxu0
        %v4657 = vadd.f32 %v4510, %v4656
        %v4658 = vpop.f32.mrf.mxu0
        %4659 = vmatprep.mubr.f32.mxu0 0.0
        %4660 = vmatmul.mubr.f32.gmra.mxu0 %v4534
        %v4661 = vpop.f32.mrf.mxu0
        %v4662 = vadd.f32 %v4510, %v4661
        %v4663 = vpop.f32.mrf.mxu0
        %4664 = vmatprep.mubr.f32.mxu0 0.0
        %4665 = vmatmul.mubr.f32.gmra.mxu0 %v4537
        %v4666 = vpop.f32.mrf.mxu0
        %v4667 = vadd.f32 %v4510, %v4666
        %v4668 = vpop.f32.mrf.mxu0
        %4669 = vmatprep.mubr.f32.mxu0 0.0
        %4670 = vmatmul.mubr.f32.gmra.mxu0 %v4540
        %v4671 = vpop.f32.mrf.mxu0
        %v4672 = vadd.f32 %v4510, %v4671
        %v4673 = vpop.f32.mrf.mxu0
        %4674 = vmatprep.mubr.f32.mxu0 0.0
        %4675 = vmatmul.mubr.f32.gmra.mxu0 %v4543
        %v4676 = vpop.f32.mrf.mxu0
        %v4677 = vadd.f32 %v4510, %v4676
        %v4678 = vpop.f32.mrf.mxu0
        %4679 = vmatprep.mubr.f32.mxu0 0.0
        %4680 = vmatmul.mubr.f32.gmra.mxu0 %v4546
        %v4681 = vpop.f32.mrf.mxu0
        %v4682 = vadd.f32 %v4510, %v4681
        %v4683 = vpop.f32.mrf.mxu0
        %4684 = vmatprep.mubr.f32.mxu0 0.0
        %4685 = vmatmul.mubr.f32.gmra.mxu0 %v4549
        %v4686 = vpop.f32.mrf.mxu0
        %v4687 = vadd.f32 %v4510, %v4686
        %v4688 = vpop.f32.mrf.mxu0
        %4689 = vmatprep.mubr.f32.mxu0 0.0
        %4690 = vmatmul.mubr.f32.gmra.mxu0 %v4552
        %v4691 = vpop.f32.mrf.mxu0
        %v4692 = vadd.f32 %v4510, %v4691
        %v4693 = vpop.f32.mrf.mxu0
        %4694 = vmatprep.mubr.f32.mxu0 0.0
        %4695 = vmatmul.mubr.f32.gmra.mxu0 %v4555
        %v4696 = vpop.f32.mrf.mxu0
        %v4697 = vadd.f32 %v4510, %v4696
        %v4698 = vpop.f32.mrf.mxu0
        %4699 = vmatprep.mubr.f32.mxu0 0.0
        %4700 = vmatmul.mubr.f32.gmra.mxu0 %v4558
        %v4701 = vpop.f32.mrf.mxu0
        %v4702 = vadd.f32 %v4510, %v4701
        %v4703 = vpop.f32.mrf.mxu0
        %4704 = vdwg.mxu0
        %v4705 = vadd.f32 %v3627, %v4627
        %v4706 = vadd.f32 %v3628, %v4632
        %v4707 = vadd.f32 %v3629, %v4637
        %v4708 = vadd.f32 %v3630, %v4642
        %v4709 = vadd.f32 %v3631, %v4647
        %v4710 = vadd.f32 %v3632, %v4652
        %v4711 = vadd.f32 %v3633, %v4657
        %v4712 = vadd.f32 %v3634, %v4662
        %v4713 = vadd.f32 %v3635, %v4667
        %v4714 = vadd.f32 %v3636, %v4672
        %v4715 = vadd.f32 %v3637, %v4677
        %v4716 = vadd.f32 %v3638, %v4682
        %v4717 = vadd.f32 %v3639, %v4687
        %v4718 = vadd.f32 %v3640, %v4692
        %v4719 = vadd.f32 %v3641, %v4697
        %v4720 = vadd.f32 %v3642, %v4702
        %4721 = vst [vmem:[%s326] sm:$0xff] %v4705
        %4722 = vst [vmem:[%s326 + $0x8] sm:$0xff] %v4706
        %4723 = vst [vmem:[%s326 + $0x10] sm:$0xff] %v4707
        %4724 = vst [vmem:[%s326 + $0x18] sm:$0xff] %v4708
        %4725 = vst [vmem:[%s326 + $0x20] sm:$0xff] %v4709
        %4726 = vst [vmem:[%s326 + $0x28] sm:$0xff] %v4710
        %4727 = vst [vmem:[%s326 + $0x30] sm:$0xff] %v4711
        %4728 = vst [vmem:[%s326 + $0x38] sm:$0xff] %v4712
        %4729 = vst [vmem:[%s326 + $0x40] sm:$0xff] %v4713
        %4730 = vst [vmem:[%s326 + $0x48] sm:$0xff] %v4714
        %4731 = vst [vmem:[%s326 + $0x50] sm:$0xff] %v4715
        %4732 = vst [vmem:[%s326 + $0x58] sm:$0xff] %v4716
        %4733 = vst [vmem:[%s326 + $0x60] sm:$0xff] %v4717
        %4734 = vst [vmem:[%s326 + $0x68] sm:$0xff] %v4718
        %4735 = vst [vmem:[%s326 + $0x70] sm:$0xff] %v4719
        %4736 = vst [vmem:[%s326 + $0x78] sm:$0xff] %v4720
        %s4737 = sand.u32 %s225, 1
        %s4738 = scalar_lea.sflag [#allocation3], %s4737
        %s4739 = sand.u32 %s225, 1
        %s4740 = smul.addr %s4739, 128
        %s4741 = scalar_lea.vmem [#allocation2], %s4740
        // Predicated region
        $region57: #{tpu_custom_call.1} parent=55 // pred_check
          %p4742 = pneg %p235
        $region58: #{tpu_custom_call.1} parent=55 // pred_check_branch
          %4744 = sbr.rel (%p4742) target = $region60
        $region59: #{tpu_custom_call.1} parent=55 // pred_region
          %s4745 = smul.u32 16, %s23
          %s4747 = ssub.s32 2048, 2048
          %4748 = vsyncadd %s4738, %s4747
          %s4749 = smul.addr %s4745, 128
          %s4750 = scalar_lea.hbm %s9, %s4749
          %s4751 = sshll.u32 %s4741, 4
          %s4752 = int_to_ptr.vmem [resolvable:$true] %s4751
          %4757 = dma.vmem_to_hbm [thread:$0]  %s4752, 2048, %s4750, %s4738, 128, 128, 8
        $region60: #{tpu_custom_call.1} parent=55 // pred_fallthru
          _
      $region56: #{tpu_custom_call.1} parent=5 // pred_fallthru
        _
      %p4758 = scmp.le.s32.totalorder 2, %s18
      // Predicated region
      $region61: #{tpu_custom_call.1} parent=5 // pred_check
        %p4759 = pneg %p4758
      $region62: #{tpu_custom_call.1} parent=5 // pred_check_branch
        %4761 = sbr.rel (%p4759) target = $region64
      $region63: #{tpu_custom_call.1} parent=5 // pred_region
        %s4762 = ssub.s32 %s18, 2
        // Predicated region
        $region65: #{tpu_custom_call.1} parent=63 // pred_check
          %p4763 = pneg %p241
        $region66: #{tpu_custom_call.1} parent=63 // pred_check_branch
          %4765 = sbr.rel (%p4763) target = $region68
        $region67: #{tpu_custom_call.1} parent=63 // pred_region
          %s4766 = sand.u32 %s226, 1
          %s4767 = scalar_lea.sflag [#allocation3], %s4766
          %s4768 = sand.u32 %s226, 1
          %s4769 = smul.addr %s4768, 128
          %s4770 = scalar_lea.vmem [#allocation2], %s4769
          %4771 = dma.done %s4767, 2048
        $region68: #{tpu_custom_call.1} parent=63 // pred_fallthru
          _
      $region64: #{tpu_custom_call.1} parent=5 // pred_fallthru
        _
    $region6: #{tpu_custom_call.1} parent=1 // loop_footer
      %s22 = sadd.s32 1, %s18
    $region7: #{tpu_custom_call.1} parent=1 // loop_footer_branch
      %17 = sbr.rel target = $region3
    $region8: #{tpu_custom_call.1} parent=1 // loop_exit
      _
    %4772 = vsyncpa [#allocation3], 1
    %s4773 = scalar_lea.sflag [#allocation3], 1
    %4774 = vsyncpa %s4773, 1

</llo_original>
